<compile_context>
chip_gen: v6e
topology: v6e:2x2x1
jax: 0.10.0
libtpu: 0.0.40
codegen_flags: <defaults>
</compile_context>

<pallas_src>
import math
import functools

import jax
import jax.numpy as jnp
from jax.experimental import pallas as pl
from jax.experimental.pallas import tpu as pltpu


def transformer_block_kernel(
    x_ref,                     # (1, S, D) fp32
    wqkv_ref,                  # (D, 3D)  bf16  packed [Q | K | V], head-major columns
    wo_ref,                    # (D, D)   bf16  (in = head-major features, out = D)
    w13_ref,                   # (2, D, F) bf16 packed [w1; w3]
    w2_ref,                    # (F, D)   bf16
    attn_nw_ref, ffn_nw_ref,   # (1, D) fp32 each
    cos_ref, sin_ref,          # (S, hd) fp32 each
    o_ref,                     # (1, S, D) fp32
    *, n_heads, head_dim, ffn_chunk, eps=1e-6,
):
    S = x_ref.shape[1]
    D = n_heads * head_dim
    F = w2_ref.shape[0]

    x = x_ref[0].astype(jnp.float32)                              # (S, D) residual stream

    # ---- attention RMSNorm (fp32, eps inside rsqrt) ----
    var = jnp.mean(x * x, axis=-1, keepdims=True)
    h = x * jax.lax.rsqrt(var + eps) * attn_nw_ref[...]
    h_b = h.astype(jnp.bfloat16)

    # ---- fused QKV projection: one MXU matmul (bf16 in, fp32 accumulate) ----
    qkv = jnp.dot(h_b, wqkv_ref[...], preferred_element_type=jnp.float32)   # (S, 3D)
    scale = 1.0 / math.sqrt(head_dim)
    q_all = qkv[:, :D] * scale            # fold score scale into q
    k_all = qkv[:, D:2 * D]
    v_all = qkv[:, 2 * D:]

    cos = cos_ref[...]                    # (S, hd)
    sin = sin_ref[...]
    half = head_dim // 2

    def rope(t):                          # (S, hd) fp32; exact rotate_half via slice+concat
        t_rot = jnp.concatenate([-t[:, half:], t[:, :half]], axis=-1)
        return t * cos + t_rot * sin

    # ---- per-head bidirectional attention ----
    # TODO(synk): for large n_heads put heads on a grid axis / fori_loop to bound live
    #   ranges; unrolled here because toy n_heads is small.
    head_outs = []
    for hh in range(n_heads):
        sl = slice(hh * head_dim, (hh + 1) * head_dim)
        qh = rope(q_all[:, sl]).astype(jnp.bfloat16)              # (S, hd)
        kh = rope(k_all[:, sl]).astype(jnp.bfloat16)
        vh = v_all[:, sl].astype(jnp.bfloat16)

        s = jax.lax.dot_general(qh, kh, (((1,), (1,)), ((), ())),
                                preferred_element_type=jnp.float32)   # (S, S) fp32
        m = jnp.max(s, axis=-1, keepdims=True)
        e = jnp.exp(s - m)
        l = jnp.sum(e, axis=-1, keepdims=True)
        p = (e * pl.reciprocal(l, approx=True)).astype(jnp.bfloat16)
        head_outs.append(jnp.dot(p, vh, preferred_element_type=jnp.float32))  # (S, hd)

    # ---- fused output projection: single (S,D)@(D,D) matmul ----
    attn_cat = jnp.concatenate(head_outs, axis=-1).astype(jnp.bfloat16)       # (S, D)
    x1 = x + jnp.dot(attn_cat, wo_ref[...], preferred_element_type=jnp.float32)

    # ---- FFN RMSNorm (fp32) ----
    var2 = jnp.mean(x1 * x1, axis=-1, keepdims=True)
    h2 = (x1 * jax.lax.rsqrt(var2 + eps) * ffn_nw_ref[...]).astype(jnp.bfloat16)

    # ---- SwiGLU: w2(silu(w1(x)) * w3(x)), chunked over the hidden dim ----
    f = jnp.zeros((S, D), dtype=jnp.float32)
    for c0 in range(0, F, ffn_chunk):
        c1 = min(c0 + ffn_chunk, F)
        g = jnp.dot(h2, w13_ref[0, :, c0:c1], preferred_element_type=jnp.float32)
        u = jnp.dot(h2, w13_ref[1, :, c0:c1], preferred_element_type=jnp.float32)
        act = (g * jax.nn.sigmoid(g) * u).astype(jnp.bfloat16)     # SiLU gate in fp32
        f = f + jnp.dot(act, w2_ref[c0:c1, :], preferred_element_type=jnp.float32)

    o_ref[0] = (x1 + f).astype(o_ref.dtype)


def transformer_block(x, params, *, n_heads, ffn_chunk=512):
    B, S, D = x.shape
    hd = D // n_heads
    F = params["w1"].shape[1]
    ffn_chunk = max(1, min(ffn_chunk, F))

    # Pack + cast weights once on the host side (bf16 operands, fp32 accumulation in-kernel).
    wqkv = jnp.concatenate([params["wq"], params["wk"], params["wv"]], axis=1).astype(jnp.bfloat16)
    wo = params["wo"].astype(jnp.bfloat16)
    w13 = jnp.stack([params["w1"], params["w3"]], axis=0).astype(jnp.bfloat16)
    w2 = params["w2"].astype(jnp.bfloat16)
    args = (x, wqkv, wo, w13, w2,
            params["attn_norm_w"], params["ffn_norm_w"],
            params["cos"][:S], params["sin"][:S])

    kern = functools.partial(transformer_block_kernel, n_heads=n_heads,
                             head_dim=hd, ffn_chunk=ffn_chunk)

    weight_shapes = [(D, 3 * D), (D, D), (2, D, F), (F, D),
                     (1, D), (1, D), (S, hd), (S, hd)]

    def weight_spec(shape, buffered):
        idx = lambda b, _r=len(shape): (0,) * _r
        if buffered:
            # Grid-invariant operands: single buffer instead of default double-buffering.
            return pl.BlockSpec(shape, idx, pipeline_mode=pl.Buffered(1))
        return pl.BlockSpec(shape, idx)

    flops = B * (2 * S * D * 3 * D            # fused QKV projection
                 + 4 * n_heads * S * S * hd    # scores + PV
                 + 2 * S * D * D               # output projection
                 + 6 * S * D * F)              # SwiGLU
    transcendentals = B * (n_heads * S * S + S * F + n_heads * S + 2 * S)
    bytes_accessed = (2 * B * S * D * 4
                      + 2 * (3 * D * D + D * D + 2 * D * F + F * D)   # bf16 weights
                      + 2 * S * hd * 4 + 2 * D * 4)

    def run(optimized):
        in_specs = [pl.BlockSpec((1, S, D), lambda b: (b, 0, 0))] + \
                   [weight_spec(s, optimized) for s in weight_shapes]
        extra = {}
        if optimized:
            extra["cost_estimate"] = pl.CostEstimate(
                flops=flops, transcendentals=transcendentals,
                bytes_accessed=bytes_accessed)
        call = pl.pallas_call(
            kern,
            out_shape=jax.ShapeDtypeStruct((B, S, D), x.dtype),
            grid=(B,),
            in_specs=in_specs,
            out_specs=pl.BlockSpec((1, S, D), lambda b: (b, 0, 0)),
            compiler_params=pltpu.CompilerParams(
                dimension_semantics=("parallel",)),   # v7x: shard batch over 2 TCs
            **extra,
        )
        return call(*args)

    try:
        return jax.block_until_ready(run(True))
    except Exception:
        # Fallback: older/newer JAX where pl.Buffered / cost_estimate signatures differ.
        return run(False)


def transformer_block_ref(x, params, *, n_heads, eps=1e-6):
    """Pure-JAX fp32 reference mirroring the PyTorch module."""
    B, S, D = x.shape
    hd = D // n_heads

    def rms(t, w):
        var = jnp.mean(t * t, axis=-1, keepdims=True)
        return t * jax.lax.rsqrt(var + eps) * w

    h = rms(x, params["attn_norm_w"])
    q = h @ params["wq"]
    k = h @ params["wk"]
    v = h @ params["wv"]

    def split(t):
        return t.reshape(B, S, n_heads, hd).transpose(0, 2, 1, 3)   # (B, H, S, hd)

    q, k, v = split(q), split(k), split(v)
    cos = params["cos"][:S][None, None]
    sin = params["sin"][:S][None, None]

    def rot_half(t):
        return jnp.concatenate([-t[..., hd // 2:], t[..., :hd // 2]], axis=-1)

    q = q * cos + rot_half(q) * sin
    k = k * cos + rot_half(k) * sin
    s = jnp.einsum("bhqd,bhkd->bhqk", q, k) / math.sqrt(hd)
    p = jax.nn.softmax(s, axis=-1)
    o = jnp.einsum("bhqk,bhkd->bhqd", p, v).transpose(0, 2, 1, 3).reshape(B, S, D)
    x1 = x + o @ params["wo"]

    h2 = rms(x1, params["ffn_norm_w"])
    g = h2 @ params["w1"]
    u = h2 @ params["w3"]
    return x1 + (jax.nn.silu(g) * u) @ params["w2"]


def make_params(key, dim, n_heads, ffn_dim, seq_len):
    hd = dim // n_heads
    ks = jax.random.split(key, 7)

    def init(k, shape):
        return 0.02 * jax.random.normal(k, shape, dtype=jnp.float32)

    # nn.Linear weight is (out, in); we store (in, out) so forward is plain x @ W.
    wq = init(ks[0], (dim, dim))
    wk = init(ks[1], (dim, dim))
    wv = init(ks[2], (dim, dim))
    wo = init(ks[3], (dim, dim))
    w1 = init(ks[4], (dim, ffn_dim))
    w3 = init(ks[5], (dim, ffn_dim))
    w2 = init(ks[6], (ffn_dim, dim))

    # RoPE tables (same construction as the PyTorch buffers).
    inv_freq = 1.0 / (10000.0 ** (jnp.arange(0, hd, 2, dtype=jnp.float32) / hd))
    t = jnp.arange(seq_len, dtype=jnp.float32)
    freqs = jnp.einsum("i,j->ij", t, inv_freq)
    emb = jnp.concatenate([freqs, freqs], axis=-1)              # (S, hd)

    return {
        "wq": wq, "wk": wk, "wv": wv, "wo": wo,
        "w1": w1, "w2": w2, "w3": w3,
        "attn_norm_w": jnp.ones((1, dim), dtype=jnp.float32),   # torch.ones init
        "ffn_norm_w": jnp.ones((1, dim), dtype=jnp.float32),
        "cos": jnp.cos(emb), "sin": jnp.sin(emb),
    }


if __name__ == "__main__":
    B, S, D, H, FFN = 2, 8, 32, 4, 64

    key = jax.random.PRNGKey(0)
    kx, kp = jax.random.split(key)
    x = jax.random.normal(kx, (B, S, D), dtype=jnp.float32)
    params = make_params(kp, dim=D, n_heads=H, ffn_dim=FFN, seq_len=S)

    out = transformer_block(x, params, n_heads=H)
    out = jax.block_until_ready(out)
    assert out.shape == (B, S, D) and out.dtype == jnp.float32

    ref = transformer_block_ref(x, params, n_heads=H)
    err = float(jnp.max(jnp.abs(out - ref)))
    assert jnp.allclose(out, ref, atol=2e-2, rtol=2e-2), err   # loose: bf16 matmuls in-kernel

    print("KERNEL_OK")
</pallas_src>

<mosaic_0001>
module attributes {stable_mosaic.version = 11 : i64} {
  func.func @transformer_block_kernel(%arg0: i32, %arg1: memref<1x8x32xf32, #tpu.memory_space<vmem>>, %arg2: memref<32x96xbf16, #tpu.memory_space<vmem>>, %arg3: memref<32x32xbf16, #tpu.memory_space<vmem>>, %arg4: memref<2x32x64xbf16, #tpu.memory_space<vmem>>, %arg5: memref<64x32xbf16, #tpu.memory_space<vmem>>, %arg6: memref<1x32xf32, #tpu.memory_space<vmem>>, %arg7: memref<1x32xf32, #tpu.memory_space<vmem>>, %arg8: memref<8x8xf32, #tpu.memory_space<vmem>>, %arg9: memref<8x8xf32, #tpu.memory_space<vmem>>, %arg10: memref<1x8x32xf32, #tpu.memory_space<vmem>>) attributes {dimension_semantics = [#tpu.dimension_semantics<parallel>], iteration_bounds = array<i64: 2>, scalar_prefetch = 0 : i64, scratch_operands = 0 : i64, tpu.core_type = #tpu.core_type<tc>, window_params = [{transform_indices = @transform_0, window_bounds = array<i64: 1, 8, 32>}, {pipeline_mode = #tpu.pipeline_mode<synchronous>, transform_indices = @transform_1, window_bounds = array<i64: 32, 96>}, {pipeline_mode = #tpu.pipeline_mode<synchronous>, transform_indices = @transform_2, window_bounds = array<i64: 32, 32>}, {pipeline_mode = #tpu.pipeline_mode<synchronous>, transform_indices = @transform_3, window_bounds = array<i64: 2, 32, 64>}, {pipeline_mode = #tpu.pipeline_mode<synchronous>, transform_indices = @transform_4, window_bounds = array<i64: 64, 32>}, {pipeline_mode = #tpu.pipeline_mode<synchronous>, transform_indices = @transform_5, window_bounds = array<i64: 1, 32>}, {pipeline_mode = #tpu.pipeline_mode<synchronous>, transform_indices = @transform_6, window_bounds = array<i64: 1, 32>}, {pipeline_mode = #tpu.pipeline_mode<synchronous>, transform_indices = @transform_7, window_bounds = array<i64: 8, 8>}, {pipeline_mode = #tpu.pipeline_mode<synchronous>, transform_indices = @transform_8, window_bounds = array<i64: 8, 8>}, {transform_indices = @transform_9, window_bounds = array<i64: 1, 8, 32>}]} {
    %c0 = arith.constant 0 : index
    %c0_0 = arith.constant 0 : index
    %c0_1 = arith.constant 0 : index
    %0 = vector.load %arg1[%c0, %c0_0, %c0_1] : memref<1x8x32xf32, #tpu.memory_space<vmem>>, vector<1x8x32xf32>
    %1 = vector.shape_cast %0 : vector<1x8x32xf32> to vector<8x32xf32>
    %2 = arith.mulf %1, %1 : vector<8x32xf32>
    %cst = arith.constant dense<0.000000e+00> : vector<8xf32>
    %3 = vector.multi_reduction <add>, %2, %cst [1] : vector<8x32xf32> to vector<8xf32>
    %4 = vector.shape_cast %3 : vector<8xf32> to vector<8x1xf32>
    %cst_2 = arith.constant 3.200000e+01 : f32
    %5 = vector.broadcast %cst_2 : f32 to vector<8x1xf32>
    %6 = arith.divf %4, %5 : vector<8x1xf32>
    %cst_3 = arith.constant 9.99999997E-7 : f32
    %7 = vector.broadcast %cst_3 : f32 to vector<8x1xf32>
    %8 = arith.addf %6, %7 : vector<8x1xf32>
    %9 = math.rsqrt %8 : vector<8x1xf32>
    %10 = vector.broadcast %9 : vector<8x1xf32> to vector<8x32xf32>
    %11 = arith.mulf %1, %10 : vector<8x32xf32>
    %c0_4 = arith.constant 0 : index
    %c0_5 = arith.constant 0 : index
    %12 = vector.load %arg6[%c0_4, %c0_5] : memref<1x32xf32, #tpu.memory_space<vmem>>, vector<1x32xf32>
    %13 = vector.broadcast %12 : vector<1x32xf32> to vector<8x32xf32>
    %14 = arith.mulf %11, %13 : vector<8x32xf32>
    %15 = arith.truncf %14 : vector<8x32xf32> to vector<8x32xbf16>
    %c0_6 = arith.constant 0 : index
    %c0_7 = arith.constant 0 : index
    %16 = vector.load %arg2[%c0_6, %c0_7] : memref<32x96xbf16, #tpu.memory_space<vmem>>, vector<32x96xbf16>
    %cst_8 = arith.constant dense<0.000000e+00> : vector<8x96xf32>
    %17 = tpu.matmul %15, %16, %cst_8 {dimension_numbers = #tpu.dot_dimension_numbers<[1], [0], [0], [1], [0, 0, 1, 1], [], []>} : vector<8x32xbf16>, vector<32x96xbf16>, vector<8x96xf32> -> vector<8x96xf32>
    %18 = vector.extract_strided_slice %17 {offsets = [0, 0], sizes = [8, 32], strides = [1, 1]} : vector<8x96xf32> to vector<8x32xf32>
    %cst_9 = arith.constant 0.353553385 : f32
    %19 = vector.broadcast %cst_9 : f32 to vector<8x32xf32>
    %20 = arith.mulf %18, %19 : vector<8x32xf32>
    %21 = vector.extract_strided_slice %17 {offsets = [0, 32], sizes = [8, 32], strides = [1, 1]} : vector<8x96xf32> to vector<8x32xf32>
    %22 = vector.extract_strided_slice %17 {offsets = [0, 64], sizes = [8, 32], strides = [1, 1]} : vector<8x96xf32> to vector<8x32xf32>
    %c0_10 = arith.constant 0 : index
    %c0_11 = arith.constant 0 : index
    %23 = vector.load %arg8[%c0_10, %c0_11] : memref<8x8xf32, #tpu.memory_space<vmem>>, vector<8x8xf32>
    %c0_12 = arith.constant 0 : index
    %c0_13 = arith.constant 0 : index
    %24 = vector.load %arg9[%c0_12, %c0_13] : memref<8x8xf32, #tpu.memory_space<vmem>>, vector<8x8xf32>
    %25 = vector.extract_strided_slice %20 {offsets = [0, 0], sizes = [8, 8], strides = [1, 1]} : vector<8x32xf32> to vector<8x8xf32>
    %26 = vector.extract_strided_slice %25 {offsets = [0, 4], sizes = [8, 4], strides = [1, 1]} : vector<8x8xf32> to vector<8x4xf32>
    %cst_14 = arith.constant 0.000000e+00 : f32
    %27 = vector.broadcast %cst_14 : f32 to vector<8x4xf32>
    %28 = arith.subf %27, %26 : vector<8x4xf32>
    %29 = vector.extract_strided_slice %25 {offsets = [0, 0], sizes = [8, 4], strides = [1, 1]} : vector<8x8xf32> to vector<8x4xf32>
    %30 = tpu.concatenate %28, %29 in 1 : vector<8x4xf32>, vector<8x4xf32> -> vector<8x8xf32>
    %31 = arith.mulf %25, %23 : vector<8x8xf32>
    %32 = arith.mulf %30, %24 : vector<8x8xf32>
    %33 = arith.addf %31, %32 : vector<8x8xf32>
    %34 = arith.truncf %33 : vector<8x8xf32> to vector<8x8xbf16>
    %35 = vector.extract_strided_slice %21 {offsets = [0, 0], sizes = [8, 8], strides = [1, 1]} : vector<8x32xf32> to vector<8x8xf32>
    %36 = vector.extract_strided_slice %35 {offsets = [0, 4], sizes = [8, 4], strides = [1, 1]} : vector<8x8xf32> to vector<8x4xf32>
    %cst_15 = arith.constant 0.000000e+00 : f32
    %37 = vector.broadcast %cst_15 : f32 to vector<8x4xf32>
    %38 = arith.subf %37, %36 : vector<8x4xf32>
    %39 = vector.extract_strided_slice %35 {offsets = [0, 0], sizes = [8, 4], strides = [1, 1]} : vector<8x8xf32> to vector<8x4xf32>
    %40 = tpu.concatenate %38, %39 in 1 : vector<8x4xf32>, vector<8x4xf32> -> vector<8x8xf32>
    %41 = arith.mulf %35, %23 : vector<8x8xf32>
    %42 = arith.mulf %40, %24 : vector<8x8xf32>
    %43 = arith.addf %41, %42 : vector<8x8xf32>
    %44 = arith.truncf %43 : vector<8x8xf32> to vector<8x8xbf16>
    %45 = vector.extract_strided_slice %22 {offsets = [0, 0], sizes = [8, 8], strides = [1, 1]} : vector<8x32xf32> to vector<8x8xf32>
    %46 = arith.truncf %45 : vector<8x8xf32> to vector<8x8xbf16>
    %cst_16 = arith.constant dense<0.000000e+00> : vector<8x8xf32>
    %47 = tpu.matmul %34, %44, %cst_16 {dimension_numbers = #tpu.dot_dimension_numbers<[1], [1], [0], [0], [0, 0, 1, 0], [], []>} : vector<8x8xbf16>, vector<8x8xbf16>, vector<8x8xf32> -> vector<8x8xf32>
    %cst_17 = arith.constant dense<0xFF800000> : vector<8xf32>
    %48 = vector.multi_reduction <maximumf>, %47, %cst_17 [1] : vector<8x8xf32> to vector<8xf32>
    %49 = vector.shape_cast %48 : vector<8xf32> to vector<8x1xf32>
    %50 = vector.broadcast %49 : vector<8x1xf32> to vector<8x8xf32>
    %51 = arith.subf %47, %50 : vector<8x8xf32>
    %52 = math.exp %51 : vector<8x8xf32>
    %cst_18 = arith.constant dense<0.000000e+00> : vector<8xf32>
    %53 = vector.multi_reduction <add>, %52, %cst_18 [1] : vector<8x8xf32> to vector<8xf32>
    %54 = vector.shape_cast %53 : vector<8xf32> to vector<8x1xf32>
    %55 = tpu.reciprocal %54 {approx = true} : vector<8x1xf32> -> vector<8x1xf32>
    %56 = vector.broadcast %55 : vector<8x1xf32> to vector<8x8xf32>
    %57 = arith.mulf %52, %56 : vector<8x8xf32>
    %58 = arith.truncf %57 : vector<8x8xf32> to vector<8x8xbf16>
    %cst_19 = arith.constant dense<0.000000e+00> : vector<8x8xf32>
    %59 = tpu.matmul %58, %46, %cst_19 {dimension_numbers = #tpu.dot_dimension_numbers<[1], [0], [0], [1], [0, 0, 1, 1], [], []>} : vector<8x8xbf16>, vector<8x8xbf16>, vector<8x8xf32> -> vector<8x8xf32>
    %60 = vector.extract_strided_slice %20 {offsets = [0, 8], sizes = [8, 8], strides = [1, 1]} : vector<8x32xf32> to vector<8x8xf32>
    %61 = vector.extract_strided_slice %60 {offsets = [0, 4], sizes = [8, 4], strides = [1, 1]} : vector<8x8xf32> to vector<8x4xf32>
    %cst_20 = arith.constant 0.000000e+00 : f32
    %62 = vector.broadcast %cst_20 : f32 to vector<8x4xf32>
    %63 = arith.subf %62, %61 : vector<8x4xf32>
    %64 = vector.extract_strided_slice %60 {offsets = [0, 0], sizes = [8, 4], strides = [1, 1]} : vector<8x8xf32> to vector<8x4xf32>
    %65 = tpu.concatenate %63, %64 in 1 : vector<8x4xf32>, vector<8x4xf32> -> vector<8x8xf32>
    %66 = arith.mulf %60, %23 : vector<8x8xf32>
    %67 = arith.mulf %65, %24 : vector<8x8xf32>
    %68 = arith.addf %66, %67 : vector<8x8xf32>
    %69 = arith.truncf %68 : vector<8x8xf32> to vector<8x8xbf16>
    %70 = vector.extract_strided_slice %21 {offsets = [0, 8], sizes = [8, 8], strides = [1, 1]} : vector<8x32xf32> to vector<8x8xf32>
    %71 = vector.extract_strided_slice %70 {offsets = [0, 4], sizes = [8, 4], strides = [1, 1]} : vector<8x8xf32> to vector<8x4xf32>
    %cst_21 = arith.constant 0.000000e+00 : f32
    %72 = vector.broadcast %cst_21 : f32 to vector<8x4xf32>
    %73 = arith.subf %72, %71 : vector<8x4xf32>
    %74 = vector.extract_strided_slice %70 {offsets = [0, 0], sizes = [8, 4], strides = [1, 1]} : vector<8x8xf32> to vector<8x4xf32>
    %75 = tpu.concatenate %73, %74 in 1 : vector<8x4xf32>, vector<8x4xf32> -> vector<8x8xf32>
    %76 = arith.mulf %70, %23 : vector<8x8xf32>
    %77 = arith.mulf %75, %24 : vector<8x8xf32>
    %78 = arith.addf %76, %77 : vector<8x8xf32>
    %79 = arith.truncf %78 : vector<8x8xf32> to vector<8x8xbf16>
    %80 = vector.extract_strided_slice %22 {offsets = [0, 8], sizes = [8, 8], strides = [1, 1]} : vector<8x32xf32> to vector<8x8xf32>
    %81 = arith.truncf %80 : vector<8x8xf32> to vector<8x8xbf16>
    %cst_22 = arith.constant dense<0.000000e+00> : vector<8x8xf32>
    %82 = tpu.matmul %69, %79, %cst_22 {dimension_numbers = #tpu.dot_dimension_numbers<[1], [1], [0], [0], [0, 0, 1, 0], [], []>} : vector<8x8xbf16>, vector<8x8xbf16>, vector<8x8xf32> -> vector<8x8xf32>
    %cst_23 = arith.constant dense<0xFF800000> : vector<8xf32>
    %83 = vector.multi_reduction <maximumf>, %82, %cst_23 [1] : vector<8x8xf32> to vector<8xf32>
    %84 = vector.shape_cast %83 : vector<8xf32> to vector<8x1xf32>
    %85 = vector.broadcast %84 : vector<8x1xf32> to vector<8x8xf32>
    %86 = arith.subf %82, %85 : vector<8x8xf32>
    %87 = math.exp %86 : vector<8x8xf32>
    %cst_24 = arith.constant dense<0.000000e+00> : vector<8xf32>
    %88 = vector.multi_reduction <add>, %87, %cst_24 [1] : vector<8x8xf32> to vector<8xf32>
    %89 = vector.shape_cast %88 : vector<8xf32> to vector<8x1xf32>
    %90 = tpu.reciprocal %89 {approx = true} : vector<8x1xf32> -> vector<8x1xf32>
    %91 = vector.broadcast %90 : vector<8x1xf32> to vector<8x8xf32>
    %92 = arith.mulf %87, %91 : vector<8x8xf32>
    %93 = arith.truncf %92 : vector<8x8xf32> to vector<8x8xbf16>
    %cst_25 = arith.constant dense<0.000000e+00> : vector<8x8xf32>
    %94 = tpu.matmul %93, %81, %cst_25 {dimension_numbers = #tpu.dot_dimension_numbers<[1], [0], [0], [1], [0, 0, 1, 1], [], []>} : vector<8x8xbf16>, vector<8x8xbf16>, vector<8x8xf32> -> vector<8x8xf32>
    %95 = vector.extract_strided_slice %20 {offsets = [0, 16], sizes = [8, 8], strides = [1, 1]} : vector<8x32xf32> to vector<8x8xf32>
    %96 = vector.extract_strided_slice %95 {offsets = [0, 4], sizes = [8, 4], strides = [1, 1]} : vector<8x8xf32> to vector<8x4xf32>
    %cst_26 = arith.constant 0.000000e+00 : f32
    %97 = vector.broadcast %cst_26 : f32 to vector<8x4xf32>
    %98 = arith.subf %97, %96 : vector<8x4xf32>
    %99 = vector.extract_strided_slice %95 {offsets = [0, 0], sizes = [8, 4], strides = [1, 1]} : vector<8x8xf32> to vector<8x4xf32>
    %100 = tpu.concatenate %98, %99 in 1 : vector<8x4xf32>, vector<8x4xf32> -> vector<8x8xf32>
    %101 = arith.mulf %95, %23 : vector<8x8xf32>
    %102 = arith.mulf %100, %24 : vector<8x8xf32>
    %103 = arith.addf %101, %102 : vector<8x8xf32>
    %104 = arith.truncf %103 : vector<8x8xf32> to vector<8x8xbf16>
    %105 = vector.extract_strided_slice %21 {offsets = [0, 16], sizes = [8, 8], strides = [1, 1]} : vector<8x32xf32> to vector<8x8xf32>
    %106 = vector.extract_strided_slice %105 {offsets = [0, 4], sizes = [8, 4], strides = [1, 1]} : vector<8x8xf32> to vector<8x4xf32>
    %cst_27 = arith.constant 0.000000e+00 : f32
    %107 = vector.broadcast %cst_27 : f32 to vector<8x4xf32>
    %108 = arith.subf %107, %106 : vector<8x4xf32>
    %109 = vector.extract_strided_slice %105 {offsets = [0, 0], sizes = [8, 4], strides = [1, 1]} : vector<8x8xf32> to vector<8x4xf32>
    %110 = tpu.concatenate %108, %109 in 1 : vector<8x4xf32>, vector<8x4xf32> -> vector<8x8xf32>
    %111 = arith.mulf %105, %23 : vector<8x8xf32>
    %112 = arith.mulf %110, %24 : vector<8x8xf32>
    %113 = arith.addf %111, %112 : vector<8x8xf32>
    %114 = arith.truncf %113 : vector<8x8xf32> to vector<8x8xbf16>
    %115 = vector.extract_strided_slice %22 {offsets = [0, 16], sizes = [8, 8], strides = [1, 1]} : vector<8x32xf32> to vector<8x8xf32>
    %116 = arith.truncf %115 : vector<8x8xf32> to vector<8x8xbf16>
    %cst_28 = arith.constant dense<0.000000e+00> : vector<8x8xf32>
    %117 = tpu.matmul %104, %114, %cst_28 {dimension_numbers = #tpu.dot_dimension_numbers<[1], [1], [0], [0], [0, 0, 1, 0], [], []>} : vector<8x8xbf16>, vector<8x8xbf16>, vector<8x8xf32> -> vector<8x8xf32>
    %cst_29 = arith.constant dense<0xFF800000> : vector<8xf32>
    %118 = vector.multi_reduction <maximumf>, %117, %cst_29 [1] : vector<8x8xf32> to vector<8xf32>
    %119 = vector.shape_cast %118 : vector<8xf32> to vector<8x1xf32>
    %120 = vector.broadcast %119 : vector<8x1xf32> to vector<8x8xf32>
    %121 = arith.subf %117, %120 : vector<8x8xf32>
    %122 = math.exp %121 : vector<8x8xf32>
    %cst_30 = arith.constant dense<0.000000e+00> : vector<8xf32>
    %123 = vector.multi_reduction <add>, %122, %cst_30 [1] : vector<8x8xf32> to vector<8xf32>
    %124 = vector.shape_cast %123 : vector<8xf32> to vector<8x1xf32>
    %125 = tpu.reciprocal %124 {approx = true} : vector<8x1xf32> -> vector<8x1xf32>
    %126 = vector.broadcast %125 : vector<8x1xf32> to vector<8x8xf32>
    %127 = arith.mulf %122, %126 : vector<8x8xf32>
    %128 = arith.truncf %127 : vector<8x8xf32> to vector<8x8xbf16>
    %cst_31 = arith.constant dense<0.000000e+00> : vector<8x8xf32>
    %129 = tpu.matmul %128, %116, %cst_31 {dimension_numbers = #tpu.dot_dimension_numbers<[1], [0], [0], [1], [0, 0, 1, 1], [], []>} : vector<8x8xbf16>, vector<8x8xbf16>, vector<8x8xf32> -> vector<8x8xf32>
    %130 = vector.extract_strided_slice %20 {offsets = [0, 24], sizes = [8, 8], strides = [1, 1]} : vector<8x32xf32> to vector<8x8xf32>
    %131 = vector.extract_strided_slice %130 {offsets = [0, 4], sizes = [8, 4], strides = [1, 1]} : vector<8x8xf32> to vector<8x4xf32>
    %cst_32 = arith.constant 0.000000e+00 : f32
    %132 = vector.broadcast %cst_32 : f32 to vector<8x4xf32>
    %133 = arith.subf %132, %131 : vector<8x4xf32>
    %134 = vector.extract_strided_slice %130 {offsets = [0, 0], sizes = [8, 4], strides = [1, 1]} : vector<8x8xf32> to vector<8x4xf32>
    %135 = tpu.concatenate %133, %134 in 1 : vector<8x4xf32>, vector<8x4xf32> -> vector<8x8xf32>
    %136 = arith.mulf %130, %23 : vector<8x8xf32>
    %137 = arith.mulf %135, %24 : vector<8x8xf32>
    %138 = arith.addf %136, %137 : vector<8x8xf32>
    %139 = arith.truncf %138 : vector<8x8xf32> to vector<8x8xbf16>
    %140 = vector.extract_strided_slice %21 {offsets = [0, 24], sizes = [8, 8], strides = [1, 1]} : vector<8x32xf32> to vector<8x8xf32>
    %141 = vector.extract_strided_slice %140 {offsets = [0, 4], sizes = [8, 4], strides = [1, 1]} : vector<8x8xf32> to vector<8x4xf32>
    %cst_33 = arith.constant 0.000000e+00 : f32
    %142 = vector.broadcast %cst_33 : f32 to vector<8x4xf32>
    %143 = arith.subf %142, %141 : vector<8x4xf32>
    %144 = vector.extract_strided_slice %140 {offsets = [0, 0], sizes = [8, 4], strides = [1, 1]} : vector<8x8xf32> to vector<8x4xf32>
    %145 = tpu.concatenate %143, %144 in 1 : vector<8x4xf32>, vector<8x4xf32> -> vector<8x8xf32>
    %146 = arith.mulf %140, %23 : vector<8x8xf32>
    %147 = arith.mulf %145, %24 : vector<8x8xf32>
    %148 = arith.addf %146, %147 : vector<8x8xf32>
    %149 = arith.truncf %148 : vector<8x8xf32> to vector<8x8xbf16>
    %150 = vector.extract_strided_slice %22 {offsets = [0, 24], sizes = [8, 8], strides = [1, 1]} : vector<8x32xf32> to vector<8x8xf32>
    %151 = arith.truncf %150 : vector<8x8xf32> to vector<8x8xbf16>
    %cst_34 = arith.constant dense<0.000000e+00> : vector<8x8xf32>
    %152 = tpu.matmul %139, %149, %cst_34 {dimension_numbers = #tpu.dot_dimension_numbers<[1], [1], [0], [0], [0, 0, 1, 0], [], []>} : vector<8x8xbf16>, vector<8x8xbf16>, vector<8x8xf32> -> vector<8x8xf32>
    %cst_35 = arith.constant dense<0xFF800000> : vector<8xf32>
    %153 = vector.multi_reduction <maximumf>, %152, %cst_35 [1] : vector<8x8xf32> to vector<8xf32>
    %154 = vector.shape_cast %153 : vector<8xf32> to vector<8x1xf32>
    %155 = vector.broadcast %154 : vector<8x1xf32> to vector<8x8xf32>
    %156 = arith.subf %152, %155 : vector<8x8xf32>
    %157 = math.exp %156 : vector<8x8xf32>
    %cst_36 = arith.constant dense<0.000000e+00> : vector<8xf32>
    %158 = vector.multi_reduction <add>, %157, %cst_36 [1] : vector<8x8xf32> to vector<8xf32>
    %159 = vector.shape_cast %158 : vector<8xf32> to vector<8x1xf32>
    %160 = tpu.reciprocal %159 {approx = true} : vector<8x1xf32> -> vector<8x1xf32>
    %161 = vector.broadcast %160 : vector<8x1xf32> to vector<8x8xf32>
    %162 = arith.mulf %157, %161 : vector<8x8xf32>
    %163 = arith.truncf %162 : vector<8x8xf32> to vector<8x8xbf16>
    %cst_37 = arith.constant dense<0.000000e+00> : vector<8x8xf32>
    %164 = tpu.matmul %163, %151, %cst_37 {dimension_numbers = #tpu.dot_dimension_numbers<[1], [0], [0], [1], [0, 0, 1, 1], [], []>} : vector<8x8xbf16>, vector<8x8xbf16>, vector<8x8xf32> -> vector<8x8xf32>
    %165 = tpu.concatenate %59, %94, %129, %164 in 1 : vector<8x8xf32>, vector<8x8xf32>, vector<8x8xf32>, vector<8x8xf32> -> vector<8x32xf32>
    %166 = arith.truncf %165 : vector<8x32xf32> to vector<8x32xbf16>
    %c0_38 = arith.constant 0 : index
    %c0_39 = arith.constant 0 : index
    %167 = vector.load %arg3[%c0_38, %c0_39] : memref<32x32xbf16, #tpu.memory_space<vmem>>, vector<32x32xbf16>
    %cst_40 = arith.constant dense<0.000000e+00> : vector<8x32xf32>
    %168 = tpu.matmul %166, %167, %cst_40 {dimension_numbers = #tpu.dot_dimension_numbers<[1], [0], [0], [1], [0, 0, 1, 1], [], []>} : vector<8x32xbf16>, vector<32x32xbf16>, vector<8x32xf32> -> vector<8x32xf32>
    %169 = arith.addf %1, %168 : vector<8x32xf32>
    %170 = arith.mulf %169, %169 : vector<8x32xf32>
    %cst_41 = arith.constant dense<0.000000e+00> : vector<8xf32>
    %171 = vector.multi_reduction <add>, %170, %cst_41 [1] : vector<8x32xf32> to vector<8xf32>
    %172 = vector.shape_cast %171 : vector<8xf32> to vector<8x1xf32>
    %cst_42 = arith.constant 3.200000e+01 : f32
    %173 = vector.broadcast %cst_42 : f32 to vector<8x1xf32>
    %174 = arith.divf %172, %173 : vector<8x1xf32>
    %cst_43 = arith.constant 9.99999997E-7 : f32
    %175 = vector.broadcast %cst_43 : f32 to vector<8x1xf32>
    %176 = arith.addf %174, %175 : vector<8x1xf32>
    %177 = math.rsqrt %176 : vector<8x1xf32>
    %178 = vector.broadcast %177 : vector<8x1xf32> to vector<8x32xf32>
    %179 = arith.mulf %169, %178 : vector<8x32xf32>
    %c0_44 = arith.constant 0 : index
    %c0_45 = arith.constant 0 : index
    %180 = vector.load %arg7[%c0_44, %c0_45] : memref<1x32xf32, #tpu.memory_space<vmem>>, vector<1x32xf32>
    %181 = vector.broadcast %180 : vector<1x32xf32> to vector<8x32xf32>
    %182 = arith.mulf %179, %181 : vector<8x32xf32>
    %183 = arith.truncf %182 : vector<8x32xf32> to vector<8x32xbf16>
    %cst_46 = arith.constant 0.000000e+00 : f32
    %184 = vector.broadcast %cst_46 : f32 to vector<8x32xf32>
    %c0_47 = arith.constant 0 : index
    %c0_48 = arith.constant 0 : index
    %c0_49 = arith.constant 0 : index
    %185 = vector.load %arg4[%c0_47, %c0_48, %c0_49] : memref<2x32x64xbf16, #tpu.memory_space<vmem>>, vector<1x32x64xbf16>
    %186 = vector.shape_cast %185 : vector<1x32x64xbf16> to vector<32x64xbf16>
    %cst_50 = arith.constant dense<0.000000e+00> : vector<8x64xf32>
    %187 = tpu.matmul %183, %186, %cst_50 {dimension_numbers = #tpu.dot_dimension_numbers<[1], [0], [0], [1], [0, 0, 1, 1], [], []>} : vector<8x32xbf16>, vector<32x64xbf16>, vector<8x64xf32> -> vector<8x64xf32>
    %c1 = arith.constant 1 : index
    %c0_51 = arith.constant 0 : index
    %c0_52 = arith.constant 0 : index
    %188 = vector.load %arg4[%c1, %c0_51, %c0_52] : memref<2x32x64xbf16, #tpu.memory_space<vmem>>, vector<1x32x64xbf16>
    %189 = vector.shape_cast %188 : vector<1x32x64xbf16> to vector<32x64xbf16>
    %cst_53 = arith.constant dense<0.000000e+00> : vector<8x64xf32>
    %190 = tpu.matmul %183, %189, %cst_53 {dimension_numbers = #tpu.dot_dimension_numbers<[1], [0], [0], [1], [0, 0, 1, 1], [], []>} : vector<8x32xbf16>, vector<32x64xbf16>, vector<8x64xf32> -> vector<8x64xf32>
    %191 = arith.negf %187 : vector<8x64xf32>
    %192 = math.exp %191 : vector<8x64xf32>
    %cst_54 = arith.constant 1.000000e+00 : f32
    %193 = vector.broadcast %cst_54 : f32 to vector<8x64xf32>
    %194 = arith.addf %193, %192 : vector<8x64xf32>
    %195 = arith.divf %193, %194 : vector<8x64xf32>
    %196 = arith.mulf %187, %195 : vector<8x64xf32>
    %197 = arith.mulf %196, %190 : vector<8x64xf32>
    %198 = arith.truncf %197 : vector<8x64xf32> to vector<8x64xbf16>
    %c0_55 = arith.constant 0 : index
    %c0_56 = arith.constant 0 : index
    %199 = vector.load %arg5[%c0_55, %c0_56] : memref<64x32xbf16, #tpu.memory_space<vmem>>, vector<64x32xbf16>
    %cst_57 = arith.constant dense<0.000000e+00> : vector<8x32xf32>
    %200 = tpu.matmul %198, %199, %cst_57 {dimension_numbers = #tpu.dot_dimension_numbers<[1], [0], [0], [1], [0, 0, 1, 1], [], []>} : vector<8x64xbf16>, vector<64x32xbf16>, vector<8x32xf32> -> vector<8x32xf32>
    %201 = arith.addf %184, %200 : vector<8x32xf32>
    %202 = arith.addf %169, %201 : vector<8x32xf32>
    %c0_58 = arith.constant 0 : index
    %c0_59 = arith.constant 0 : index
    %c0_60 = arith.constant 0 : index
    %203 = vector.load %arg10[%c0_58, %c0_59, %c0_60] : memref<1x8x32xf32, #tpu.memory_space<vmem>>, vector<1x8x32xf32>
    %204 = vector.shape_cast %203 : vector<1x8x32xf32> to vector<8x32xf32>
    %205 = vector.shape_cast %202 : vector<8x32xf32> to vector<1x8x32xf32>
    tpu.vector_store %arg10[%c0_58, %c0_59, %c0_60], %205 {strides = array<i32>} : memref<1x8x32xf32, #tpu.memory_space<vmem>>, vector<1x8x32xf32>,
    return
  }
  func.func @transform_0(%arg0: i32) -> (i32, i32, i32) {
    %c0_i32 = arith.constant 0 : i32
    %c0_i32_0 = arith.constant 0 : i32
    %c0_i32_1 = arith.constant 0 : i32
    return %arg0, %c0_i32, %c0_i32_0 : i32, i32, i32
  }
  func.func @transform_1(%arg0: i32) -> (i32, i32) {
    %c0_i32 = arith.constant 0 : i32
    %c0_i32_0 = arith.constant 0 : i32
    %c0_i32_1 = arith.constant 0 : i32
    return %c0_i32, %c0_i32_0 : i32, i32
  }
  func.func @transform_2(%arg0: i32) -> (i32, i32) {
    %c0_i32 = arith.constant 0 : i32
    %c0_i32_0 = arith.constant 0 : i32
    %c0_i32_1 = arith.constant 0 : i32
    return %c0_i32, %c0_i32_0 : i32, i32
  }
  func.func @transform_3(%arg0: i32) -> (i32, i32, i32) {
    %c0_i32 = arith.constant 0 : i32
    %c0_i32_0 = arith.constant 0 : i32
    %c0_i32_1 = arith.constant 0 : i32
    %c0_i32_2 = arith.constant 0 : i32
    return %c0_i32, %c0_i32_0, %c0_i32_1 : i32, i32, i32
  }
  func.func @transform_4(%arg0: i32) -> (i32, i32) {
    %c0_i32 = arith.constant 0 : i32
    %c0_i32_0 = arith.constant 0 : i32
    %c0_i32_1 = arith.constant 0 : i32
    return %c0_i32, %c0_i32_0 : i32, i32
  }
  func.func @transform_5(%arg0: i32) -> (i32, i32) {
    %c0_i32 = arith.constant 0 : i32
    %c0_i32_0 = arith.constant 0 : i32
    %c0_i32_1 = arith.constant 0 : i32
    return %c0_i32, %c0_i32_0 : i32, i32
  }
  func.func @transform_6(%arg0: i32) -> (i32, i32) {
    %c0_i32 = arith.constant 0 : i32
    %c0_i32_0 = arith.constant 0 : i32
    %c0_i32_1 = arith.constant 0 : i32
    return %c0_i32, %c0_i32_0 : i32, i32
  }
  func.func @transform_7(%arg0: i32) -> (i32, i32) {
    %c0_i32 = arith.constant 0 : i32
    %c0_i32_0 = arith.constant 0 : i32
    %c0_i32_1 = arith.constant 0 : i32
    return %c0_i32, %c0_i32_0 : i32, i32
  }
  func.func @transform_8(%arg0: i32) -> (i32, i32) {
    %c0_i32 = arith.constant 0 : i32
    %c0_i32_0 = arith.constant 0 : i32
    %c0_i32_1 = arith.constant 0 : i32
    return %c0_i32, %c0_i32_0 : i32, i32
  }
  func.func @transform_9(%arg0: i32) -> (i32, i32, i32) {
    %c0_i32 = arith.constant 0 : i32
    %c0_i32_0 = arith.constant 0 : i32
    %c0_i32_1 = arith.constant 0 : i32
    return %arg0, %c0_i32, %c0_i32_0 : i32, i32, i32
  }
}

module attributes {stable_mosaic.version = 11 : i64} {
  func.func @transformer_block_kernel(%arg0: i32, %arg1: memref<1x8x32xf32, #tpu.memory_space<vmem>>, %arg2: memref<32x96xbf16, #tpu.memory_space<vmem>>, %arg3: memref<32x32xbf16, #tpu.memory_space<vmem>>, %arg4: memref<2x32x64xbf16, #tpu.memory_space<vmem>>, %arg5: memref<64x32xbf16, #tpu.memory_space<vmem>>, %arg6: memref<1x32xf32, #tpu.memory_space<vmem>>, %arg7: memref<1x32xf32, #tpu.memory_space<vmem>>, %arg8: memref<8x8xf32, #tpu.memory_space<vmem>>, %arg9: memref<8x8xf32, #tpu.memory_space<vmem>>, %arg10: memref<1x8x32xf32, #tpu.memory_space<vmem>>) attributes {dimension_semantics = [#tpu.dimension_semantics<parallel>], iteration_bounds = array<i64: 2>, scalar_prefetch = 0 : i64, scratch_operands = 0 : i64, tpu.core_type = #tpu.core_type<tc>, window_params = [{transform_indices = @transform_0, window_bounds = array<i64: 1, 8, 32>}, {pipeline_mode = #tpu.pipeline_mode<synchronous>, transform_indices = @transform_1, window_bounds = array<i64: 32, 96>}, {pipeline_mode = #tpu.pipeline_mode<synchronous>, transform_indices = @transform_2, window_bounds = array<i64: 32, 32>}, {pipeline_mode = #tpu.pipeline_mode<synchronous>, transform_indices = @transform_3, window_bounds = array<i64: 2, 32, 64>}, {pipeline_mode = #tpu.pipeline_mode<synchronous>, transform_indices = @transform_4, window_bounds = array<i64: 64, 32>}, {pipeline_mode = #tpu.pipeline_mode<synchronous>, transform_indices = @transform_5, window_bounds = array<i64: 1, 32>}, {pipeline_mode = #tpu.pipeline_mode<synchronous>, transform_indices = @transform_6, window_bounds = array<i64: 1, 32>}, {pipeline_mode = #tpu.pipeline_mode<synchronous>, transform_indices = @transform_7, window_bounds = array<i64: 8, 8>}, {pipeline_mode = #tpu.pipeline_mode<synchronous>, transform_indices = @transform_8, window_bounds = array<i64: 8, 8>}, {transform_indices = @transform_9, window_bounds = array<i64: 1, 8, 32>}]} {
    %c0 = arith.constant 0 : index
    %c0_0 = arith.constant 0 : index
    %c0_1 = arith.constant 0 : index
    %0 = vector.load %arg1[%c0, %c0_0, %c0_1] : memref<1x8x32xf32, #tpu.memory_space<vmem>>, vector<1x8x32xf32>
    %1 = vector.shape_cast %0 : vector<1x8x32xf32> to vector<8x32xf32>
    %2 = arith.mulf %1, %1 : vector<8x32xf32>
    %cst = arith.constant dense<0.000000e+00> : vector<8xf32>
    %3 = vector.multi_reduction <add>, %2, %cst [1] : vector<8x32xf32> to vector<8xf32>
    %4 = vector.shape_cast %3 : vector<8xf32> to vector<8x1xf32>
    %cst_2 = arith.constant 3.200000e+01 : f32
    %5 = vector.broadcast %cst_2 : f32 to vector<8x1xf32>
    %6 = arith.divf %4, %5 : vector<8x1xf32>
    %cst_3 = arith.constant 9.99999997E-7 : f32
    %7 = vector.broadcast %cst_3 : f32 to vector<8x1xf32>
    %8 = arith.addf %6, %7 : vector<8x1xf32>
    %9 = math.rsqrt %8 : vector<8x1xf32>
    %10 = vector.broadcast %9 : vector<8x1xf32> to vector<8x32xf32>
    %11 = arith.mulf %1, %10 : vector<8x32xf32>
    %c0_4 = arith.constant 0 : index
    %c0_5 = arith.constant 0 : index
    %12 = vector.load %arg6[%c0_4, %c0_5] : memref<1x32xf32, #tpu.memory_space<vmem>>, vector<1x32xf32>
    %13 = vector.broadcast %12 : vector<1x32xf32> to vector<8x32xf32>
    %14 = arith.mulf %11, %13 : vector<8x32xf32>
    %15 = arith.truncf %14 : vector<8x32xf32> to vector<8x32xbf16>
    %c0_6 = arith.constant 0 : index
    %c0_7 = arith.constant 0 : index
    %16 = vector.load %arg2[%c0_6, %c0_7] : memref<32x96xbf16, #tpu.memory_space<vmem>>, vector<32x96xbf16>
    %cst_8 = arith.constant dense<0.000000e+00> : vector<8x96xf32>
    %17 = tpu.matmul %15, %16, %cst_8 {dimension_numbers = #tpu.dot_dimension_numbers<[1], [0], [0], [1], [0, 0, 1, 1], [], []>} : vector<8x32xbf16>, vector<32x96xbf16>, vector<8x96xf32> -> vector<8x96xf32>
    %18 = vector.extract_strided_slice %17 {offsets = [0, 0], sizes = [8, 32], strides = [1, 1]} : vector<8x96xf32> to vector<8x32xf32>
    %cst_9 = arith.constant 0.353553385 : f32
    %19 = vector.broadcast %cst_9 : f32 to vector<8x32xf32>
    %20 = arith.mulf %18, %19 : vector<8x32xf32>
    %21 = vector.extract_strided_slice %17 {offsets = [0, 32], sizes = [8, 32], strides = [1, 1]} : vector<8x96xf32> to vector<8x32xf32>
    %22 = vector.extract_strided_slice %17 {offsets = [0, 64], sizes = [8, 32], strides = [1, 1]} : vector<8x96xf32> to vector<8x32xf32>
    %c0_10 = arith.constant 0 : index
    %c0_11 = arith.constant 0 : index
    %23 = vector.load %arg8[%c0_10, %c0_11] : memref<8x8xf32, #tpu.memory_space<vmem>>, vector<8x8xf32>
    %c0_12 = arith.constant 0 : index
    %c0_13 = arith.constant 0 : index
    %24 = vector.load %arg9[%c0_12, %c0_13] : memref<8x8xf32, #tpu.memory_space<vmem>>, vector<8x8xf32>
    %25 = vector.extract_strided_slice %20 {offsets = [0, 0], sizes = [8, 8], strides = [1, 1]} : vector<8x32xf32> to vector<8x8xf32>
    %26 = vector.extract_strided_slice %25 {offsets = [0, 4], sizes = [8, 4], strides = [1, 1]} : vector<8x8xf32> to vector<8x4xf32>
    %cst_14 = arith.constant 0.000000e+00 : f32
    %27 = vector.broadcast %cst_14 : f32 to vector<8x4xf32>
    %28 = arith.subf %27, %26 : vector<8x4xf32>
    %29 = vector.extract_strided_slice %25 {offsets = [0, 0], sizes = [8, 4], strides = [1, 1]} : vector<8x8xf32> to vector<8x4xf32>
    %30 = tpu.concatenate %28, %29 in 1 : vector<8x4xf32>, vector<8x4xf32> -> vector<8x8xf32>
    %31 = arith.mulf %25, %23 : vector<8x8xf32>
    %32 = arith.mulf %30, %24 : vector<8x8xf32>
    %33 = arith.addf %31, %32 : vector<8x8xf32>
    %34 = arith.truncf %33 : vector<8x8xf32> to vector<8x8xbf16>
    %35 = vector.extract_strided_slice %21 {offsets = [0, 0], sizes = [8, 8], strides = [1, 1]} : vector<8x32xf32> to vector<8x8xf32>
    %36 = vector.extract_strided_slice %35 {offsets = [0, 4], sizes = [8, 4], strides = [1, 1]} : vector<8x8xf32> to vector<8x4xf32>
    %cst_15 = arith.constant 0.000000e+00 : f32
    %37 = vector.broadcast %cst_15 : f32 to vector<8x4xf32>
    %38 = arith.subf %37, %36 : vector<8x4xf32>
    %39 = vector.extract_strided_slice %35 {offsets = [0, 0], sizes = [8, 4], strides = [1, 1]} : vector<8x8xf32> to vector<8x4xf32>
    %40 = tpu.concatenate %38, %39 in 1 : vector<8x4xf32>, vector<8x4xf32> -> vector<8x8xf32>
    %41 = arith.mulf %35, %23 : vector<8x8xf32>
    %42 = arith.mulf %40, %24 : vector<8x8xf32>
    %43 = arith.addf %41, %42 : vector<8x8xf32>
    %44 = arith.truncf %43 : vector<8x8xf32> to vector<8x8xbf16>
    %45 = vector.extract_strided_slice %22 {offsets = [0, 0], sizes = [8, 8], strides = [1, 1]} : vector<8x32xf32> to vector<8x8xf32>
    %46 = arith.truncf %45 : vector<8x8xf32> to vector<8x8xbf16>
    %cst_16 = arith.constant dense<0.000000e+00> : vector<8x8xf32>
    %47 = tpu.matmul %34, %44, %cst_16 {dimension_numbers = #tpu.dot_dimension_numbers<[1], [1], [0], [0], [0, 0, 1, 0], [], []>} : vector<8x8xbf16>, vector<8x8xbf16>, vector<8x8xf32> -> vector<8x8xf32>
    %cst_17 = arith.constant dense<0xFF800000> : vector<8xf32>
    %48 = vector.multi_reduction <maximumf>, %47, %cst_17 [1] : vector<8x8xf32> to vector<8xf32>
    %49 = vector.shape_cast %48 : vector<8xf32> to vector<8x1xf32>
    %50 = vector.broadcast %49 : vector<8x1xf32> to vector<8x8xf32>
    %51 = arith.subf %47, %50 : vector<8x8xf32>
    %52 = math.exp %51 : vector<8x8xf32>
    %cst_18 = arith.constant dense<0.000000e+00> : vector<8xf32>
    %53 = vector.multi_reduction <add>, %52, %cst_18 [1] : vector<8x8xf32> to vector<8xf32>
    %54 = vector.shape_cast %53 : vector<8xf32> to vector<8x1xf32>
    %55 = tpu.reciprocal %54 {approx = true} : vector<8x1xf32> -> vector<8x1xf32>
    %56 = vector.broadcast %55 : vector<8x1xf32> to vector<8x8xf32>
    %57 = arith.mulf %52, %56 : vector<8x8xf32>
    %58 = arith.truncf %57 : vector<8x8xf32> to vector<8x8xbf16>
    %cst_19 = arith.constant dense<0.000000e+00> : vector<8x8xf32>
    %59 = tpu.matmul %58, %46, %cst_19 {dimension_numbers = #tpu.dot_dimension_numbers<[1], [0], [0], [1], [0, 0, 1, 1], [], []>} : vector<8x8xbf16>, vector<8x8xbf16>, vector<8x8xf32> -> vector<8x8xf32>
    %60 = vector.extract_strided_slice %20 {offsets = [0, 8], sizes = [8, 8], strides = [1, 1]} : vector<8x32xf32> to vector<8x8xf32>
    %61 = vector.extract_strided_slice %60 {offsets = [0, 4], sizes = [8, 4], strides = [1, 1]} : vector<8x8xf32> to vector<8x4xf32>
    %cst_20 = arith.constant 0.000000e+00 : f32
    %62 = vector.broadcast %cst_20 : f32 to vector<8x4xf32>
    %63 = arith.subf %62, %61 : vector<8x4xf32>
    %64 = vector.extract_strided_slice %60 {offsets = [0, 0], sizes = [8, 4], strides = [1, 1]} : vector<8x8xf32> to vector<8x4xf32>
    %65 = tpu.concatenate %63, %64 in 1 : vector<8x4xf32>, vector<8x4xf32> -> vector<8x8xf32>
    %66 = arith.mulf %60, %23 : vector<8x8xf32>
    %67 = arith.mulf %65, %24 : vector<8x8xf32>
    %68 = arith.addf %66, %67 : vector<8x8xf32>
    %69 = arith.truncf %68 : vector<8x8xf32> to vector<8x8xbf16>
    %70 = vector.extract_strided_slice %21 {offsets = [0, 8], sizes = [8, 8], strides = [1, 1]} : vector<8x32xf32> to vector<8x8xf32>
    %71 = vector.extract_strided_slice %70 {offsets = [0, 4], sizes = [8, 4], strides = [1, 1]} : vector<8x8xf32> to vector<8x4xf32>
    %cst_21 = arith.constant 0.000000e+00 : f32
    %72 = vector.broadcast %cst_21 : f32 to vector<8x4xf32>
    %73 = arith.subf %72, %71 : vector<8x4xf32>
    %74 = vector.extract_strided_slice %70 {offsets = [0, 0], sizes = [8, 4], strides = [1, 1]} : vector<8x8xf32> to vector<8x4xf32>
    %75 = tpu.concatenate %73, %74 in 1 : vector<8x4xf32>, vector<8x4xf32> -> vector<8x8xf32>
    %76 = arith.mulf %70, %23 : vector<8x8xf32>
    %77 = arith.mulf %75, %24 : vector<8x8xf32>
    %78 = arith.addf %76, %77 : vector<8x8xf32>
    %79 = arith.truncf %78 : vector<8x8xf32> to vector<8x8xbf16>
    %80 = vector.extract_strided_slice %22 {offsets = [0, 8], sizes = [8, 8], strides = [1, 1]} : vector<8x32xf32> to vector<8x8xf32>
    %81 = arith.truncf %80 : vector<8x8xf32> to vector<8x8xbf16>
    %cst_22 = arith.constant dense<0.000000e+00> : vector<8x8xf32>
    %82 = tpu.matmul %69, %79, %cst_22 {dimension_numbers = #tpu.dot_dimension_numbers<[1], [1], [0], [0], [0, 0, 1, 0], [], []>} : vector<8x8xbf16>, vector<8x8xbf16>, vector<8x8xf32> -> vector<8x8xf32>
    %cst_23 = arith.constant dense<0xFF800000> : vector<8xf32>
    %83 = vector.multi_reduction <maximumf>, %82, %cst_23 [1] : vector<8x8xf32> to vector<8xf32>
    %84 = vector.shape_cast %83 : vector<8xf32> to vector<8x1xf32>
    %85 = vector.broadcast %84 : vector<8x1xf32> to vector<8x8xf32>
    %86 = arith.subf %82, %85 : vector<8x8xf32>
    %87 = math.exp %86 : vector<8x8xf32>
    %cst_24 = arith.constant dense<0.000000e+00> : vector<8xf32>
    %88 = vector.multi_reduction <add>, %87, %cst_24 [1] : vector<8x8xf32> to vector<8xf32>
    %89 = vector.shape_cast %88 : vector<8xf32> to vector<8x1xf32>
    %90 = tpu.reciprocal %89 {approx = true} : vector<8x1xf32> -> vector<8x1xf32>
    %91 = vector.broadcast %90 : vector<8x1xf32> to vector<8x8xf32>
    %92 = arith.mulf %87, %91 : vector<8x8xf32>
    %93 = arith.truncf %92 : vector<8x8xf32> to vector<8x8xbf16>
    %cst_25 = arith.constant dense<0.000000e+00> : vector<8x8xf32>
    %94 = tpu.matmul %93, %81, %cst_25 {dimension_numbers = #tpu.dot_dimension_numbers<[1], [0], [0], [1], [0, 0, 1, 1], [], []>} : vector<8x8xbf16>, vector<8x8xbf16>, vector<8x8xf32> -> vector<8x8xf32>
    %95 = vector.extract_strided_slice %20 {offsets = [0, 16], sizes = [8, 8], strides = [1, 1]} : vector<8x32xf32> to vector<8x8xf32>
    %96 = vector.extract_strided_slice %95 {offsets = [0, 4], sizes = [8, 4], strides = [1, 1]} : vector<8x8xf32> to vector<8x4xf32>
    %cst_26 = arith.constant 0.000000e+00 : f32
    %97 = vector.broadcast %cst_26 : f32 to vector<8x4xf32>
    %98 = arith.subf %97, %96 : vector<8x4xf32>
    %99 = vector.extract_strided_slice %95 {offsets = [0, 0], sizes = [8, 4], strides = [1, 1]} : vector<8x8xf32> to vector<8x4xf32>
    %100 = tpu.concatenate %98, %99 in 1 : vector<8x4xf32>, vector<8x4xf32> -> vector<8x8xf32>
    %101 = arith.mulf %95, %23 : vector<8x8xf32>
    %102 = arith.mulf %100, %24 : vector<8x8xf32>
    %103 = arith.addf %101, %102 : vector<8x8xf32>
    %104 = arith.truncf %103 : vector<8x8xf32> to vector<8x8xbf16>
    %105 = vector.extract_strided_slice %21 {offsets = [0, 16], sizes = [8, 8], strides = [1, 1]} : vector<8x32xf32> to vector<8x8xf32>
    %106 = vector.extract_strided_slice %105 {offsets = [0, 4], sizes = [8, 4], strides = [1, 1]} : vector<8x8xf32> to vector<8x4xf32>
    %cst_27 = arith.constant 0.000000e+00 : f32
    %107 = vector.broadcast %cst_27 : f32 to vector<8x4xf32>
    %108 = arith.subf %107, %106 : vector<8x4xf32>
    %109 = vector.extract_strided_slice %105 {offsets = [0, 0], sizes = [8, 4], strides = [1, 1]} : vector<8x8xf32> to vector<8x4xf32>
    %110 = tpu.concatenate %108, %109 in 1 : vector<8x4xf32>, vector<8x4xf32> -> vector<8x8xf32>
    %111 = arith.mulf %105, %23 : vector<8x8xf32>
    %112 = arith.mulf %110, %24 : vector<8x8xf32>
    %113 = arith.addf %111, %112 : vector<8x8xf32>
    %114 = arith.truncf %113 : vector<8x8xf32> to vector<8x8xbf16>
    %115 = vector.extract_strided_slice %22 {offsets = [0, 16], sizes = [8, 8], strides = [1, 1]} : vector<8x32xf32> to vector<8x8xf32>
    %116 = arith.truncf %115 : vector<8x8xf32> to vector<8x8xbf16>
    %cst_28 = arith.constant dense<0.000000e+00> : vector<8x8xf32>
    %117 = tpu.matmul %104, %114, %cst_28 {dimension_numbers = #tpu.dot_dimension_numbers<[1], [1], [0], [0], [0, 0, 1, 0], [], []>} : vector<8x8xbf16>, vector<8x8xbf16>, vector<8x8xf32> -> vector<8x8xf32>
    %cst_29 = arith.constant dense<0xFF800000> : vector<8xf32>
    %118 = vector.multi_reduction <maximumf>, %117, %cst_29 [1] : vector<8x8xf32> to vector<8xf32>
    %119 = vector.shape_cast %118 : vector<8xf32> to vector<8x1xf32>
    %120 = vector.broadcast %119 : vector<8x1xf32> to vector<8x8xf32>
    %121 = arith.subf %117, %120 : vector<8x8xf32>
    %122 = math.exp %121 : vector<8x8xf32>
    %cst_30 = arith.constant dense<0.000000e+00> : vector<8xf32>
    %123 = vector.multi_reduction <add>, %122, %cst_30 [1] : vector<8x8xf32> to vector<8xf32>
    %124 = vector.shape_cast %123 : vector<8xf32> to vector<8x1xf32>
    %125 = tpu.reciprocal %124 {approx = true} : vector<8x1xf32> -> vector<8x1xf32>
    %126 = vector.broadcast %125 : vector<8x1xf32> to vector<8x8xf32>
    %127 = arith.mulf %122, %126 : vector<8x8xf32>
    %128 = arith.truncf %127 : vector<8x8xf32> to vector<8x8xbf16>
    %cst_31 = arith.constant dense<0.000000e+00> : vector<8x8xf32>
    %129 = tpu.matmul %128, %116, %cst_31 {dimension_numbers = #tpu.dot_dimension_numbers<[1], [0], [0], [1], [0, 0, 1, 1], [], []>} : vector<8x8xbf16>, vector<8x8xbf16>, vector<8x8xf32> -> vector<8x8xf32>
    %130 = vector.extract_strided_slice %20 {offsets = [0, 24], sizes = [8, 8], strides = [1, 1]} : vector<8x32xf32> to vector<8x8xf32>
    %131 = vector.extract_strided_slice %130 {offsets = [0, 4], sizes = [8, 4], strides = [1, 1]} : vector<8x8xf32> to vector<8x4xf32>
    %cst_32 = arith.constant 0.000000e+00 : f32
    %132 = vector.broadcast %cst_32 : f32 to vector<8x4xf32>
    %133 = arith.subf %132, %131 : vector<8x4xf32>
    %134 = vector.extract_strided_slice %130 {offsets = [0, 0], sizes = [8, 4], strides = [1, 1]} : vector<8x8xf32> to vector<8x4xf32>
    %135 = tpu.concatenate %133, %134 in 1 : vector<8x4xf32>, vector<8x4xf32> -> vector<8x8xf32>
    %136 = arith.mulf %130, %23 : vector<8x8xf32>
    %137 = arith.mulf %135, %24 : vector<8x8xf32>
    %138 = arith.addf %136, %137 : vector<8x8xf32>
    %139 = arith.truncf %138 : vector<8x8xf32> to vector<8x8xbf16>
    %140 = vector.extract_strided_slice %21 {offsets = [0, 24], sizes = [8, 8], strides = [1, 1]} : vector<8x32xf32> to vector<8x8xf32>
    %141 = vector.extract_strided_slice %140 {offsets = [0, 4], sizes = [8, 4], strides = [1, 1]} : vector<8x8xf32> to vector<8x4xf32>
    %cst_33 = arith.constant 0.000000e+00 : f32
    %142 = vector.broadcast %cst_33 : f32 to vector<8x4xf32>
    %143 = arith.subf %142, %141 : vector<8x4xf32>
    %144 = vector.extract_strided_slice %140 {offsets = [0, 0], sizes = [8, 4], strides = [1, 1]} : vector<8x8xf32> to vector<8x4xf32>
    %145 = tpu.concatenate %143, %144 in 1 : vector<8x4xf32>, vector<8x4xf32> -> vector<8x8xf32>
    %146 = arith.mulf %140, %23 : vector<8x8xf32>
    %147 = arith.mulf %145, %24 : vector<8x8xf32>
    %148 = arith.addf %146, %147 : vector<8x8xf32>
    %149 = arith.truncf %148 : vector<8x8xf32> to vector<8x8xbf16>
    %150 = vector.extract_strided_slice %22 {offsets = [0, 24], sizes = [8, 8], strides = [1, 1]} : vector<8x32xf32> to vector<8x8xf32>
    %151 = arith.truncf %150 : vector<8x8xf32> to vector<8x8xbf16>
    %cst_34 = arith.constant dense<0.000000e+00> : vector<8x8xf32>
    %152 = tpu.matmul %139, %149, %cst_34 {dimension_numbers = #tpu.dot_dimension_numbers<[1], [1], [0], [0], [0, 0, 1, 0], [], []>} : vector<8x8xbf16>, vector<8x8xbf16>, vector<8x8xf32> -> vector<8x8xf32>
    %cst_35 = arith.constant dense<0xFF800000> : vector<8xf32>
    %153 = vector.multi_reduction <maximumf>, %152, %cst_35 [1] : vector<8x8xf32> to vector<8xf32>
    %154 = vector.shape_cast %153 : vector<8xf32> to vector<8x1xf32>
    %155 = vector.broadcast %154 : vector<8x1xf32> to vector<8x8xf32>
    %156 = arith.subf %152, %155 : vector<8x8xf32>
    %157 = math.exp %156 : vector<8x8xf32>
    %cst_36 = arith.constant dense<0.000000e+00> : vector<8xf32>
    %158 = vector.multi_reduction <add>, %157, %cst_36 [1] : vector<8x8xf32> to vector<8xf32>
    %159 = vector.shape_cast %158 : vector<8xf32> to vector<8x1xf32>
    %160 = tpu.reciprocal %159 {approx = true} : vector<8x1xf32> -> vector<8x1xf32>
    %161 = vector.broadcast %160 : vector<8x1xf32> to vector<8x8xf32>
    %162 = arith.mulf %157, %161 : vector<8x8xf32>
    %163 = arith.truncf %162 : vector<8x8xf32> to vector<8x8xbf16>
    %cst_37 = arith.constant dense<0.000000e+00> : vector<8x8xf32>
    %164 = tpu.matmul %163, %151, %cst_37 {dimension_numbers = #tpu.dot_dimension_numbers<[1], [0], [0], [1], [0, 0, 1, 1], [], []>} : vector<8x8xbf16>, vector<8x8xbf16>, vector<8x8xf32> -> vector<8x8xf32>
    %165 = tpu.concatenate %59, %94, %129, %164 in 1 : vector<8x8xf32>, vector<8x8xf32>, vector<8x8xf32>, vector<8x8xf32> -> vector<8x32xf32>
    %166 = arith.truncf %165 : vector<8x32xf32> to vector<8x32xbf16>
    %c0_38 = arith.constant 0 : index
    %c0_39 = arith.constant 0 : index
    %167 = vector.load %arg3[%c0_38, %c0_39] : memref<32x32xbf16, #tpu.memory_space<vmem>>, vector<32x32xbf16>
    %cst_40 = arith.constant dense<0.000000e+00> : vector<8x32xf32>
    %168 = tpu.matmul %166, %167, %cst_40 {dimension_numbers = #tpu.dot_dimension_numbers<[1], [0], [0], [1], [0, 0, 1, 1], [], []>} : vector<8x32xbf16>, vector<32x32xbf16>, vector<8x32xf32> -> vector<8x32xf32>
    %169 = arith.addf %1, %168 : vector<8x32xf32>
    %170 = arith.mulf %169, %169 : vector<8x32xf32>
    %cst_41 = arith.constant dense<0.000000e+00> : vector<8xf32>
    %171 = vector.multi_reduction <add>, %170, %cst_41 [1] : vector<8x32xf32> to vector<8xf32>
    %172 = vector.shape_cast %171 : vector<8xf32> to vector<8x1xf32>
    %cst_42 = arith.constant 3.200000e+01 : f32
    %173 = vector.broadcast %cst_42 : f32 to vector<8x1xf32>
    %174 = arith.divf %172, %173 : vector<8x1xf32>
    %cst_43 = arith.constant 9.99999997E-7 : f32
    %175 = vector.broadcast %cst_43 : f32 to vector<8x1xf32>
    %176 = arith.addf %174, %175 : vector<8x1xf32>
    %177 = math.rsqrt %176 : vector<8x1xf32>
    %178 = vector.broadcast %177 : vector<8x1xf32> to vector<8x32xf32>
    %179 = arith.mulf %169, %178 : vector<8x32xf32>
    %c0_44 = arith.constant 0 : index
    %c0_45 = arith.constant 0 : index
    %180 = vector.load %arg7[%c0_44, %c0_45] : memref<1x32xf32, #tpu.memory_space<vmem>>, vector<1x32xf32>
    %181 = vector.broadcast %180 : vector<1x32xf32> to vector<8x32xf32>
    %182 = arith.mulf %179, %181 : vector<8x32xf32>
    %183 = arith.truncf %182 : vector<8x32xf32> to vector<8x32xbf16>
    %cst_46 = arith.constant 0.000000e+00 : f32
    %184 = vector.broadcast %cst_46 : f32 to vector<8x32xf32>
    %c0_47 = arith.constant 0 : index
    %c0_48 = arith.constant 0 : index
    %c0_49 = arith.constant 0 : index
    %185 = vector.load %arg4[%c0_47, %c0_48, %c0_49] : memref<2x32x64xbf16, #tpu.memory_space<vmem>>, vector<1x32x64xbf16>
    %186 = vector.shape_cast %185 : vector<1x32x64xbf16> to vector<32x64xbf16>
    %cst_50 = arith.constant dense<0.000000e+00> : vector<8x64xf32>
    %187 = tpu.matmul %183, %186, %cst_50 {dimension_numbers = #tpu.dot_dimension_numbers<[1], [0], [0], [1], [0, 0, 1, 1], [], []>} : vector<8x32xbf16>, vector<32x64xbf16>, vector<8x64xf32> -> vector<8x64xf32>
    %c1 = arith.constant 1 : index
    %c0_51 = arith.constant 0 : index
    %c0_52 = arith.constant 0 : index
    %188 = vector.load %arg4[%c1, %c0_51, %c0_52] : memref<2x32x64xbf16, #tpu.memory_space<vmem>>, vector<1x32x64xbf16>
    %189 = vector.shape_cast %188 : vector<1x32x64xbf16> to vector<32x64xbf16>
    %cst_53 = arith.constant dense<0.000000e+00> : vector<8x64xf32>
    %190 = tpu.matmul %183, %189, %cst_53 {dimension_numbers = #tpu.dot_dimension_numbers<[1], [0], [0], [1], [0, 0, 1, 1], [], []>} : vector<8x32xbf16>, vector<32x64xbf16>, vector<8x64xf32> -> vector<8x64xf32>
    %191 = arith.negf %187 : vector<8x64xf32>
    %192 = math.exp %191 : vector<8x64xf32>
    %cst_54 = arith.constant 1.000000e+00 : f32
    %193 = vector.broadcast %cst_54 : f32 to vector<8x64xf32>
    %194 = arith.addf %193, %192 : vector<8x64xf32>
    %195 = arith.divf %193, %194 : vector<8x64xf32>
    %196 = arith.mulf %187, %195 : vector<8x64xf32>
    %197 = arith.mulf %196, %190 : vector<8x64xf32>
    %198 = arith.truncf %197 : vector<8x64xf32> to vector<8x64xbf16>
    %c0_55 = arith.constant 0 : index
    %c0_56 = arith.constant 0 : index
    %199 = vector.load %arg5[%c0_55, %c0_56] : memref<64x32xbf16, #tpu.memory_space<vmem>>, vector<64x32xbf16>
    %cst_57 = arith.constant dense<0.000000e+00> : vector<8x32xf32>
    %200 = tpu.matmul %198, %199, %cst_57 {dimension_numbers = #tpu.dot_dimension_numbers<[1], [0], [0], [1], [0, 0, 1, 1], [], []>} : vector<8x64xbf16>, vector<64x32xbf16>, vector<8x32xf32> -> vector<8x32xf32>
    %201 = arith.addf %184, %200 : vector<8x32xf32>
    %202 = arith.addf %169, %201 : vector<8x32xf32>
    %c0_58 = arith.constant 0 : index
    %c0_59 = arith.constant 0 : index
    %c0_60 = arith.constant 0 : index
    %203 = vector.load %arg10[%c0_58, %c0_59, %c0_60] : memref<1x8x32xf32, #tpu.memory_space<vmem>>, vector<1x8x32xf32>
    %204 = vector.shape_cast %203 : vector<1x8x32xf32> to vector<8x32xf32>
    %205 = vector.shape_cast %202 : vector<8x32xf32> to vector<1x8x32xf32>
    tpu.vector_store %arg10[%c0_58, %c0_59, %c0_60], %205 {strides = array<i32>} : memref<1x8x32xf32, #tpu.memory_space<vmem>>, vector<1x8x32xf32>,
    return
  }
  func.func @transform_0(%arg0: i32) -> (i32, i32, i32) {
    %c0_i32 = arith.constant 0 : i32
    %c0_i32_0 = arith.constant 0 : i32
    %c0_i32_1 = arith.constant 0 : i32
    return %arg0, %c0_i32, %c0_i32_0 : i32, i32, i32
  }
  func.func @transform_1(%arg0: i32) -> (i32, i32) {
    %c0_i32 = arith.constant 0 : i32
    %c0_i32_0 = arith.constant 0 : i32
    %c0_i32_1 = arith.constant 0 : i32
    return %c0_i32, %c0_i32_0 : i32, i32
  }
  func.func @transform_2(%arg0: i32) -> (i32, i32) {
    %c0_i32 = arith.constant 0 : i32
    %c0_i32_0 = arith.constant 0 : i32
    %c0_i32_1 = arith.constant 0 : i32
    return %c0_i32, %c0_i32_0 : i32, i32
  }
  func.func @transform_3(%arg0: i32) -> (i32, i32, i32) {
    %c0_i32 = arith.constant 0 : i32
    %c0_i32_0 = arith.constant 0 : i32
    %c0_i32_1 = arith.constant 0 : i32
    %c0_i32_2 = arith.constant 0 : i32
    return %c0_i32, %c0_i32_0, %c0_i32_1 : i32, i32, i32
  }
  func.func @transform_4(%arg0: i32) -> (i32, i32) {
    %c0_i32 = arith.constant 0 : i32
    %c0_i32_0 = arith.constant 0 : i32
    %c0_i32_1 = arith.constant 0 : i32
    return %c0_i32, %c0_i32_0 : i32, i32
  }
  func.func @transform_5(%arg0: i32) -> (i32, i32) {
    %c0_i32 = arith.constant 0 : i32
    %c0_i32_0 = arith.constant 0 : i32
    %c0_i32_1 = arith.constant 0 : i32
    return %c0_i32, %c0_i32_0 : i32, i32
  }
  func.func @transform_6(%arg0: i32) -> (i32, i32) {
    %c0_i32 = arith.constant 0 : i32
    %c0_i32_0 = arith.constant 0 : i32
    %c0_i32_1 = arith.constant 0 : i32
    return %c0_i32, %c0_i32_0 : i32, i32
  }
  func.func @transform_7(%arg0: i32) -> (i32, i32) {
    %c0_i32 = arith.constant 0 : i32
    %c0_i32_0 = arith.constant 0 : i32
    %c0_i32_1 = arith.constant 0 : i32
    return %c0_i32, %c0_i32_0 : i32, i32
  }
  func.func @transform_8(%arg0: i32) -> (i32, i32) {
    %c0_i32 = arith.constant 0 : i32
    %c0_i32_0 = arith.constant 0 : i32
    %c0_i32_1 = arith.constant 0 : i32
    return %c0_i32, %c0_i32_0 : i32, i32
  }
  func.func @transform_9(%arg0: i32) -> (i32, i32, i32) {
    %c0_i32 = arith.constant 0 : i32
    %c0_i32_0 = arith.constant 0 : i32
    %c0_i32_1 = arith.constant 0 : i32
    return %arg0, %c0_i32, %c0_i32_0 : i32, i32, i32
  }
}

</mosaic_0001>

<llo_original>
// kernel: tpu_custom_call.1
$region0: #{tpu_custom_call.1}
  #allocation0 [shape = 'u32[]', space=smem, size = 0x4, offset = 0x4, fixed_abs, tag = 'smem constant byte address 0x4 - core index']
  #allocation1 [shape = 'u32[144,128]{1,0:T(1,128)}', space=vmem, size = 0x12000, scoped, tag = 'internal scratch']
  %s0 = inlined_call_operand.vmem [shape: f32[2,8,32], index: 0, kind: input, shape index: {}]
  %s1 = inlined_call_operand.hbm [shape: bf16[32,96], index: 1, kind: input, shape index: {}]
  %s2 = inlined_call_operand.hbm [shape: bf16[32,32], index: 2, kind: input, shape index: {}]
  %s3 = inlined_call_operand.vmem [shape: bf16[2,32,64], index: 3, kind: input, shape index: {}]
  %s4 = inlined_call_operand.vmem [shape: bf16[64,32], index: 4, kind: input, shape index: {}]
  %s5 = inlined_call_operand.vmem [shape: f32[1,32], index: 5, kind: input, shape index: {}]
  %s6 = inlined_call_operand.vmem [shape: f32[1,32], index: 6, kind: input, shape index: {}]
  %s7 = inlined_call_operand.vmem [shape: f32[8,8], index: 7, kind: input, shape index: {}]
  %s8 = inlined_call_operand.hbm [shape: f32[8,8], index: 8, kind: input, shape index: {}]
  %s9 = inlined_call_operand.hbm [shape: f32[2,8,32], index: 9, kind: output, shape index: {}]
  %s10 = sld [smem:[#allocation0]]
  $region81: #{tpu_custom_call.1} parent=0
    _
  %s12 = ssub.s32 1, %s10
  %s13 = scalar_select 0, %s12, %s10
  $region1: #{tpu_custom_call.1} parent=0
    #allocation2 [shape = 'u8[8192]{0}', space=vmem, size = 0x2000, scoped, tag = 'input window, operand 1, single buffered']
    #allocation3 [shape = 's32[2]{0}', space=sflag, size = 0x8, scoped, tag = 'scoped memory for tpu_custom_call.1']
    #allocation4 [shape = 's32[2]{0}', space=sflag, size = 0x8, scoped, tag = 'scoped memory for tpu_custom_call.1']
    #allocation5 [shape = 'u8[8192]{0}', space=vmem, size = 0x2000, scoped, tag = 'input window, operand 2, single buffered']
    #allocation6 [shape = 's32[1]{0}', space=sflag, size = 0x4, scoped, tag = 'scoped memory for tpu_custom_call.1']
    #allocation7 [shape = 'u8[4096]{0}', space=vmem, size = 0x1000, scoped, tag = 'input window, operand 8, single buffered']
    #allocation8 [shape = 'u8[8192]{0}', space=vmem, size = 0x2000, scoped, tag = 'output window, operand 0']
    %14 = vsyncpa [#allocation3], 0
    %15 = vsyncpa [#allocation6], 0
    %16 = vsyncpa [#allocation4], 0
    %s17 = scalar_lea.sflag [#allocation4], 1
    %18 = vsyncpa %s17, 0
    loop: start=0, step=1, limit=4
    $region2: #{tpu_custom_call.1} parent=1 // loop_pre_header
      _
    $region3: #{tpu_custom_call.1} parent=1 // loop_header
      %s20 = sphi 0, %s24
      %p21 = scmp.ge.s32.totalorder %s20, 4
      %s30 = sphi 0, %s32
      %s33 = sphi 0, %s30
      %s34 = sphi 0, %s33
      %s50 = sphi 0, %s34
      %s54 = sphi 0, %s54
      %s56 = sphi 0, %s54
      %s57 = sphi 0, %s56
      %s71 = sphi 0, %s57
      %s75 = sphi 0, %s75
      %s77 = sphi 0, %s75
      %s78 = sphi 0, %s77
      %s92 = sphi 0, %s78
      %s96 = sphi 0, %s96
      %s98 = sphi 0, %s96
      %s99 = sphi 0, %s98
      %s113 = sphi 0, %s99
      %s117 = sphi 0, %s117
      %s119 = sphi 0, %s117
      %s120 = sphi 0, %s119
      %s134 = sphi 0, %s120
      %s138 = sphi 0, %s138
      %s140 = sphi 0, %s138
      %s141 = sphi 0, %s140
      %s155 = sphi 0, %s141
      %s159 = sphi 0, %s159
      %s161 = sphi 0, %s159
      %s162 = sphi 0, %s161
      %s176 = sphi 0, %s162
      %s180 = sphi 0, %s180
      %s182 = sphi 0, %s180
      %s183 = sphi 0, %s182
      %s197 = sphi 0, %s183
      %s201 = sphi 0, %s201
      %s203 = sphi 0, %s201
      %s204 = sphi 0, %s203
      %s218 = sphi 0, %s204
      %s224 = sphi 0, %s226
      %s227 = sphi 0, %s224
      %s228 = sphi 0, %s227
      %s244 = sphi 0, %s228
    $region4: #{tpu_custom_call.1} parent=1 // loop_header_branch
      %23 = sbr.rel (%p21) target = $region8
    $region5: #{tpu_custom_call.1} parent=1 // loop_body
      %s25 = ssub.s32 %s20, 1
      %s26 = ssub.s32 %s20, 2
      %s27 = sadd.s32 %s20, 1
      %s28 = ssub.s32 %s20, %s27
      %p29 = scmp.eq.s32.totalorder %s28, 0
      %s31 = sadd.s32 %s30, 1
      %s32 = scalar_select %p29, %s30, %s31
      %p35 = pneg %p29
      %p36 = scmp.eq.s32.totalorder %s20, 1
      %p37 = por %p35, %p36
      %p38 = scmp.ne.s32.totalorder %s30, %s33
      %p39 = scmp.eq.s32.totalorder %s20, 0
      %p40 = por %p38, %p39
      %p41 = scmp.ne.s32.totalorder %s30, %s33
      %p42 = scmp.eq.s32.totalorder %s25, 1
      %p43 = por %p41, %p42
      %p44 = scmp.ne.s32.totalorder %s33, %s34
      %p45 = scmp.eq.s32.totalorder %s25, 0
      %p46 = por %p44, %p45
      %p47 = scmp.ne.s32.totalorder %s33, %s34
      %p48 = scmp.eq.s32.totalorder %s26, 1
      %p49 = por %p47, %p48
      %p51 = scmp.ne.s32.totalorder %s34, %s50
      %p52 = scmp.eq.s32.totalorder %s26, 0
      %p53 = por %p51, %p52
      %s55 = sadd.s32 %s54, 1
      %p58 = scmp.eq.s32.totalorder %s20, 1
      %p59 = scmp.ne.s32.totalorder %s54, %s56
      %p60 = scmp.eq.s32.totalorder %s20, 0
      %p61 = por %p59, %p60
      %p62 = scmp.ne.s32.totalorder %s54, %s56
      %p63 = scmp.eq.s32.totalorder %s25, 1
      %p64 = por %p62, %p63
      %p65 = scmp.ne.s32.totalorder %s56, %s57
      %p66 = scmp.eq.s32.totalorder %s25, 0
      %p67 = por %p65, %p66
      %p68 = scmp.ne.s32.totalorder %s56, %s57
      %p69 = scmp.eq.s32.totalorder %s26, 1
      %p70 = por %p68, %p69
      %p72 = scmp.ne.s32.totalorder %s57, %s71
      %p73 = scmp.eq.s32.totalorder %s26, 0
      %p74 = por %p72, %p73
      %s76 = sadd.s32 %s75, 1
      %p79 = scmp.eq.s32.totalorder %s20, 1
      %p80 = scmp.ne.s32.totalorder %s75, %s77
      %p81 = scmp.eq.s32.totalorder %s20, 0
      %p82 = por %p80, %p81
      %p83 = scmp.ne.s32.totalorder %s75, %s77
      %p84 = scmp.eq.s32.totalorder %s25, 1
      %p85 = por %p83, %p84
      %p86 = scmp.ne.s32.totalorder %s77, %s78
      %p87 = scmp.eq.s32.totalorder %s25, 0
      %p88 = por %p86, %p87
      %p89 = scmp.ne.s32.totalorder %s77, %s78
      %p90 = scmp.eq.s32.totalorder %s26, 1
      %p91 = por %p89, %p90
      %p93 = scmp.ne.s32.totalorder %s78, %s92
      %p94 = scmp.eq.s32.totalorder %s26, 0
      %p95 = por %p93, %p94
      %s97 = sadd.s32 %s96, 1
      %p100 = scmp.eq.s32.totalorder %s20, 1
      %p101 = scmp.ne.s32.totalorder %s96, %s98
      %p102 = scmp.eq.s32.totalorder %s20, 0
      %p103 = por %p101, %p102
      %p104 = scmp.ne.s32.totalorder %s96, %s98
      %p105 = scmp.eq.s32.totalorder %s25, 1
      %p106 = por %p104, %p105
      %p107 = scmp.ne.s32.totalorder %s98, %s99
      %p108 = scmp.eq.s32.totalorder %s25, 0
      %p109 = por %p107, %p108
      %p110 = scmp.ne.s32.totalorder %s98, %s99
      %p111 = scmp.eq.s32.totalorder %s26, 1
      %p112 = por %p110, %p111
      %p114 = scmp.ne.s32.totalorder %s99, %s113
      %p115 = scmp.eq.s32.totalorder %s26, 0
      %p116 = por %p114, %p115
      %s118 = sadd.s32 %s117, 1
      %p121 = scmp.eq.s32.totalorder %s20, 1
      %p122 = scmp.ne.s32.totalorder %s117, %s119
      %p123 = scmp.eq.s32.totalorder %s20, 0
      %p124 = por %p122, %p123
      %p125 = scmp.ne.s32.totalorder %s117, %s119
      %p126 = scmp.eq.s32.totalorder %s25, 1
      %p127 = por %p125, %p126
      %p128 = scmp.ne.s32.totalorder %s119, %s120
      %p129 = scmp.eq.s32.totalorder %s25, 0
      %p130 = por %p128, %p129
      %p131 = scmp.ne.s32.totalorder %s119, %s120
      %p132 = scmp.eq.s32.totalorder %s26, 1
      %p133 = por %p131, %p132
      %p135 = scmp.ne.s32.totalorder %s120, %s134
      %p136 = scmp.eq.s32.totalorder %s26, 0
      %p137 = por %p135, %p136
      %s139 = sadd.s32 %s138, 1
      %p142 = scmp.eq.s32.totalorder %s20, 1
      %p143 = scmp.ne.s32.totalorder %s138, %s140
      %p144 = scmp.eq.s32.totalorder %s20, 0
      %p145 = por %p143, %p144
      %p146 = scmp.ne.s32.totalorder %s138, %s140
      %p147 = scmp.eq.s32.totalorder %s25, 1
      %p148 = por %p146, %p147
      %p149 = scmp.ne.s32.totalorder %s140, %s141
      %p150 = scmp.eq.s32.totalorder %s25, 0
      %p151 = por %p149, %p150
      %p152 = scmp.ne.s32.totalorder %s140, %s141
      %p153 = scmp.eq.s32.totalorder %s26, 1
      %p154 = por %p152, %p153
      %p156 = scmp.ne.s32.totalorder %s141, %s155
      %p157 = scmp.eq.s32.totalorder %s26, 0
      %p158 = por %p156, %p157
      %s160 = sadd.s32 %s159, 1
      %p163 = scmp.eq.s32.totalorder %s20, 1
      %p164 = scmp.ne.s32.totalorder %s159, %s161
      %p165 = scmp.eq.s32.totalorder %s20, 0
      %p166 = por %p164, %p165
      %p167 = scmp.ne.s32.totalorder %s159, %s161
      %p168 = scmp.eq.s32.totalorder %s25, 1
      %p169 = por %p167, %p168
      %p170 = scmp.ne.s32.totalorder %s161, %s162
      %p171 = scmp.eq.s32.totalorder %s25, 0
      %p172 = por %p170, %p171
      %p173 = scmp.ne.s32.totalorder %s161, %s162
      %p174 = scmp.eq.s32.totalorder %s26, 1
      %p175 = por %p173, %p174
      %p177 = scmp.ne.s32.totalorder %s162, %s176
      %p178 = scmp.eq.s32.totalorder %s26, 0
      %p179 = por %p177, %p178
      %s181 = sadd.s32 %s180, 1
      %p184 = scmp.eq.s32.totalorder %s20, 1
      %p185 = scmp.ne.s32.totalorder %s180, %s182
      %p186 = scmp.eq.s32.totalorder %s20, 0
      %p187 = por %p185, %p186
      %p188 = scmp.ne.s32.totalorder %s180, %s182
      %p189 = scmp.eq.s32.totalorder %s25, 1
      %p190 = por %p188, %p189
      %p191 = scmp.ne.s32.totalorder %s182, %s183
      %p192 = scmp.eq.s32.totalorder %s25, 0
      %p193 = por %p191, %p192
      %p194 = scmp.ne.s32.totalorder %s182, %s183
      %p195 = scmp.eq.s32.totalorder %s26, 1
      %p196 = por %p194, %p195
      %p198 = scmp.ne.s32.totalorder %s183, %s197
      %p199 = scmp.eq.s32.totalorder %s26, 0
      %p200 = por %p198, %p199
      %s202 = sadd.s32 %s201, 1
      %p205 = scmp.eq.s32.totalorder %s20, 1
      %p206 = scmp.ne.s32.totalorder %s201, %s203
      %p207 = scmp.eq.s32.totalorder %s20, 0
      %p208 = por %p206, %p207
      %p209 = scmp.ne.s32.totalorder %s201, %s203
      %p210 = scmp.eq.s32.totalorder %s25, 1
      %p211 = por %p209, %p210
      %p212 = scmp.ne.s32.totalorder %s203, %s204
      %p213 = scmp.eq.s32.totalorder %s25, 0
      %p214 = por %p212, %p213
      %p215 = scmp.ne.s32.totalorder %s203, %s204
      %p216 = scmp.eq.s32.totalorder %s26, 1
      %p217 = por %p215, %p216
      %p219 = scmp.ne.s32.totalorder %s204, %s218
      %p220 = scmp.eq.s32.totalorder %s26, 0
      %p221 = por %p219, %p220
      %s222 = ssub.s32 %s20, %s27
      %p223 = scmp.eq.s32.totalorder %s222, 0
      %s225 = sadd.s32 %s224, 1
      %s226 = scalar_select %p223, %s224, %s225
      %p229 = pneg %p223
      %p230 = scmp.eq.s32.totalorder %s20, 1
      %p231 = por %p229, %p230
      %p232 = scmp.ne.s32.totalorder %s224, %s227
      %p233 = scmp.eq.s32.totalorder %s20, 0
      %p234 = por %p232, %p233
      %p235 = scmp.ne.s32.totalorder %s224, %s227
      %p236 = scmp.eq.s32.totalorder %s25, 1
      %p237 = por %p235, %p236
      %p238 = scmp.ne.s32.totalorder %s227, %s228
      %p239 = scmp.eq.s32.totalorder %s25, 0
      %p240 = por %p238, %p239
      %p241 = scmp.ne.s32.totalorder %s227, %s228
      %p242 = scmp.eq.s32.totalorder %s26, 1
      %p243 = por %p241, %p242
      %p245 = scmp.ne.s32.totalorder %s228, %s244
      %p246 = scmp.eq.s32.totalorder %s26, 0
      %p247 = por %p245, %p246
      %p248 = scmp.le.s32.totalorder 1, %s20
      %p249 = scmp.lt.s32.totalorder %s20, 3
      %p250 = pnand %p248, %p249
      %p251 = pneg %p250
      // Predicated region
      $region9: #{tpu_custom_call.1} parent=5 // pred_check
        _
      $region10: #{tpu_custom_call.1} parent=5 // pred_check_branch
        %253 = sbr.rel (%p250) target = $region12
      $region11: #{tpu_custom_call.1} parent=5 // pred_region
        %s254 = ssub.s32 %s20, 1
        // Predicated region
        $region13: #{tpu_custom_call.1} parent=11 // pred_check
          %p255 = pneg %p67
        $region14: #{tpu_custom_call.1} parent=11 // pred_check_branch
          %257 = sbr.rel (%p255) target = $region16
        $region15: #{tpu_custom_call.1} parent=11 // pred_region
          %s259 = ssub.s32 256, 256
          %260 = vsyncadd [#allocation3], %s259
          %s261 = sshll.u32 [#allocation2], 4
          %s262 = int_to_ptr.vmem [resolvable:$true] %s261
          %267 = dma.hbm_to_vmem [thread:$0]  %s1, 256, %s262, [#allocation3], 64, 64, 4
        $region16: #{tpu_custom_call.1} parent=11 // pred_fallthru
          _
        // Predicated region
        $region17: #{tpu_custom_call.1} parent=11 // pred_check
          %p268 = pneg %p88
        $region18: #{tpu_custom_call.1} parent=11 // pred_check_branch
          %270 = sbr.rel (%p268) target = $region20
        $region19: #{tpu_custom_call.1} parent=11 // pred_region
          %s272 = ssub.s32 256, 256
          %273 = vsyncadd [#allocation6], %s272
          %s274 = sshll.u32 [#allocation5], 4
          %s275 = int_to_ptr.vmem [resolvable:$true] %s274
          %280 = dma.hbm_to_vmem [thread:$0]  %s2, 256, %s275, [#allocation6], 64, 64, 4
        $region20: #{tpu_custom_call.1} parent=11 // pred_fallthru
          _
        // Predicated region
        $region21: #{tpu_custom_call.1} parent=11 // pred_check
          %p281 = pneg %p109
        $region22: #{tpu_custom_call.1} parent=11 // pred_check_branch
          %283 = sbr.rel (%p281) target = $region24
        $region23: #{tpu_custom_call.1} parent=11 // pred_region
          _
        $region24: #{tpu_custom_call.1} parent=11 // pred_fallthru
          _
        // Predicated region
        $region25: #{tpu_custom_call.1} parent=11 // pred_check
          %p284 = pneg %p130
        $region26: #{tpu_custom_call.1} parent=11 // pred_check_branch
          %286 = sbr.rel (%p284) target = $region28
        $region27: #{tpu_custom_call.1} parent=11 // pred_region
          _
        $region28: #{tpu_custom_call.1} parent=11 // pred_fallthru
          _
        // Predicated region
        $region29: #{tpu_custom_call.1} parent=11 // pred_check
          %p287 = pneg %p151
        $region30: #{tpu_custom_call.1} parent=11 // pred_check_branch
          %289 = sbr.rel (%p287) target = $region32
        $region31: #{tpu_custom_call.1} parent=11 // pred_region
          _
        $region32: #{tpu_custom_call.1} parent=11 // pred_fallthru
          _
        // Predicated region
        $region33: #{tpu_custom_call.1} parent=11 // pred_check
          %p290 = pneg %p172
        $region34: #{tpu_custom_call.1} parent=11 // pred_check_branch
          %292 = sbr.rel (%p290) target = $region36
        $region35: #{tpu_custom_call.1} parent=11 // pred_region
          _
        $region36: #{tpu_custom_call.1} parent=11 // pred_fallthru
          _
        // Predicated region
        $region37: #{tpu_custom_call.1} parent=11 // pred_check
          %p293 = pneg %p193
        $region38: #{tpu_custom_call.1} parent=11 // pred_check_branch
          %295 = sbr.rel (%p293) target = $region40
        $region39: #{tpu_custom_call.1} parent=11 // pred_region
          _
        $region40: #{tpu_custom_call.1} parent=11 // pred_fallthru
          _
        // Predicated region
        $region41: #{tpu_custom_call.1} parent=11 // pred_check
          %p296 = pneg %p214
        $region42: #{tpu_custom_call.1} parent=11 // pred_check_branch
          %298 = sbr.rel (%p296) target = $region44
        $region43: #{tpu_custom_call.1} parent=11 // pred_region
          %s300 = ssub.s32 128, 128
          %301 = vsyncadd [#allocation6], %s300
          %s303 = sshll.u32 [#allocation7], 4
          %s304 = int_to_ptr.vmem [resolvable:$true] %s303
          %306 = dma.hbm_to_vmem [thread:$0]  %s8, 128, %s304, [#allocation6]
        $region44: #{tpu_custom_call.1} parent=11 // pred_fallthru
          _
      $region12: #{tpu_custom_call.1} parent=5 // pred_fallthru
        _
      %p307 = scmp.lt.s32.totalorder %s20, 2
      // Predicated region
      $region45: #{tpu_custom_call.1} parent=5 // pred_check
        %p308 = pneg %p307
      $region46: #{tpu_custom_call.1} parent=5 // pred_check_branch
        %310 = sbr.rel (%p308) target = $region48
      $region47: #{tpu_custom_call.1} parent=5 // pred_region
        // Predicated region
        $region49: #{tpu_custom_call.1} parent=47 // pred_check
          %p311 = pneg %p40
        $region50: #{tpu_custom_call.1} parent=47 // pred_check_branch
          %313 = sbr.rel (%p311) target = $region52
        $region51: #{tpu_custom_call.1} parent=47 // pred_region
          %p314 = scmp.lt.s32.totalorder %s20, 1
          %s315 = scalar_select %p314, %s20, 1
          %s316 = smul.addr %s315, 8
          %s317 = scalar_lea.vmem %s0, %s316
        $region52: #{tpu_custom_call.1} parent=47 // pred_fallthru
          _
      $region48: #{tpu_custom_call.1} parent=5 // pred_fallthru
        _
      %p318 = scmp.le.s32.totalorder 1, %s20
      %p319 = scmp.lt.s32.totalorder %s20, 3
      %p320 = pnand %p318, %p319
      %p321 = pneg %p320
      // Predicated region
      $region53: #{tpu_custom_call.1} parent=5 // pred_check
        _
      $region54: #{tpu_custom_call.1} parent=5 // pred_check_branch
        %323 = sbr.rel (%p320) target = $region56
      $region55: #{tpu_custom_call.1} parent=5 // pred_region
        %s324 = ssub.s32 %s20, 1
        // Predicated region
        $region57: #{tpu_custom_call.1} parent=55 // pred_check
          %p325 = pneg %p67
        $region58: #{tpu_custom_call.1} parent=55 // pred_check_branch
          %327 = sbr.rel (%p325) target = $region60
        $region59: #{tpu_custom_call.1} parent=55 // pred_region
          %328 = dma.done [#allocation3], 256
        $region60: #{tpu_custom_call.1} parent=55 // pred_fallthru
          _
        // Predicated region
        $region61: #{tpu_custom_call.1} parent=55 // pred_check
          %p329 = pneg %p88
        $region62: #{tpu_custom_call.1} parent=55 // pred_check_branch
          %331 = sbr.rel (%p329) target = $region64
        $region63: #{tpu_custom_call.1} parent=55 // pred_region
          %332 = dma.done [#allocation6], 256
        $region64: #{tpu_custom_call.1} parent=55 // pred_fallthru
          _
        // Predicated region
        $region65: #{tpu_custom_call.1} parent=55 // pred_check
          %p333 = pneg %p214
        $region66: #{tpu_custom_call.1} parent=55 // pred_check_branch
          %335 = sbr.rel (%p333) target = $region68
        $region67: #{tpu_custom_call.1} parent=55 // pred_region
          %336 = dma.done [#allocation6], 128
        $region68: #{tpu_custom_call.1} parent=55 // pred_fallthru
          _
        %p337 = scmp.lt.s32.totalorder %s25, 1
        %s338 = scalar_select %p337, %s25, 1
        %s339 = smul.addr %s338, 8
        %s340 = scalar_lea.vmem %s0, %s339
        %p341 = pneg %p46
        %p342 = pneg %p43
        %p343 = pneg %p67
        %p344 = pneg %p64
        %p345 = pneg %p88
        %p346 = pneg %p85
        %p347 = pneg %p109
        %p348 = pneg %p106
        %p349 = pneg %p130
        %p350 = pneg %p127
        %p351 = pneg %p151
        %p352 = pneg %p148
        %p353 = pneg %p172
        %p354 = pneg %p169
        %p355 = pneg %p193
        %p356 = pneg %p190
        %p357 = pneg %p214
        %p358 = pneg %p211
        %p359 = pneg %p240
        %p360 = pneg %p237
        %s361 = sand.u32 %s227, 1
        %s362 = scalar_lea.sflag [#allocation4], %s361
        %s363 = sand.u32 %s227, 1
        %s364 = smul.addr %s363, 8
        %s365 = scalar_lea.vmem [#allocation8], %s364
        %p366 = scmp.lt.s32.totalorder %s25, 1
        %s367 = scalar_select %p366, %s25, 1
        %s368 = smul.addr %s367, 8
        %s369 = scalar_lea.vmem %s0, %s368
        %v371 = vld [vmem:[%s369] sm:$0xff]
        %v372 = vmul.f32 %v371, %v371
        %vm373 = vcmask 261120
        %v374 = vsel %vm373, %v372, 0.0
        %375 = vadd.xlane.f32.xlu0 %v374
        %v376 = vpop.xlane.xlu0 %375
        %v377 = vrcp.pop 32.0
        %v378 = vmul.f32 %v376, %v377
        %v379 = vadd.f32 %v378, 1e-06
        %v380 = vrsqrt.pop %v379
        %v381 = vmul.f32 %v371, %v380
        %v382 = vld [vmem:[%s5] sm:$0x1]
        %v384 = vlaneseq
        %v385 = vshrl.u32 %v384, 7
        %v386 = vsub.s32 0, %v385
        %v387 = vrot.slane %v382, %v386
        %v389 = vmul.f32 %v381, %v387
        %v390 = vpack.c.bf16 %v389, %v389
        %v391 = vld [vmem:[#allocation2] sm:$0xf]
        %v392 = vld [vmem:[#allocation2 + $0x4] sm:$0xf]
        %v393 = vld [vmem:[#allocation2 + $0x8] sm:$0xf]
        %v394 = vld [vmem:[#allocation2 + $0xc] sm:$0xf]
        %v399 = vunpack.c.l.b16 %v391
        %v400 = vunpack.c.l.b16 %v392
        %v401 = vunpack.c.l.b16 %v393
        %v402 = vunpack.c.l.b16 %v394
        %v403 = vpack.c.b16 %v400, %v399
        %v404 = vpack.c.b16 %v402, %v401
        %v408 = vsel %vm373, %v390, 0
        %410 = vmatprep.subr.bf16.mxu0 0
        %411 = vmatpush1.bf16.msra.mxu0 0
        %412 = vmatprep.subr.bf16.mxu0 0
        %413 = vmatpush1.bf16.msra.mxu0 0
        %414 = vmatprep.subr.bf16.mxu0 0
        %415 = vmatpush1.bf16.msra.mxu0 0
        %416 = vmatprep.subr.bf16.mxu0 0
        %417 = vmatpush1.bf16.msra.mxu0 0
        %418 = vmatprep.subr.bf16.mxu0 0
        %419 = vmatpush1.bf16.msra.mxu0 0
        %420 = vmatprep.subr.bf16.mxu0 0
        %421 = vmatpush1.bf16.msra.mxu0 0
        %422 = vmatprep.subr.bf16.mxu0 0
        %423 = vmatpush1.bf16.msra.mxu0 %v404
        %424 = vmatprep.subr.bf16.mxu0 0
        %425 = vmatpush1.bf16.msra.mxu0 %v403
        %426 = vmatprep.subr.bf16.mxu0 0
        %427 = vmatpush2.bf16.msra.mxu0 0
        %428 = vmatprep.subr.bf16.mxu0 0
        %429 = vmatpush2.bf16.msra.mxu0 0
        %430 = vmatprep.subr.bf16.mxu0 0
        %431 = vmatpush2.bf16.msra.mxu0 0
        %432 = vmatprep.subr.bf16.mxu0 0
        %433 = vmatpush2.bf16.msra.mxu0 0
        %434 = vmatprep.subr.bf16.mxu0 0
        %435 = vmatpush2.bf16.msra.mxu0 0
        %436 = vmatprep.subr.bf16.mxu0 0
        %437 = vmatpush2.bf16.msra.mxu0 0
        %438 = vmatprep.subr.bf16.mxu0 0
        %439 = vmatpush2.bf16.msra.mxu0 0
        %440 = vmatprep.subr.bf16.mxu0 0
        %441 = vmatpush2.bf16.msra.mxu0 0
        %442 = vmatprep.mubr.bf16.mxu0 0
        %443 = vmatmul.mubr.bf16.gmra.mxu0 %v408
        %v444 = vpop.f32.mrf.mxu0
        %v445 = vadd.f32 0.0, %v444
        %v446 = vpop.f32.mrf.mxu0
        %v447 = vpop.f32.mrf.mxu0
        %v448 = vpop.f32.mrf.mxu0
        %449 = vdwg.mxu0
        %v450 = vmul.f32 %v445, 0.35355338
        %v451 = vld [vmem:[%s7] sm:$0xff]
        %v452 = vld [vmem:[#allocation7] sm:$0xff]
        %v453 = vsub.f32 0.0, %v450
        %455 = vrot.lane.b32.xlu0 %v453, 124
        %v456 = vpop.permute.xlu0 %455
        %459 = vrot.lane.b32.xlu0 %v450, 4
        %v460 = vpop.permute.xlu0 %459
        %vm462 = vcmask 31744
        %v463 = vsel %vm462, %v456, %v460
        %v464 = vmul.f32 %v450, %v451
        %v465 = vmul.f32 %v463, %v452
        %v466 = vadd.f32 %v464, %v465
        %v467 = vpack.c.bf16 %v466, %v466
        %v468 = vsub.f32 0.0, %v445
        %470 = vrot.lane.b32.xlu0 %v468, 92
        %v471 = vpop.permute.xlu0 %470
        %474 = vrot.lane.b32.xlu0 %v445, 100
        %v475 = vpop.permute.xlu0 %474
        %v477 = vsel %vm462, %v471, %v475
        %479 = vrot.lane.b32.xlu0 %v451, 32
        %v480 = vpop.permute.xlu0 %479
        %v482 = vmul.f32 %v445, %v480
        %v483 = vmul.f32 %v477, %v452
        %485 = vrot.lane.b32.xlu0 %v483, 32
        %v486 = vpop.permute.xlu0 %485
        %v488 = vadd.f32 %v482, %v486
        %v489 = vpack.c.bf16 %v488, %v488
        %v490 = vpack.c.bf16 %v445, %v445
        %492 = vrot.lane.b32.xlu0 %v489, 96
        %v493 = vpop.permute.xlu0 %492
        %vm494 = vcmask 64512
        %v496 = vsel %vm494, %v467, 0
        %v499 = vsel %vm494, %v493, 0
        %501 = vmatprep.subr.bf16.mxu0 0
        %502 = vmatpush1.bf16.xpose.msra.mxu0 0
        %503 = vmatprep.subr.bf16.mxu0 0
        %504 = vmatpush1.bf16.xpose.msra.mxu0 0
        %505 = vmatprep.subr.bf16.mxu0 0
        %506 = vmatpush1.bf16.xpose.msra.mxu0 0
        %507 = vmatprep.subr.bf16.mxu0 0
        %508 = vmatpush1.bf16.xpose.msra.mxu0 0
        %509 = vmatprep.subr.bf16.mxu0 0
        %510 = vmatpush1.bf16.xpose.msra.mxu0 0
        %511 = vmatprep.subr.bf16.mxu0 0
        %512 = vmatpush1.bf16.xpose.msra.mxu0 0
        %513 = vmatprep.subr.bf16.mxu0 0
        %514 = vmatpush1.bf16.xpose.msra.mxu0 0
        %515 = vmatprep.subr.bf16.mxu0 0
        %516 = vmatpush1.bf16.xpose.msra.mxu0 %v499
        %517 = vmatprep.subr.bf16.mxu0 0
        %518 = vmatpush2.bf16.xpose.msra.mxu0 0
        %519 = vmatprep.subr.bf16.mxu0 0
        %520 = vmatpush2.bf16.xpose.msra.mxu0 0
        %521 = vmatprep.subr.bf16.mxu0 0
        %522 = vmatpush2.bf16.xpose.msra.mxu0 0
        %523 = vmatprep.subr.bf16.mxu0 0
        %524 = vmatpush2.bf16.xpose.msra.mxu0 0
        %525 = vmatprep.subr.bf16.mxu0 0
        %526 = vmatpush2.bf16.xpose.msra.mxu0 0
        %527 = vmatprep.subr.bf16.mxu0 0
        %528 = vmatpush2.bf16.xpose.msra.mxu0 0
        %529 = vmatprep.subr.bf16.mxu0 0
        %530 = vmatpush2.bf16.xpose.msra.mxu0 0
        %531 = vmatprep.subr.bf16.mxu0 0
        %532 = vmatpush2.bf16.xpose.msra.mxu0 0
        %533 = vmatprep.mubr.bf16.mxu0 0
        %534 = vmatmul.mubr.bf16.gmra.mxu0 %v496
        %v535 = vpop.f32.mrf.mxu0
        %v536 = vadd.f32 0.0, %v535
        %v537 = vpop.f32.mrf.mxu0
        %v538 = vpop.f32.mrf.mxu0
        %v539 = vpop.f32.mrf.mxu0
        %540 = vdwg.mxu0
        %v541 = vsel %vm494, %v536, -inf
        %542 = vmax.xlane.f32.xlu0 %v541
        %v543 = vpop.xlane.xlu0 %542
        %v544 = vsub.f32 %v536, %v543
        %v545 = vmul.f32 %v544, 1.442695
        %v546 = vpow.pop %v545
        %v547 = vsel %vm494, %v546, 0.0
        %548 = vadd.xlane.f32.xlu0 %v547
        %v549 = vpop.xlane.xlu0 %548
        %v550 = vrcp.pop %v549
        %v551 = vmul.f32 %v546, %v550
        %v552 = vpack.c.bf16 %v551, %v551
        %554 = vrot.lane.b32.xlu0 %v490, 64
        %v555 = vpop.permute.xlu0 %554
        %v557 = vsel %vm494, %v552, 0
        %vm559 = vcmask 1043456
        %v561 = vsel %vm559, %v555, 0
        %563 = vmatprep.subr.bf16.mxu0 0
        %564 = vmatpush1.bf16.msra.mxu0 0
        %565 = vmatprep.subr.bf16.mxu0 0
        %566 = vmatpush1.bf16.msra.mxu0 0
        %567 = vmatprep.subr.bf16.mxu0 0
        %568 = vmatpush1.bf16.msra.mxu0 0
        %569 = vmatprep.subr.bf16.mxu0 0
        %570 = vmatpush1.bf16.msra.mxu0 0
        %571 = vmatprep.subr.bf16.mxu0 0
        %572 = vmatpush1.bf16.msra.mxu0 0
        %573 = vmatprep.subr.bf16.mxu0 0
        %574 = vmatpush1.bf16.msra.mxu0 0
        %575 = vmatprep.subr.bf16.mxu0 0
        %576 = vmatpush1.bf16.msra.mxu0 0
        %577 = vmatprep.subr.bf16.mxu0 0
        %578 = vmatpush1.bf16.msra.mxu0 %v561
        %579 = vmatprep.subr.bf16.mxu0 0
        %580 = vmatpush2.bf16.msra.mxu0 0
        %581 = vmatprep.subr.bf16.mxu0 0
        %582 = vmatpush2.bf16.msra.mxu0 0
        %583 = vmatprep.subr.bf16.mxu0 0
        %584 = vmatpush2.bf16.msra.mxu0 0
        %585 = vmatprep.subr.bf16.mxu0 0
        %586 = vmatpush2.bf16.msra.mxu0 0
        %587 = vmatprep.subr.bf16.mxu0 0
        %588 = vmatpush2.bf16.msra.mxu0 0
        %589 = vmatprep.subr.bf16.mxu0 0
        %590 = vmatpush2.bf16.msra.mxu0 0
        %591 = vmatprep.subr.bf16.mxu0 0
        %592 = vmatpush2.bf16.msra.mxu0 0
        %593 = vmatprep.subr.bf16.mxu0 0
        %594 = vmatpush2.bf16.msra.mxu0 0
        %595 = vmatprep.mubr.bf16.mxu0 0
        %596 = vmatmul.mubr.bf16.gmra.mxu0 %v557
        %v597 = vpop.f32.mrf.mxu0
        %v598 = vadd.f32 0.0, %v597
        %v599 = vpop.f32.mrf.mxu0
        %v600 = vpop.f32.mrf.mxu0
        %v601 = vpop.f32.mrf.mxu0
        %602 = vdwg.mxu0
        %603 = vrot.lane.b32.xlu0 %v453, 116
        %v604 = vpop.permute.xlu0 %603
        %606 = vrot.lane.b32.xlu0 %v450, 124
        %v607 = vpop.permute.xlu0 %606
        %v609 = vsel %vm462, %v604, %v607
        %610 = vrot.lane.b32.xlu0 %v451, 8
        %v611 = vpop.permute.xlu0 %610
        %v613 = vmul.f32 %v450, %v611
        %v614 = vmul.f32 %v609, %v452
        %616 = vrot.lane.b32.xlu0 %v614, 8
        %v617 = vpop.permute.xlu0 %616
        %v619 = vadd.f32 %v613, %v617
        %v620 = vpack.c.bf16 %v619, %v619
        %621 = vrot.lane.b32.xlu0 %v468, 84
        %v622 = vpop.permute.xlu0 %621
        %624 = vrot.lane.b32.xlu0 %v445, 92
        %v625 = vpop.permute.xlu0 %624
        %v627 = vsel %vm462, %v622, %v625
        %628 = vrot.lane.b32.xlu0 %v451, 40
        %v629 = vpop.permute.xlu0 %628
        %v631 = vmul.f32 %v445, %v629
        %v632 = vmul.f32 %v627, %v452
        %634 = vrot.lane.b32.xlu0 %v632, 40
        %v635 = vpop.permute.xlu0 %634
        %v637 = vadd.f32 %v631, %v635
        %v638 = vpack.c.bf16 %v637, %v637
        %640 = vrot.lane.b32.xlu0 %v620, 120
        %v641 = vpop.permute.xlu0 %640
        %643 = vrot.lane.b32.xlu0 %v638, 88
        %v644 = vpop.permute.xlu0 %643
        %v646 = vsel %vm494, %v641, 0
        %v649 = vsel %vm494, %v644, 0
        %651 = vmatprep.subr.bf16.mxu0 0
        %652 = vmatpush1.bf16.xpose.msra.mxu0 0
        %653 = vmatprep.subr.bf16.mxu0 0
        %654 = vmatpush1.bf16.xpose.msra.mxu0 0
        %655 = vmatprep.subr.bf16.mxu0 0
        %656 = vmatpush1.bf16.xpose.msra.mxu0 0
        %657 = vmatprep.subr.bf16.mxu0 0
        %658 = vmatpush1.bf16.xpose.msra.mxu0 0
        %659 = vmatprep.subr.bf16.mxu0 0
        %660 = vmatpush1.bf16.xpose.msra.mxu0 0
        %661 = vmatprep.subr.bf16.mxu0 0
        %662 = vmatpush1.bf16.xpose.msra.mxu0 0
        %663 = vmatprep.subr.bf16.mxu0 0
        %664 = vmatpush1.bf16.xpose.msra.mxu0 0
        %665 = vmatprep.subr.bf16.mxu0 0
        %666 = vmatpush1.bf16.xpose.msra.mxu0 %v649
        %667 = vmatprep.subr.bf16.mxu0 0
        %668 = vmatpush2.bf16.xpose.msra.mxu0 0
        %669 = vmatprep.subr.bf16.mxu0 0
        %670 = vmatpush2.bf16.xpose.msra.mxu0 0
        %671 = vmatprep.subr.bf16.mxu0 0
        %672 = vmatpush2.bf16.xpose.msra.mxu0 0
        %673 = vmatprep.subr.bf16.mxu0 0
        %674 = vmatpush2.bf16.xpose.msra.mxu0 0
        %675 = vmatprep.subr.bf16.mxu0 0
        %676 = vmatpush2.bf16.xpose.msra.mxu0 0
        %677 = vmatprep.subr.bf16.mxu0 0
        %678 = vmatpush2.bf16.xpose.msra.mxu0 0
        %679 = vmatprep.subr.bf16.mxu0 0
        %680 = vmatpush2.bf16.xpose.msra.mxu0 0
        %681 = vmatprep.subr.bf16.mxu0 0
        %682 = vmatpush2.bf16.xpose.msra.mxu0 0
        %683 = vmatprep.mubr.bf16.mxu0 0
        %684 = vmatmul.mubr.bf16.gmra.mxu0 %v646
        %v685 = vpop.f32.mrf.mxu0
        %v686 = vadd.f32 0.0, %v685
        %v687 = vpop.f32.mrf.mxu0
        %v688 = vpop.f32.mrf.mxu0
        %v689 = vpop.f32.mrf.mxu0
        %690 = vdwg.mxu0
        %v691 = vsel %vm494, %v686, -inf
        %692 = vmax.xlane.f32.xlu0 %v691
        %v693 = vpop.xlane.xlu0 %692
        %v694 = vsub.f32 %v686, %v693
        %v695 = vmul.f32 %v694, 1.442695
        %v696 = vpow.pop %v695
        %v697 = vsel %vm494, %v696, 0.0
        %698 = vadd.xlane.f32.xlu0 %v697
        %v699 = vpop.xlane.xlu0 %698
        %v700 = vrcp.pop %v699
        %v701 = vmul.f32 %v696, %v700
        %v702 = vpack.c.bf16 %v701, %v701
        %703 = vrot.lane.b32.xlu0 %v490, 56
        %v704 = vpop.permute.xlu0 %703
        %v706 = vsel %vm494, %v702, 0
        %v709 = vsel %vm559, %v704, 0
        %711 = vmatprep.subr.bf16.mxu0 0
        %712 = vmatpush1.bf16.msra.mxu0 0
        %713 = vmatprep.subr.bf16.mxu0 0
        %714 = vmatpush1.bf16.msra.mxu0 0
        %715 = vmatprep.subr.bf16.mxu0 0
        %716 = vmatpush1.bf16.msra.mxu0 0
        %717 = vmatprep.subr.bf16.mxu0 0
        %718 = vmatpush1.bf16.msra.mxu0 0
        %719 = vmatprep.subr.bf16.mxu0 0
        %720 = vmatpush1.bf16.msra.mxu0 0
        %721 = vmatprep.subr.bf16.mxu0 0
        %722 = vmatpush1.bf16.msra.mxu0 0
        %723 = vmatprep.subr.bf16.mxu0 0
        %724 = vmatpush1.bf16.msra.mxu0 0
        %725 = vmatprep.subr.bf16.mxu0 0
        %726 = vmatpush1.bf16.msra.mxu0 %v709
        %727 = vmatprep.subr.bf16.mxu0 0
        %728 = vmatpush2.bf16.msra.mxu0 0
        %729 = vmatprep.subr.bf16.mxu0 0
        %730 = vmatpush2.bf16.msra.mxu0 0
        %731 = vmatprep.subr.bf16.mxu0 0
        %732 = vmatpush2.bf16.msra.mxu0 0
        %733 = vmatprep.subr.bf16.mxu0 0
        %734 = vmatpush2.bf16.msra.mxu0 0
        %735 = vmatprep.subr.bf16.mxu0 0
        %736 = vmatpush2.bf16.msra.mxu0 0
        %737 = vmatprep.subr.bf16.mxu0 0
        %738 = vmatpush2.bf16.msra.mxu0 0
        %739 = vmatprep.subr.bf16.mxu0 0
        %740 = vmatpush2.bf16.msra.mxu0 0
        %741 = vmatprep.subr.bf16.mxu0 0
        %742 = vmatpush2.bf16.msra.mxu0 0
        %743 = vmatprep.mubr.bf16.mxu0 0
        %744 = vmatmul.mubr.bf16.gmra.mxu0 %v706
        %v745 = vpop.f32.mrf.mxu0
        %v746 = vadd.f32 0.0, %v745
        %v747 = vpop.f32.mrf.mxu0
        %v748 = vpop.f32.mrf.mxu0
        %v749 = vpop.f32.mrf.mxu0
        %750 = vdwg.mxu0
        %751 = vrot.lane.b32.xlu0 %v453, 108
        %v752 = vpop.permute.xlu0 %751
        %754 = vrot.lane.b32.xlu0 %v450, 116
        %v755 = vpop.permute.xlu0 %754
        %v757 = vsel %vm462, %v752, %v755
        %758 = vrot.lane.b32.xlu0 %v451, 16
        %v759 = vpop.permute.xlu0 %758
        %v761 = vmul.f32 %v450, %v759
        %v762 = vmul.f32 %v757, %v452
        %764 = vrot.lane.b32.xlu0 %v762, 16
        %v765 = vpop.permute.xlu0 %764
        %v767 = vadd.f32 %v761, %v765
        %v768 = vpack.c.bf16 %v767, %v767
        %769 = vrot.lane.b32.xlu0 %v468, 76
        %v770 = vpop.permute.xlu0 %769
        %772 = vrot.lane.b32.xlu0 %v445, 84
        %v773 = vpop.permute.xlu0 %772
        %v775 = vsel %vm462, %v770, %v773
        %776 = vrot.lane.b32.xlu0 %v451, 48
        %v777 = vpop.permute.xlu0 %776
        %v779 = vmul.f32 %v445, %v777
        %v780 = vmul.f32 %v775, %v452
        %782 = vrot.lane.b32.xlu0 %v780, 48
        %v783 = vpop.permute.xlu0 %782
        %v785 = vadd.f32 %v779, %v783
        %v786 = vpack.c.bf16 %v785, %v785
        %788 = vrot.lane.b32.xlu0 %v768, 112
        %v789 = vpop.permute.xlu0 %788
        %791 = vrot.lane.b32.xlu0 %v786, 80
        %v792 = vpop.permute.xlu0 %791
        %v794 = vsel %vm494, %v789, 0
        %v797 = vsel %vm494, %v792, 0
        %799 = vmatprep.subr.bf16.mxu0 0
        %800 = vmatpush1.bf16.xpose.msra.mxu0 0
        %801 = vmatprep.subr.bf16.mxu0 0
        %802 = vmatpush1.bf16.xpose.msra.mxu0 0
        %803 = vmatprep.subr.bf16.mxu0 0
        %804 = vmatpush1.bf16.xpose.msra.mxu0 0
        %805 = vmatprep.subr.bf16.mxu0 0
        %806 = vmatpush1.bf16.xpose.msra.mxu0 0
        %807 = vmatprep.subr.bf16.mxu0 0
        %808 = vmatpush1.bf16.xpose.msra.mxu0 0
        %809 = vmatprep.subr.bf16.mxu0 0
        %810 = vmatpush1.bf16.xpose.msra.mxu0 0
        %811 = vmatprep.subr.bf16.mxu0 0
        %812 = vmatpush1.bf16.xpose.msra.mxu0 0
        %813 = vmatprep.subr.bf16.mxu0 0
        %814 = vmatpush1.bf16.xpose.msra.mxu0 %v797
        %815 = vmatprep.subr.bf16.mxu0 0
        %816 = vmatpush2.bf16.xpose.msra.mxu0 0
        %817 = vmatprep.subr.bf16.mxu0 0
        %818 = vmatpush2.bf16.xpose.msra.mxu0 0
        %819 = vmatprep.subr.bf16.mxu0 0
        %820 = vmatpush2.bf16.xpose.msra.mxu0 0
        %821 = vmatprep.subr.bf16.mxu0 0
        %822 = vmatpush2.bf16.xpose.msra.mxu0 0
        %823 = vmatprep.subr.bf16.mxu0 0
        %824 = vmatpush2.bf16.xpose.msra.mxu0 0
        %825 = vmatprep.subr.bf16.mxu0 0
        %826 = vmatpush2.bf16.xpose.msra.mxu0 0
        %827 = vmatprep.subr.bf16.mxu0 0
        %828 = vmatpush2.bf16.xpose.msra.mxu0 0
        %829 = vmatprep.subr.bf16.mxu0 0
        %830 = vmatpush2.bf16.xpose.msra.mxu0 0
        %831 = vmatprep.mubr.bf16.mxu0 0
        %832 = vmatmul.mubr.bf16.gmra.mxu0 %v794
        %v833 = vpop.f32.mrf.mxu0
        %v834 = vadd.f32 0.0, %v833
        %v835 = vpop.f32.mrf.mxu0
        %v836 = vpop.f32.mrf.mxu0
        %v837 = vpop.f32.mrf.mxu0
        %838 = vdwg.mxu0
        %v839 = vsel %vm494, %v834, -inf
        %840 = vmax.xlane.f32.xlu0 %v839
        %v841 = vpop.xlane.xlu0 %840
        %v842 = vsub.f32 %v834, %v841
        %v843 = vmul.f32 %v842, 1.442695
        %v844 = vpow.pop %v843
        %v845 = vsel %vm494, %v844, 0.0
        %846 = vadd.xlane.f32.xlu0 %v845
        %v847 = vpop.xlane.xlu0 %846
        %v848 = vrcp.pop %v847
        %v849 = vmul.f32 %v844, %v848
        %v850 = vpack.c.bf16 %v849, %v849
        %851 = vrot.lane.b32.xlu0 %v490, 48
        %v852 = vpop.permute.xlu0 %851
        %v854 = vsel %vm494, %v850, 0
        %v857 = vsel %vm559, %v852, 0
        %859 = vmatprep.subr.bf16.mxu0 0
        %860 = vmatpush1.bf16.msra.mxu0 0
        %861 = vmatprep.subr.bf16.mxu0 0
        %862 = vmatpush1.bf16.msra.mxu0 0
        %863 = vmatprep.subr.bf16.mxu0 0
        %864 = vmatpush1.bf16.msra.mxu0 0
        %865 = vmatprep.subr.bf16.mxu0 0
        %866 = vmatpush1.bf16.msra.mxu0 0
        %867 = vmatprep.subr.bf16.mxu0 0
        %868 = vmatpush1.bf16.msra.mxu0 0
        %869 = vmatprep.subr.bf16.mxu0 0
        %870 = vmatpush1.bf16.msra.mxu0 0
        %871 = vmatprep.subr.bf16.mxu0 0
        %872 = vmatpush1.bf16.msra.mxu0 0
        %873 = vmatprep.subr.bf16.mxu0 0
        %874 = vmatpush1.bf16.msra.mxu0 %v857
        %875 = vmatprep.subr.bf16.mxu0 0
        %876 = vmatpush2.bf16.msra.mxu0 0
        %877 = vmatprep.subr.bf16.mxu0 0
        %878 = vmatpush2.bf16.msra.mxu0 0
        %879 = vmatprep.subr.bf16.mxu0 0
        %880 = vmatpush2.bf16.msra.mxu0 0
        %881 = vmatprep.subr.bf16.mxu0 0
        %882 = vmatpush2.bf16.msra.mxu0 0
        %883 = vmatprep.subr.bf16.mxu0 0
        %884 = vmatpush2.bf16.msra.mxu0 0
        %885 = vmatprep.subr.bf16.mxu0 0
        %886 = vmatpush2.bf16.msra.mxu0 0
        %887 = vmatprep.subr.bf16.mxu0 0
        %888 = vmatpush2.bf16.msra.mxu0 0
        %889 = vmatprep.subr.bf16.mxu0 0
        %890 = vmatpush2.bf16.msra.mxu0 0
        %891 = vmatprep.mubr.bf16.mxu0 0
        %892 = vmatmul.mubr.bf16.gmra.mxu0 %v854
        %v893 = vpop.f32.mrf.mxu0
        %v894 = vadd.f32 0.0, %v893
        %v895 = vpop.f32.mrf.mxu0
        %v896 = vpop.f32.mrf.mxu0
        %v897 = vpop.f32.mrf.mxu0
        %898 = vdwg.mxu0
        %899 = vrot.lane.b32.xlu0 %v453, 100
        %v900 = vpop.permute.xlu0 %899
        %902 = vrot.lane.b32.xlu0 %v450, 108
        %v903 = vpop.permute.xlu0 %902
        %v905 = vsel %vm462, %v900, %v903
        %906 = vrot.lane.b32.xlu0 %v451, 24
        %v907 = vpop.permute.xlu0 %906
        %v909 = vmul.f32 %v450, %v907
        %v910 = vmul.f32 %v905, %v452
        %912 = vrot.lane.b32.xlu0 %v910, 24
        %v913 = vpop.permute.xlu0 %912
        %v915 = vadd.f32 %v909, %v913
        %v916 = vpack.c.bf16 %v915, %v915
        %917 = vrot.lane.b32.xlu0 %v468, 68
        %v918 = vpop.permute.xlu0 %917
        %920 = vrot.lane.b32.xlu0 %v445, 76
        %v921 = vpop.permute.xlu0 %920
        %v923 = vsel %vm462, %v918, %v921
        %924 = vrot.lane.b32.xlu0 %v451, 56
        %v925 = vpop.permute.xlu0 %924
        %v927 = vmul.f32 %v445, %v925
        %v928 = vmul.f32 %v923, %v452
        %930 = vrot.lane.b32.xlu0 %v928, 56
        %v931 = vpop.permute.xlu0 %930
        %v933 = vadd.f32 %v927, %v931
        %v934 = vpack.c.bf16 %v933, %v933
        %936 = vrot.lane.b32.xlu0 %v916, 104
        %v937 = vpop.permute.xlu0 %936
        %939 = vrot.lane.b32.xlu0 %v934, 72
        %v940 = vpop.permute.xlu0 %939
        %v942 = vsel %vm494, %v937, 0
        %v945 = vsel %vm494, %v940, 0
        %947 = vmatprep.subr.bf16.mxu0 0
        %948 = vmatpush1.bf16.xpose.msra.mxu0 0
        %949 = vmatprep.subr.bf16.mxu0 0
        %950 = vmatpush1.bf16.xpose.msra.mxu0 0
        %951 = vmatprep.subr.bf16.mxu0 0
        %952 = vmatpush1.bf16.xpose.msra.mxu0 0
        %953 = vmatprep.subr.bf16.mxu0 0
        %954 = vmatpush1.bf16.xpose.msra.mxu0 0
        %955 = vmatprep.subr.bf16.mxu0 0
        %956 = vmatpush1.bf16.xpose.msra.mxu0 0
        %957 = vmatprep.subr.bf16.mxu0 0
        %958 = vmatpush1.bf16.xpose.msra.mxu0 0
        %959 = vmatprep.subr.bf16.mxu0 0
        %960 = vmatpush1.bf16.xpose.msra.mxu0 0
        %961 = vmatprep.subr.bf16.mxu0 0
        %962 = vmatpush1.bf16.xpose.msra.mxu0 %v945
        %963 = vmatprep.subr.bf16.mxu0 0
        %964 = vmatpush2.bf16.xpose.msra.mxu0 0
        %965 = vmatprep.subr.bf16.mxu0 0
        %966 = vmatpush2.bf16.xpose.msra.mxu0 0
        %967 = vmatprep.subr.bf16.mxu0 0
        %968 = vmatpush2.bf16.xpose.msra.mxu0 0
        %969 = vmatprep.subr.bf16.mxu0 0
        %970 = vmatpush2.bf16.xpose.msra.mxu0 0
        %971 = vmatprep.subr.bf16.mxu0 0
        %972 = vmatpush2.bf16.xpose.msra.mxu0 0
        %973 = vmatprep.subr.bf16.mxu0 0
        %974 = vmatpush2.bf16.xpose.msra.mxu0 0
        %975 = vmatprep.subr.bf16.mxu0 0
        %976 = vmatpush2.bf16.xpose.msra.mxu0 0
        %977 = vmatprep.subr.bf16.mxu0 0
        %978 = vmatpush2.bf16.xpose.msra.mxu0 0
        %979 = vmatprep.mubr.bf16.mxu0 0
        %980 = vmatmul.mubr.bf16.gmra.mxu0 %v942
        %v981 = vpop.f32.mrf.mxu0
        %v982 = vadd.f32 0.0, %v981
        %v983 = vpop.f32.mrf.mxu0
        %v984 = vpop.f32.mrf.mxu0
        %v985 = vpop.f32.mrf.mxu0
        %986 = vdwg.mxu0
        %v987 = vsel %vm494, %v982, -inf
        %988 = vmax.xlane.f32.xlu0 %v987
        %v989 = vpop.xlane.xlu0 %988
        %v990 = vsub.f32 %v982, %v989
        %v991 = vmul.f32 %v990, 1.442695
        %v992 = vpow.pop %v991
        %v993 = vsel %vm494, %v992, 0.0
        %994 = vadd.xlane.f32.xlu0 %v993
        %v995 = vpop.xlane.xlu0 %994
        %v996 = vrcp.pop %v995
        %v997 = vmul.f32 %v992, %v996
        %v998 = vpack.c.bf16 %v997, %v997
        %999 = vrot.lane.b32.xlu0 %v490, 40
        %v1000 = vpop.permute.xlu0 %999
        %v1002 = vsel %vm494, %v998, 0
        %v1005 = vsel %vm559, %v1000, 0
        %1007 = vmatprep.subr.bf16.mxu0 0
        %1008 = vmatpush1.bf16.msra.mxu0 0
        %1009 = vmatprep.subr.bf16.mxu0 0
        %1010 = vmatpush1.bf16.msra.mxu0 0
        %1011 = vmatprep.subr.bf16.mxu0 0
        %1012 = vmatpush1.bf16.msra.mxu0 0
        %1013 = vmatprep.subr.bf16.mxu0 0
        %1014 = vmatpush1.bf16.msra.mxu0 0
        %1015 = vmatprep.subr.bf16.mxu0 0
        %1016 = vmatpush1.bf16.msra.mxu0 0
        %1017 = vmatprep.subr.bf16.mxu0 0
        %1018 = vmatpush1.bf16.msra.mxu0 0
        %1019 = vmatprep.subr.bf16.mxu0 0
        %1020 = vmatpush1.bf16.msra.mxu0 0
        %1021 = vmatprep.subr.bf16.mxu0 0
        %1022 = vmatpush1.bf16.msra.mxu0 %v1005
        %1023 = vmatprep.subr.bf16.mxu0 0
        %1024 = vmatpush2.bf16.msra.mxu0 0
        %1025 = vmatprep.subr.bf16.mxu0 0
        %1026 = vmatpush2.bf16.msra.mxu0 0
        %1027 = vmatprep.subr.bf16.mxu0 0
        %1028 = vmatpush2.bf16.msra.mxu0 0
        %1029 = vmatprep.subr.bf16.mxu0 0
        %1030 = vmatpush2.bf16.msra.mxu0 0
        %1031 = vmatprep.subr.bf16.mxu0 0
        %1032 = vmatpush2.bf16.msra.mxu0 0
        %1033 = vmatprep.subr.bf16.mxu0 0
        %1034 = vmatpush2.bf16.msra.mxu0 0
        %1035 = vmatprep.subr.bf16.mxu0 0
        %1036 = vmatpush2.bf16.msra.mxu0 0
        %1037 = vmatprep.subr.bf16.mxu0 0
        %1038 = vmatpush2.bf16.msra.mxu0 0
        %1039 = vmatprep.mubr.bf16.mxu0 0
        %1040 = vmatmul.mubr.bf16.gmra.mxu0 %v1002
        %v1041 = vpop.f32.mrf.mxu0
        %v1042 = vadd.f32 0.0, %v1041
        %v1043 = vpop.f32.mrf.mxu0
        %v1044 = vpop.f32.mrf.mxu0
        %v1045 = vpop.f32.mrf.mxu0
        %1046 = vdwg.mxu0
        %1048 = vrot.lane.b32.xlu0 %v746, 8
        %v1049 = vpop.permute.xlu0 %1048
        %1052 = vrot.lane.b32.xlu0 %v894, 16
        %v1053 = vpop.permute.xlu0 %1052
        %1056 = vrot.lane.b32.xlu0 %v1042, 24
        %v1057 = vpop.permute.xlu0 %1056
        %v1059 = vsel %vm494, %v598, %v1049
        %vm1060 = vcmask 130048
        %v1061 = vsel %vm1060, %v1059, %v1053
        %vm1062 = vcmask 195584
        %v1063 = vsel %vm1062, %v1061, %v1057
        %v1064 = vpack.c.bf16 %v1063, %v1063
        %v1065 = vld [vmem:[#allocation5] sm:$0xf]
        %v1066 = vld [vmem:[#allocation5 + $0x4] sm:$0xf]
        %v1067 = vld [vmem:[#allocation5 + $0x8] sm:$0xf]
        %v1068 = vld [vmem:[#allocation5 + $0xc] sm:$0xf]
        %v1073 = vunpack.c.l.b16 %v1065
        %v1074 = vunpack.c.l.b16 %v1066
        %v1075 = vunpack.c.l.b16 %v1067
        %v1076 = vunpack.c.l.b16 %v1068
        %v1077 = vpack.c.b16 %v1074, %v1073
        %v1078 = vpack.c.b16 %v1076, %v1075
        %v1082 = vsel %vm373, %v1064, 0
        %1084 = vmatprep.subr.bf16.mxu0 0
        %1085 = vmatpush1.bf16.msra.mxu0 0
        %1086 = vmatprep.subr.bf16.mxu0 0
        %1087 = vmatpush1.bf16.msra.mxu0 0
        %1088 = vmatprep.subr.bf16.mxu0 0
        %1089 = vmatpush1.bf16.msra.mxu0 0
        %1090 = vmatprep.subr.bf16.mxu0 0
        %1091 = vmatpush1.bf16.msra.mxu0 0
        %1092 = vmatprep.subr.bf16.mxu0 0
        %1093 = vmatpush1.bf16.msra.mxu0 0
        %1094 = vmatprep.subr.bf16.mxu0 0
        %1095 = vmatpush1.bf16.msra.mxu0 0
        %1096 = vmatprep.subr.bf16.mxu0 0
        %1097 = vmatpush1.bf16.msra.mxu0 %v1078
        %1098 = vmatprep.subr.bf16.mxu0 0
        %1099 = vmatpush1.bf16.msra.mxu0 %v1077
        %1100 = vmatprep.subr.bf16.mxu0 0
        %1101 = vmatpush2.bf16.msra.mxu0 0
        %1102 = vmatprep.subr.bf16.mxu0 0
        %1103 = vmatpush2.bf16.msra.mxu0 0
        %1104 = vmatprep.subr.bf16.mxu0 0
        %1105 = vmatpush2.bf16.msra.mxu0 0
        %1106 = vmatprep.subr.bf16.mxu0 0
        %1107 = vmatpush2.bf16.msra.mxu0 0
        %1108 = vmatprep.subr.bf16.mxu0 0
        %1109 = vmatpush2.bf16.msra.mxu0 0
        %1110 = vmatprep.subr.bf16.mxu0 0
        %1111 = vmatpush2.bf16.msra.mxu0 0
        %1112 = vmatprep.subr.bf16.mxu0 0
        %1113 = vmatpush2.bf16.msra.mxu0 0
        %1114 = vmatprep.subr.bf16.mxu0 0
        %1115 = vmatpush2.bf16.msra.mxu0 0
        %1116 = vmatprep.mubr.bf16.mxu0 0
        %1117 = vmatmul.mubr.bf16.gmra.mxu0 %v1082
        %v1118 = vpop.f32.mrf.mxu0
        %v1119 = vadd.f32 0.0, %v1118
        %v1120 = vpop.f32.mrf.mxu0
        %v1121 = vpop.f32.mrf.mxu0
        %v1122 = vpop.f32.mrf.mxu0
        %1123 = vdwg.mxu0
        %v1124 = vadd.f32 %v371, %v1119
        %v1125 = vmul.f32 %v1124, %v1124
        %v1126 = vsel %vm373, %v1125, 0.0
        %1127 = vadd.xlane.f32.xlu0 %v1126
        %v1128 = vpop.xlane.xlu0 %1127
        %v1129 = vmul.f32 %v1128, %v377
        %v1130 = vadd.f32 %v1129, 1e-06
        %v1131 = vrsqrt.pop %v1130
        %v1132 = vmul.f32 %v1124, %v1131
        %v1133 = vld [vmem:[%s6] sm:$0x1]
        %v1135 = vlaneseq
        %v1136 = vshrl.u32 %v1135, 7
        %v1137 = vsub.s32 0, %v1136
        %v1138 = vrot.slane %v1133, %v1137
        %v1140 = vmul.f32 %v1132, %v1138
        %v1141 = vpack.c.bf16 %v1140, %v1140
        %v1142 = vld [vmem:[%s3] sm:$0xf]
        %v1143 = vld [vmem:[%s3 + $0x4] sm:$0xf]
        %v1144 = vld [vmem:[%s3 + $0x8] sm:$0xf]
        %v1145 = vld [vmem:[%s3 + $0xc] sm:$0xf]
        %v1150 = vunpack.c.l.b16 %v1142
        %v1151 = vunpack.c.l.b16 %v1143
        %v1152 = vunpack.c.l.b16 %v1144
        %v1153 = vunpack.c.l.b16 %v1145
        %v1154 = vpack.c.b16 %v1151, %v1150
        %v1155 = vpack.c.b16 %v1153, %v1152
        %v1159 = vsel %vm373, %v1141, 0
        %1161 = vmatprep.subr.bf16.mxu0 0
        %1162 = vmatpush1.bf16.msra.mxu0 0
        %1163 = vmatprep.subr.bf16.mxu0 0
        %1164 = vmatpush1.bf16.msra.mxu0 0
        %1165 = vmatprep.subr.bf16.mxu0 0
        %1166 = vmatpush1.bf16.msra.mxu0 0
        %1167 = vmatprep.subr.bf16.mxu0 0
        %1168 = vmatpush1.bf16.msra.mxu0 0
        %1169 = vmatprep.subr.bf16.mxu0 0
        %1170 = vmatpush1.bf16.msra.mxu0 0
        %1171 = vmatprep.subr.bf16.mxu0 0
        %1172 = vmatpush1.bf16.msra.mxu0 0
        %1173 = vmatprep.subr.bf16.mxu0 0
        %1174 = vmatpush1.bf16.msra.mxu0 %v1155
        %1175 = vmatprep.subr.bf16.mxu0 0
        %1176 = vmatpush1.bf16.msra.mxu0 %v1154
        %1177 = vmatprep.subr.bf16.mxu0 0
        %1178 = vmatpush2.bf16.msra.mxu0 0
        %1179 = vmatprep.subr.bf16.mxu0 0
        %1180 = vmatpush2.bf16.msra.mxu0 0
        %1181 = vmatprep.subr.bf16.mxu0 0
        %1182 = vmatpush2.bf16.msra.mxu0 0
        %1183 = vmatprep.subr.bf16.mxu0 0
        %1184 = vmatpush2.bf16.msra.mxu0 0
        %1185 = vmatprep.subr.bf16.mxu0 0
        %1186 = vmatpush2.bf16.msra.mxu0 0
        %1187 = vmatprep.subr.bf16.mxu0 0
        %1188 = vmatpush2.bf16.msra.mxu0 0
        %1189 = vmatprep.subr.bf16.mxu0 0
        %1190 = vmatpush2.bf16.msra.mxu0 0
        %1191 = vmatprep.subr.bf16.mxu0 0
        %1192 = vmatpush2.bf16.msra.mxu0 0
        %1193 = vmatprep.mubr.bf16.mxu0 0
        %1194 = vmatmul.mubr.bf16.gmra.mxu0 %v1159
        %v1195 = vpop.f32.mrf.mxu0
        %v1196 = vadd.f32 0.0, %v1195
        %v1197 = vpop.f32.mrf.mxu0
        %v1198 = vpop.f32.mrf.mxu0
        %v1199 = vpop.f32.mrf.mxu0
        %1200 = vdwg.mxu0
        %s1201 = scalar_lea.vmem %s3, 16
        %v1202 = vld [vmem:[%s1201] sm:$0xf]
        %v1203 = vld [vmem:[%s1201 + $0x4] sm:$0xf]
        %v1204 = vld [vmem:[%s1201 + $0x8] sm:$0xf]
        %v1205 = vld [vmem:[%s1201 + $0xc] sm:$0xf]
        %v1210 = vunpack.c.l.b16 %v1202
        %v1211 = vunpack.c.l.b16 %v1203
        %v1212 = vunpack.c.l.b16 %v1204
        %v1213 = vunpack.c.l.b16 %v1205
        %v1214 = vpack.c.b16 %v1211, %v1210
        %v1215 = vpack.c.b16 %v1213, %v1212
        %1218 = vmatprep.subr.bf16.mxu0 0
        %1219 = vmatpush1.bf16.msra.mxu0 0
        %1220 = vmatprep.subr.bf16.mxu0 0
        %1221 = vmatpush1.bf16.msra.mxu0 0
        %1222 = vmatprep.subr.bf16.mxu0 0
        %1223 = vmatpush1.bf16.msra.mxu0 0
        %1224 = vmatprep.subr.bf16.mxu0 0
        %1225 = vmatpush1.bf16.msra.mxu0 0
        %1226 = vmatprep.subr.bf16.mxu0 0
        %1227 = vmatpush1.bf16.msra.mxu0 0
        %1228 = vmatprep.subr.bf16.mxu0 0
        %1229 = vmatpush1.bf16.msra.mxu0 0
        %1230 = vmatprep.subr.bf16.mxu0 0
        %1231 = vmatpush1.bf16.msra.mxu0 %v1215
        %1232 = vmatprep.subr.bf16.mxu0 0
        %1233 = vmatpush1.bf16.msra.mxu0 %v1214
        %1234 = vmatprep.subr.bf16.mxu0 0
        %1235 = vmatpush2.bf16.msra.mxu0 0
        %1236 = vmatprep.subr.bf16.mxu0 0
        %1237 = vmatpush2.bf16.msra.mxu0 0
        %1238 = vmatprep.subr.bf16.mxu0 0
        %1239 = vmatpush2.bf16.msra.mxu0 0
        %1240 = vmatprep.subr.bf16.mxu0 0
        %1241 = vmatpush2.bf16.msra.mxu0 0
        %1242 = vmatprep.subr.bf16.mxu0 0
        %1243 = vmatpush2.bf16.msra.mxu0 0
        %1244 = vmatprep.subr.bf16.mxu0 0
        %1245 = vmatpush2.bf16.msra.mxu0 0
        %1246 = vmatprep.subr.bf16.mxu0 0
        %1247 = vmatpush2.bf16.msra.mxu0 0
        %1248 = vmatprep.subr.bf16.mxu0 0
        %1249 = vmatpush2.bf16.msra.mxu0 0
        %1250 = vmatprep.mubr.bf16.mxu0 0
        %1251 = vmatmul.mubr.bf16.gmra.mxu0 %v1159
        %v1252 = vpop.f32.mrf.mxu0
        %v1253 = vadd.f32 0.0, %v1252
        %v1254 = vpop.f32.mrf.mxu0
        %v1255 = vpop.f32.mrf.mxu0
        %v1256 = vpop.f32.mrf.mxu0
        %1257 = vdwg.mxu0
        %v1258 = vxor.u32 %v1196, 2147483648
        %v1259 = vmul.f32 %v1258, 1.442695
        %v1260 = vpow.pop %v1259
        %v1261 = vadd.f32 %v1260, 1.0
        %v1262 = vrcp.pop %v1261
        %v1263 = vmul.f32 1.0, %v1262
        %v1264 = vmul.f32 %v1196, %v1263
        %v1265 = vmul.f32 %v1264, %v1253
        %v1266 = vpack.c.bf16 %v1265, %v1265
        %v1267 = vld [vmem:[%s4] sm:$0xf]
        %v1268 = vld [vmem:[%s4 + $0x4] sm:$0xf]
        %v1269 = vld [vmem:[%s4 + $0x8] sm:$0xf]
        %v1270 = vld [vmem:[%s4 + $0xc] sm:$0xf]
        %v1271 = vld [vmem:[%s4 + $0x10] sm:$0xf]
        %v1272 = vld [vmem:[%s4 + $0x14] sm:$0xf]
        %v1273 = vld [vmem:[%s4 + $0x18] sm:$0xf]
        %v1274 = vld [vmem:[%s4 + $0x1c] sm:$0xf]
        %v1283 = vunpack.c.l.b16 %v1267
        %v1284 = vunpack.c.l.b16 %v1268
        %v1285 = vunpack.c.l.b16 %v1269
        %v1286 = vunpack.c.l.b16 %v1270
        %v1287 = vunpack.c.l.b16 %v1271
        %v1288 = vunpack.c.l.b16 %v1272
        %v1289 = vunpack.c.l.b16 %v1273
        %v1290 = vunpack.c.l.b16 %v1274
        %v1291 = vpack.c.b16 %v1284, %v1283
        %v1292 = vpack.c.b16 %v1286, %v1285
        %v1293 = vpack.c.b16 %v1288, %v1287
        %v1294 = vpack.c.b16 %v1290, %v1289
        %vm1299 = vcmask 523264
        %v1301 = vsel %vm1299, %v1266, 0
        %1303 = vmatprep.subr.bf16.mxu0 0
        %1304 = vmatpush1.bf16.msra.mxu0 0
        %1305 = vmatprep.subr.bf16.mxu0 0
        %1306 = vmatpush1.bf16.msra.mxu0 0
        %1307 = vmatprep.subr.bf16.mxu0 0
        %1308 = vmatpush1.bf16.msra.mxu0 0
        %1309 = vmatprep.subr.bf16.mxu0 0
        %1310 = vmatpush1.bf16.msra.mxu0 0
        %1311 = vmatprep.subr.bf16.mxu0 0
        %1312 = vmatpush1.bf16.msra.mxu0 %v1294
        %1313 = vmatprep.subr.bf16.mxu0 0
        %1314 = vmatpush1.bf16.msra.mxu0 %v1293
        %1315 = vmatprep.subr.bf16.mxu0 0
        %1316 = vmatpush1.bf16.msra.mxu0 %v1292
        %1317 = vmatprep.subr.bf16.mxu0 0
        %1318 = vmatpush1.bf16.msra.mxu0 %v1291
        %1319 = vmatprep.subr.bf16.mxu0 0
        %1320 = vmatpush2.bf16.msra.mxu0 0
        %1321 = vmatprep.subr.bf16.mxu0 0
        %1322 = vmatpush2.bf16.msra.mxu0 0
        %1323 = vmatprep.subr.bf16.mxu0 0
        %1324 = vmatpush2.bf16.msra.mxu0 0
        %1325 = vmatprep.subr.bf16.mxu0 0
        %1326 = vmatpush2.bf16.msra.mxu0 0
        %1327 = vmatprep.subr.bf16.mxu0 0
        %1328 = vmatpush2.bf16.msra.mxu0 0
        %1329 = vmatprep.subr.bf16.mxu0 0
        %1330 = vmatpush2.bf16.msra.mxu0 0
        %1331 = vmatprep.subr.bf16.mxu0 0
        %1332 = vmatpush2.bf16.msra.mxu0 0
        %1333 = vmatprep.subr.bf16.mxu0 0
        %1334 = vmatpush2.bf16.msra.mxu0 0
        %1335 = vmatprep.mubr.bf16.mxu0 0
        %1336 = vmatmul.mubr.bf16.gmra.mxu0 %v1301
        %v1337 = vpop.f32.mrf.mxu0
        %v1338 = vadd.f32 0.0, %v1337
        %v1339 = vpop.f32.mrf.mxu0
        %v1340 = vpop.f32.mrf.mxu0
        %v1341 = vpop.f32.mrf.mxu0
        %1342 = vdwg.mxu0
        %v1343 = vadd.f32 %v1124, %v1338
        %1344 = vst.msk [vmem:[%s365] sm:$0xff] %vm373, %v1343
        %s1345 = sand.u32 %s227, 1
        %s1346 = scalar_lea.sflag [#allocation4], %s1345
        %s1347 = sand.u32 %s227, 1
        %s1348 = smul.addr %s1347, 8
        %s1349 = scalar_lea.vmem [#allocation8], %s1348
        // Predicated region
        $region69: #{tpu_custom_call.1} parent=55 // pred_check
          %p1350 = pneg %p237
        $region70: #{tpu_custom_call.1} parent=55 // pred_check_branch
          %1352 = sbr.rel (%p1350) target = $region72
        $region71: #{tpu_custom_call.1} parent=55 // pred_region
          %s1354 = ssub.s32 128, 128
          %1355 = vsyncadd %s1346, %s1354
          %s1356 = smul.addr %s25, 128
          %s1357 = scalar_lea.hbm %s9, %s1356
          %s1359 = sshll.u32 %s1349, 4
          %s1360 = int_to_ptr.vmem [resolvable:$true] %s1359
          %1362 = dma.vmem_to_hbm [thread:$0]  %s1360, 128, %s1357, %s1346
        $region72: #{tpu_custom_call.1} parent=55 // pred_fallthru
          _
      $region56: #{tpu_custom_call.1} parent=5 // pred_fallthru
        _
      %p1363 = scmp.le.s32.totalorder 2, %s20
      // Predicated region
      $region73: #{tpu_custom_call.1} parent=5 // pred_check
        %p1364 = pneg %p1363
      $region74: #{tpu_custom_call.1} parent=5 // pred_check_branch
        %1366 = sbr.rel (%p1364) target = $region76
      $region75: #{tpu_custom_call.1} parent=5 // pred_region
        %s1367 = ssub.s32 %s20, 2
        // Predicated region
        $region77: #{tpu_custom_call.1} parent=75 // pred_check
          %p1368 = pneg %p243
        $region78: #{tpu_custom_call.1} parent=75 // pred_check_branch
          %1370 = sbr.rel (%p1368) target = $region80
        $region79: #{tpu_custom_call.1} parent=75 // pred_region
          %s1371 = sand.u32 %s228, 1
          %s1372 = scalar_lea.sflag [#allocation4], %s1371
          %s1373 = sand.u32 %s228, 1
          %s1374 = smul.addr %s1373, 8
          %s1375 = scalar_lea.vmem [#allocation8], %s1374
          %1376 = dma.done %s1372, 128
        $region80: #{tpu_custom_call.1} parent=75 // pred_fallthru
          _
      $region76: #{tpu_custom_call.1} parent=5 // pred_fallthru
        _
    $region6: #{tpu_custom_call.1} parent=1 // loop_footer
      %s24 = sadd.s32 1, %s20
    $region7: #{tpu_custom_call.1} parent=1 // loop_footer_branch
      %19 = sbr.rel target = $region3
    $region8: #{tpu_custom_call.1} parent=1 // loop_exit
      _
    %1377 = vsyncpa [#allocation3], 1
    %s1378 = scalar_lea.sflag [#allocation3], 1
    %1379 = vsyncpa %s1378, 1
    %1380 = vsyncpa [#allocation6], 1
    %1381 = vsyncpa [#allocation4], 1
    %s1382 = scalar_lea.sflag [#allocation4], 1
    %1383 = vsyncpa %s1382, 1

// kernel: tpu_custom_call.1
$region0: #{tpu_custom_call.1}
  #allocation0 [shape = 'u32[]', space=smem, size = 0x4, offset = 0x4, fixed_abs, tag = 'smem constant byte address 0x4 - core index']
  #allocation1 [shape = 'u32[144,128]{1,0:T(1,128)}', space=vmem, size = 0x12000, scoped, tag = 'internal scratch']
  %s0 = inlined_call_operand.vmem [shape: f32[2,8,32], index: 0, kind: input, shape index: {}]
  %s1 = inlined_call_operand.hbm [shape: bf16[32,96], index: 1, kind: input, shape index: {}]
  %s2 = inlined_call_operand.hbm [shape: bf16[32,32], index: 2, kind: input, shape index: {}]
  %s3 = inlined_call_operand.vmem [shape: bf16[2,32,64], index: 3, kind: input, shape index: {}]
  %s4 = inlined_call_operand.vmem [shape: bf16[64,32], index: 4, kind: input, shape index: {}]
  %s5 = inlined_call_operand.vmem [shape: f32[1,32], index: 5, kind: input, shape index: {}]
  %s6 = inlined_call_operand.vmem [shape: f32[1,32], index: 6, kind: input, shape index: {}]
  %s7 = inlined_call_operand.vmem [shape: f32[8,8], index: 7, kind: input, shape index: {}]
  %s8 = inlined_call_operand.hbm [shape: f32[8,8], index: 8, kind: input, shape index: {}]
  %s9 = inlined_call_operand.hbm [shape: f32[2,8,32], index: 9, kind: output, shape index: {}]
  %s10 = sld [smem:[#allocation0]]
  $region81: #{tpu_custom_call.1} parent=0
    _
  %s12 = ssub.s32 1, %s10
  %s13 = scalar_select 0, %s12, %s10
  $region1: #{tpu_custom_call.1} parent=0
    #allocation2 [shape = 'u8[8192]{0}', space=vmem, size = 0x2000, scoped, tag = 'input window, operand 1, single buffered']
    #allocation3 [shape = 's32[2]{0}', space=sflag, size = 0x8, scoped, tag = 'scoped memory for tpu_custom_call.1']
    #allocation4 [shape = 's32[2]{0}', space=sflag, size = 0x8, scoped, tag = 'scoped memory for tpu_custom_call.1']
    #allocation5 [shape = 'u8[8192]{0}', space=vmem, size = 0x2000, scoped, tag = 'input window, operand 2, single buffered']
    #allocation6 [shape = 's32[1]{0}', space=sflag, size = 0x4, scoped, tag = 'scoped memory for tpu_custom_call.1']
    #allocation7 [shape = 'u8[4096]{0}', space=vmem, size = 0x1000, scoped, tag = 'input window, operand 8, single buffered']
    #allocation8 [shape = 'u8[8192]{0}', space=vmem, size = 0x2000, scoped, tag = 'output window, operand 0']
    %14 = vsyncpa [#allocation3], 0
    %15 = vsyncpa [#allocation6], 0
    %16 = vsyncpa [#allocation4], 0
    %s17 = scalar_lea.sflag [#allocation4], 1
    %18 = vsyncpa %s17, 0
    loop: start=0, step=1, limit=4
    $region2: #{tpu_custom_call.1} parent=1 // loop_pre_header
      _
    $region3: #{tpu_custom_call.1} parent=1 // loop_header
      %s20 = sphi 0, %s24
      %p21 = scmp.ge.s32.totalorder %s20, 4
      %s30 = sphi 0, %s32
      %s33 = sphi 0, %s30
      %s34 = sphi 0, %s33
      %s50 = sphi 0, %s34
      %s54 = sphi 0, %s54
      %s56 = sphi 0, %s54
      %s57 = sphi 0, %s56
      %s71 = sphi 0, %s57
      %s75 = sphi 0, %s75
      %s77 = sphi 0, %s75
      %s78 = sphi 0, %s77
      %s92 = sphi 0, %s78
      %s96 = sphi 0, %s96
      %s98 = sphi 0, %s96
      %s99 = sphi 0, %s98
      %s113 = sphi 0, %s99
      %s117 = sphi 0, %s117
      %s119 = sphi 0, %s117
      %s120 = sphi 0, %s119
      %s134 = sphi 0, %s120
      %s138 = sphi 0, %s138
      %s140 = sphi 0, %s138
      %s141 = sphi 0, %s140
      %s155 = sphi 0, %s141
      %s159 = sphi 0, %s159
      %s161 = sphi 0, %s159
      %s162 = sphi 0, %s161
      %s176 = sphi 0, %s162
      %s180 = sphi 0, %s180
      %s182 = sphi 0, %s180
      %s183 = sphi 0, %s182
      %s197 = sphi 0, %s183
      %s201 = sphi 0, %s201
      %s203 = sphi 0, %s201
      %s204 = sphi 0, %s203
      %s218 = sphi 0, %s204
      %s224 = sphi 0, %s226
      %s227 = sphi 0, %s224
      %s228 = sphi 0, %s227
      %s244 = sphi 0, %s228
    $region4: #{tpu_custom_call.1} parent=1 // loop_header_branch
      %23 = sbr.rel (%p21) target = $region8
    $region5: #{tpu_custom_call.1} parent=1 // loop_body
      %s25 = ssub.s32 %s20, 1
      %s26 = ssub.s32 %s20, 2
      %s27 = sadd.s32 %s20, 1
      %s28 = ssub.s32 %s20, %s27
      %p29 = scmp.eq.s32.totalorder %s28, 0
      %s31 = sadd.s32 %s30, 1
      %s32 = scalar_select %p29, %s30, %s31
      %p35 = pneg %p29
      %p36 = scmp.eq.s32.totalorder %s20, 1
      %p37 = por %p35, %p36
      %p38 = scmp.ne.s32.totalorder %s30, %s33
      %p39 = scmp.eq.s32.totalorder %s20, 0
      %p40 = por %p38, %p39
      %p41 = scmp.ne.s32.totalorder %s30, %s33
      %p42 = scmp.eq.s32.totalorder %s25, 1
      %p43 = por %p41, %p42
      %p44 = scmp.ne.s32.totalorder %s33, %s34
      %p45 = scmp.eq.s32.totalorder %s25, 0
      %p46 = por %p44, %p45
      %p47 = scmp.ne.s32.totalorder %s33, %s34
      %p48 = scmp.eq.s32.totalorder %s26, 1
      %p49 = por %p47, %p48
      %p51 = scmp.ne.s32.totalorder %s34, %s50
      %p52 = scmp.eq.s32.totalorder %s26, 0
      %p53 = por %p51, %p52
      %s55 = sadd.s32 %s54, 1
      %p58 = scmp.eq.s32.totalorder %s20, 1
      %p59 = scmp.ne.s32.totalorder %s54, %s56
      %p60 = scmp.eq.s32.totalorder %s20, 0
      %p61 = por %p59, %p60
      %p62 = scmp.ne.s32.totalorder %s54, %s56
      %p63 = scmp.eq.s32.totalorder %s25, 1
      %p64 = por %p62, %p63
      %p65 = scmp.ne.s32.totalorder %s56, %s57
      %p66 = scmp.eq.s32.totalorder %s25, 0
      %p67 = por %p65, %p66
      %p68 = scmp.ne.s32.totalorder %s56, %s57
      %p69 = scmp.eq.s32.totalorder %s26, 1
      %p70 = por %p68, %p69
      %p72 = scmp.ne.s32.totalorder %s57, %s71
      %p73 = scmp.eq.s32.totalorder %s26, 0
      %p74 = por %p72, %p73
      %s76 = sadd.s32 %s75, 1
      %p79 = scmp.eq.s32.totalorder %s20, 1
      %p80 = scmp.ne.s32.totalorder %s75, %s77
      %p81 = scmp.eq.s32.totalorder %s20, 0
      %p82 = por %p80, %p81
      %p83 = scmp.ne.s32.totalorder %s75, %s77
      %p84 = scmp.eq.s32.totalorder %s25, 1
      %p85 = por %p83, %p84
      %p86 = scmp.ne.s32.totalorder %s77, %s78
      %p87 = scmp.eq.s32.totalorder %s25, 0
      %p88 = por %p86, %p87
      %p89 = scmp.ne.s32.totalorder %s77, %s78
      %p90 = scmp.eq.s32.totalorder %s26, 1
      %p91 = por %p89, %p90
      %p93 = scmp.ne.s32.totalorder %s78, %s92
      %p94 = scmp.eq.s32.totalorder %s26, 0
      %p95 = por %p93, %p94
      %s97 = sadd.s32 %s96, 1
      %p100 = scmp.eq.s32.totalorder %s20, 1
      %p101 = scmp.ne.s32.totalorder %s96, %s98
      %p102 = scmp.eq.s32.totalorder %s20, 0
      %p103 = por %p101, %p102
      %p104 = scmp.ne.s32.totalorder %s96, %s98
      %p105 = scmp.eq.s32.totalorder %s25, 1
      %p106 = por %p104, %p105
      %p107 = scmp.ne.s32.totalorder %s98, %s99
      %p108 = scmp.eq.s32.totalorder %s25, 0
      %p109 = por %p107, %p108
      %p110 = scmp.ne.s32.totalorder %s98, %s99
      %p111 = scmp.eq.s32.totalorder %s26, 1
      %p112 = por %p110, %p111
      %p114 = scmp.ne.s32.totalorder %s99, %s113
      %p115 = scmp.eq.s32.totalorder %s26, 0
      %p116 = por %p114, %p115
      %s118 = sadd.s32 %s117, 1
      %p121 = scmp.eq.s32.totalorder %s20, 1
      %p122 = scmp.ne.s32.totalorder %s117, %s119
      %p123 = scmp.eq.s32.totalorder %s20, 0
      %p124 = por %p122, %p123
      %p125 = scmp.ne.s32.totalorder %s117, %s119
      %p126 = scmp.eq.s32.totalorder %s25, 1
      %p127 = por %p125, %p126
      %p128 = scmp.ne.s32.totalorder %s119, %s120
      %p129 = scmp.eq.s32.totalorder %s25, 0
      %p130 = por %p128, %p129
      %p131 = scmp.ne.s32.totalorder %s119, %s120
      %p132 = scmp.eq.s32.totalorder %s26, 1
      %p133 = por %p131, %p132
      %p135 = scmp.ne.s32.totalorder %s120, %s134
      %p136 = scmp.eq.s32.totalorder %s26, 0
      %p137 = por %p135, %p136
      %s139 = sadd.s32 %s138, 1
      %p142 = scmp.eq.s32.totalorder %s20, 1
      %p143 = scmp.ne.s32.totalorder %s138, %s140
      %p144 = scmp.eq.s32.totalorder %s20, 0
      %p145 = por %p143, %p144
      %p146 = scmp.ne.s32.totalorder %s138, %s140
      %p147 = scmp.eq.s32.totalorder %s25, 1
      %p148 = por %p146, %p147
      %p149 = scmp.ne.s32.totalorder %s140, %s141
      %p150 = scmp.eq.s32.totalorder %s25, 0
      %p151 = por %p149, %p150
      %p152 = scmp.ne.s32.totalorder %s140, %s141
      %p153 = scmp.eq.s32.totalorder %s26, 1
      %p154 = por %p152, %p153
      %p156 = scmp.ne.s32.totalorder %s141, %s155
      %p157 = scmp.eq.s32.totalorder %s26, 0
      %p158 = por %p156, %p157
      %s160 = sadd.s32 %s159, 1
      %p163 = scmp.eq.s32.totalorder %s20, 1
      %p164 = scmp.ne.s32.totalorder %s159, %s161
      %p165 = scmp.eq.s32.totalorder %s20, 0
      %p166 = por %p164, %p165
      %p167 = scmp.ne.s32.totalorder %s159, %s161
      %p168 = scmp.eq.s32.totalorder %s25, 1
      %p169 = por %p167, %p168
      %p170 = scmp.ne.s32.totalorder %s161, %s162
      %p171 = scmp.eq.s32.totalorder %s25, 0
      %p172 = por %p170, %p171
      %p173 = scmp.ne.s32.totalorder %s161, %s162
      %p174 = scmp.eq.s32.totalorder %s26, 1
      %p175 = por %p173, %p174
      %p177 = scmp.ne.s32.totalorder %s162, %s176
      %p178 = scmp.eq.s32.totalorder %s26, 0
      %p179 = por %p177, %p178
      %s181 = sadd.s32 %s180, 1
      %p184 = scmp.eq.s32.totalorder %s20, 1
      %p185 = scmp.ne.s32.totalorder %s180, %s182
      %p186 = scmp.eq.s32.totalorder %s20, 0
      %p187 = por %p185, %p186
      %p188 = scmp.ne.s32.totalorder %s180, %s182
      %p189 = scmp.eq.s32.totalorder %s25, 1
      %p190 = por %p188, %p189
      %p191 = scmp.ne.s32.totalorder %s182, %s183
      %p192 = scmp.eq.s32.totalorder %s25, 0
      %p193 = por %p191, %p192
      %p194 = scmp.ne.s32.totalorder %s182, %s183
      %p195 = scmp.eq.s32.totalorder %s26, 1
      %p196 = por %p194, %p195
      %p198 = scmp.ne.s32.totalorder %s183, %s197
      %p199 = scmp.eq.s32.totalorder %s26, 0
      %p200 = por %p198, %p199
      %s202 = sadd.s32 %s201, 1
      %p205 = scmp.eq.s32.totalorder %s20, 1
      %p206 = scmp.ne.s32.totalorder %s201, %s203
      %p207 = scmp.eq.s32.totalorder %s20, 0
      %p208 = por %p206, %p207
      %p209 = scmp.ne.s32.totalorder %s201, %s203
      %p210 = scmp.eq.s32.totalorder %s25, 1
      %p211 = por %p209, %p210
      %p212 = scmp.ne.s32.totalorder %s203, %s204
      %p213 = scmp.eq.s32.totalorder %s25, 0
      %p214 = por %p212, %p213
      %p215 = scmp.ne.s32.totalorder %s203, %s204
      %p216 = scmp.eq.s32.totalorder %s26, 1
      %p217 = por %p215, %p216
      %p219 = scmp.ne.s32.totalorder %s204, %s218
      %p220 = scmp.eq.s32.totalorder %s26, 0
      %p221 = por %p219, %p220
      %s222 = ssub.s32 %s20, %s27
      %p223 = scmp.eq.s32.totalorder %s222, 0
      %s225 = sadd.s32 %s224, 1
      %s226 = scalar_select %p223, %s224, %s225
      %p229 = pneg %p223
      %p230 = scmp.eq.s32.totalorder %s20, 1
      %p231 = por %p229, %p230
      %p232 = scmp.ne.s32.totalorder %s224, %s227
      %p233 = scmp.eq.s32.totalorder %s20, 0
      %p234 = por %p232, %p233
      %p235 = scmp.ne.s32.totalorder %s224, %s227
      %p236 = scmp.eq.s32.totalorder %s25, 1
      %p237 = por %p235, %p236
      %p238 = scmp.ne.s32.totalorder %s227, %s228
      %p239 = scmp.eq.s32.totalorder %s25, 0
      %p240 = por %p238, %p239
      %p241 = scmp.ne.s32.totalorder %s227, %s228
      %p242 = scmp.eq.s32.totalorder %s26, 1
      %p243 = por %p241, %p242
      %p245 = scmp.ne.s32.totalorder %s228, %s244
      %p246 = scmp.eq.s32.totalorder %s26, 0
      %p247 = por %p245, %p246
      %p248 = scmp.le.s32.totalorder 1, %s20
      %p249 = scmp.lt.s32.totalorder %s20, 3
      %p250 = pnand %p248, %p249
      %p251 = pneg %p250
      // Predicated region
      $region9: #{tpu_custom_call.1} parent=5 // pred_check
        _
      $region10: #{tpu_custom_call.1} parent=5 // pred_check_branch
        %253 = sbr.rel (%p250) target = $region12
      $region11: #{tpu_custom_call.1} parent=5 // pred_region
        %s254 = ssub.s32 %s20, 1
        // Predicated region
        $region13: #{tpu_custom_call.1} parent=11 // pred_check
          %p255 = pneg %p67
        $region14: #{tpu_custom_call.1} parent=11 // pred_check_branch
          %257 = sbr.rel (%p255) target = $region16
        $region15: #{tpu_custom_call.1} parent=11 // pred_region
          %s259 = ssub.s32 256, 256
          %260 = vsyncadd [#allocation3], %s259
          %s261 = sshll.u32 [#allocation2], 4
          %s262 = int_to_ptr.vmem [resolvable:$true] %s261
          %267 = dma.hbm_to_vmem [thread:$0]  %s1, 256, %s262, [#allocation3], 64, 64, 4
        $region16: #{tpu_custom_call.1} parent=11 // pred_fallthru
          _
        // Predicated region
        $region17: #{tpu_custom_call.1} parent=11 // pred_check
          %p268 = pneg %p88
        $region18: #{tpu_custom_call.1} parent=11 // pred_check_branch
          %270 = sbr.rel (%p268) target = $region20
        $region19: #{tpu_custom_call.1} parent=11 // pred_region
          %s272 = ssub.s32 256, 256
          %273 = vsyncadd [#allocation6], %s272
          %s274 = sshll.u32 [#allocation5], 4
          %s275 = int_to_ptr.vmem [resolvable:$true] %s274
          %280 = dma.hbm_to_vmem [thread:$0]  %s2, 256, %s275, [#allocation6], 64, 64, 4
        $region20: #{tpu_custom_call.1} parent=11 // pred_fallthru
          _
        // Predicated region
        $region21: #{tpu_custom_call.1} parent=11 // pred_check
          %p281 = pneg %p109
        $region22: #{tpu_custom_call.1} parent=11 // pred_check_branch
          %283 = sbr.rel (%p281) target = $region24
        $region23: #{tpu_custom_call.1} parent=11 // pred_region
          _
        $region24: #{tpu_custom_call.1} parent=11 // pred_fallthru
          _
        // Predicated region
        $region25: #{tpu_custom_call.1} parent=11 // pred_check
          %p284 = pneg %p130
        $region26: #{tpu_custom_call.1} parent=11 // pred_check_branch
          %286 = sbr.rel (%p284) target = $region28
        $region27: #{tpu_custom_call.1} parent=11 // pred_region
          _
        $region28: #{tpu_custom_call.1} parent=11 // pred_fallthru
          _
        // Predicated region
        $region29: #{tpu_custom_call.1} parent=11 // pred_check
          %p287 = pneg %p151
        $region30: #{tpu_custom_call.1} parent=11 // pred_check_branch
          %289 = sbr.rel (%p287) target = $region32
        $region31: #{tpu_custom_call.1} parent=11 // pred_region
          _
        $region32: #{tpu_custom_call.1} parent=11 // pred_fallthru
          _
        // Predicated region
        $region33: #{tpu_custom_call.1} parent=11 // pred_check
          %p290 = pneg %p172
        $region34: #{tpu_custom_call.1} parent=11 // pred_check_branch
          %292 = sbr.rel (%p290) target = $region36
        $region35: #{tpu_custom_call.1} parent=11 // pred_region
          _
        $region36: #{tpu_custom_call.1} parent=11 // pred_fallthru
          _
        // Predicated region
        $region37: #{tpu_custom_call.1} parent=11 // pred_check
          %p293 = pneg %p193
        $region38: #{tpu_custom_call.1} parent=11 // pred_check_branch
          %295 = sbr.rel (%p293) target = $region40
        $region39: #{tpu_custom_call.1} parent=11 // pred_region
          _
        $region40: #{tpu_custom_call.1} parent=11 // pred_fallthru
          _
        // Predicated region
        $region41: #{tpu_custom_call.1} parent=11 // pred_check
          %p296 = pneg %p214
        $region42: #{tpu_custom_call.1} parent=11 // pred_check_branch
          %298 = sbr.rel (%p296) target = $region44
        $region43: #{tpu_custom_call.1} parent=11 // pred_region
          %s300 = ssub.s32 128, 128
          %301 = vsyncadd [#allocation6], %s300
          %s303 = sshll.u32 [#allocation7], 4
          %s304 = int_to_ptr.vmem [resolvable:$true] %s303
          %306 = dma.hbm_to_vmem [thread:$0]  %s8, 128, %s304, [#allocation6]
        $region44: #{tpu_custom_call.1} parent=11 // pred_fallthru
          _
      $region12: #{tpu_custom_call.1} parent=5 // pred_fallthru
        _
      %p307 = scmp.lt.s32.totalorder %s20, 2
      // Predicated region
      $region45: #{tpu_custom_call.1} parent=5 // pred_check
        %p308 = pneg %p307
      $region46: #{tpu_custom_call.1} parent=5 // pred_check_branch
        %310 = sbr.rel (%p308) target = $region48
      $region47: #{tpu_custom_call.1} parent=5 // pred_region
        // Predicated region
        $region49: #{tpu_custom_call.1} parent=47 // pred_check
          %p311 = pneg %p40
        $region50: #{tpu_custom_call.1} parent=47 // pred_check_branch
          %313 = sbr.rel (%p311) target = $region52
        $region51: #{tpu_custom_call.1} parent=47 // pred_region
          %p314 = scmp.lt.s32.totalorder %s20, 1
          %s315 = scalar_select %p314, %s20, 1
          %s316 = smul.addr %s315, 8
          %s317 = scalar_lea.vmem %s0, %s316
        $region52: #{tpu_custom_call.1} parent=47 // pred_fallthru
          _
      $region48: #{tpu_custom_call.1} parent=5 // pred_fallthru
        _
      %p318 = scmp.le.s32.totalorder 1, %s20
      %p319 = scmp.lt.s32.totalorder %s20, 3
      %p320 = pnand %p318, %p319
      %p321 = pneg %p320
      // Predicated region
      $region53: #{tpu_custom_call.1} parent=5 // pred_check
        _
      $region54: #{tpu_custom_call.1} parent=5 // pred_check_branch
        %323 = sbr.rel (%p320) target = $region56
      $region55: #{tpu_custom_call.1} parent=5 // pred_region
        %s324 = ssub.s32 %s20, 1
        // Predicated region
        $region57: #{tpu_custom_call.1} parent=55 // pred_check
          %p325 = pneg %p67
        $region58: #{tpu_custom_call.1} parent=55 // pred_check_branch
          %327 = sbr.rel (%p325) target = $region60
        $region59: #{tpu_custom_call.1} parent=55 // pred_region
          %328 = dma.done [#allocation3], 256
        $region60: #{tpu_custom_call.1} parent=55 // pred_fallthru
          _
        // Predicated region
        $region61: #{tpu_custom_call.1} parent=55 // pred_check
          %p329 = pneg %p88
        $region62: #{tpu_custom_call.1} parent=55 // pred_check_branch
          %331 = sbr.rel (%p329) target = $region64
        $region63: #{tpu_custom_call.1} parent=55 // pred_region
          %332 = dma.done [#allocation6], 256
        $region64: #{tpu_custom_call.1} parent=55 // pred_fallthru
          _
        // Predicated region
        $region65: #{tpu_custom_call.1} parent=55 // pred_check
          %p333 = pneg %p214
        $region66: #{tpu_custom_call.1} parent=55 // pred_check_branch
          %335 = sbr.rel (%p333) target = $region68
        $region67: #{tpu_custom_call.1} parent=55 // pred_region
          %336 = dma.done [#allocation6], 128
        $region68: #{tpu_custom_call.1} parent=55 // pred_fallthru
          _
        %p337 = scmp.lt.s32.totalorder %s25, 1
        %s338 = scalar_select %p337, %s25, 1
        %s339 = smul.addr %s338, 8
        %s340 = scalar_lea.vmem %s0, %s339
        %p341 = pneg %p46
        %p342 = pneg %p43
        %p343 = pneg %p67
        %p344 = pneg %p64
        %p345 = pneg %p88
        %p346 = pneg %p85
        %p347 = pneg %p109
        %p348 = pneg %p106
        %p349 = pneg %p130
        %p350 = pneg %p127
        %p351 = pneg %p151
        %p352 = pneg %p148
        %p353 = pneg %p172
        %p354 = pneg %p169
        %p355 = pneg %p193
        %p356 = pneg %p190
        %p357 = pneg %p214
        %p358 = pneg %p211
        %p359 = pneg %p240
        %p360 = pneg %p237
        %s361 = sand.u32 %s227, 1
        %s362 = scalar_lea.sflag [#allocation4], %s361
        %s363 = sand.u32 %s227, 1
        %s364 = smul.addr %s363, 8
        %s365 = scalar_lea.vmem [#allocation8], %s364
        %p366 = scmp.lt.s32.totalorder %s25, 1
        %s367 = scalar_select %p366, %s25, 1
        %s368 = smul.addr %s367, 8
        %s369 = scalar_lea.vmem %s0, %s368
        %v371 = vld [vmem:[%s369] sm:$0xff]
        %v372 = vmul.f32 %v371, %v371
        %vm373 = vcmask 261120
        %v374 = vsel %vm373, %v372, 0.0
        %375 = vadd.xlane.f32.xlu0 %v374
        %v376 = vpop.xlane.xlu0 %375
        %v377 = vrcp.pop 32.0
        %v378 = vmul.f32 %v376, %v377
        %v379 = vadd.f32 %v378, 1e-06
        %v380 = vrsqrt.pop %v379
        %v381 = vmul.f32 %v371, %v380
        %v382 = vld [vmem:[%s5] sm:$0x1]
        %v384 = vlaneseq
        %v385 = vshrl.u32 %v384, 7
        %v386 = vsub.s32 0, %v385
        %v387 = vrot.slane %v382, %v386
        %v389 = vmul.f32 %v381, %v387
        %v390 = vpack.c.bf16 %v389, %v389
        %v391 = vld [vmem:[#allocation2] sm:$0xf]
        %v392 = vld [vmem:[#allocation2 + $0x4] sm:$0xf]
        %v393 = vld [vmem:[#allocation2 + $0x8] sm:$0xf]
        %v394 = vld [vmem:[#allocation2 + $0xc] sm:$0xf]
        %v399 = vunpack.c.l.b16 %v391
        %v400 = vunpack.c.l.b16 %v392
        %v401 = vunpack.c.l.b16 %v393
        %v402 = vunpack.c.l.b16 %v394
        %v403 = vpack.c.b16 %v400, %v399
        %v404 = vpack.c.b16 %v402, %v401
        %v408 = vsel %vm373, %v390, 0
        %410 = vmatprep.subr.bf16.mxu0 0
        %411 = vmatpush1.bf16.msra.mxu0 0
        %412 = vmatprep.subr.bf16.mxu0 0
        %413 = vmatpush1.bf16.msra.mxu0 0
        %414 = vmatprep.subr.bf16.mxu0 0
        %415 = vmatpush1.bf16.msra.mxu0 0
        %416 = vmatprep.subr.bf16.mxu0 0
        %417 = vmatpush1.bf16.msra.mxu0 0
        %418 = vmatprep.subr.bf16.mxu0 0
        %419 = vmatpush1.bf16.msra.mxu0 0
        %420 = vmatprep.subr.bf16.mxu0 0
        %421 = vmatpush1.bf16.msra.mxu0 0
        %422 = vmatprep.subr.bf16.mxu0 0
        %423 = vmatpush1.bf16.msra.mxu0 %v404
        %424 = vmatprep.subr.bf16.mxu0 0
        %425 = vmatpush1.bf16.msra.mxu0 %v403
        %426 = vmatprep.subr.bf16.mxu0 0
        %427 = vmatpush2.bf16.msra.mxu0 0
        %428 = vmatprep.subr.bf16.mxu0 0
        %429 = vmatpush2.bf16.msra.mxu0 0
        %430 = vmatprep.subr.bf16.mxu0 0
        %431 = vmatpush2.bf16.msra.mxu0 0
        %432 = vmatprep.subr.bf16.mxu0 0
        %433 = vmatpush2.bf16.msra.mxu0 0
        %434 = vmatprep.subr.bf16.mxu0 0
        %435 = vmatpush2.bf16.msra.mxu0 0
        %436 = vmatprep.subr.bf16.mxu0 0
        %437 = vmatpush2.bf16.msra.mxu0 0
        %438 = vmatprep.subr.bf16.mxu0 0
        %439 = vmatpush2.bf16.msra.mxu0 0
        %440 = vmatprep.subr.bf16.mxu0 0
        %441 = vmatpush2.bf16.msra.mxu0 0
        %442 = vmatprep.mubr.bf16.mxu0 0
        %443 = vmatmul.mubr.bf16.gmra.mxu0 %v408
        %v444 = vpop.f32.mrf.mxu0
        %v445 = vadd.f32 0.0, %v444
        %v446 = vpop.f32.mrf.mxu0
        %v447 = vpop.f32.mrf.mxu0
        %v448 = vpop.f32.mrf.mxu0
        %449 = vdwg.mxu0
        %v450 = vmul.f32 %v445, 0.35355338
        %v451 = vld [vmem:[%s7] sm:$0xff]
        %v452 = vld [vmem:[#allocation7] sm:$0xff]
        %v453 = vsub.f32 0.0, %v450
        %455 = vrot.lane.b32.xlu0 %v453, 124
        %v456 = vpop.permute.xlu0 %455
        %459 = vrot.lane.b32.xlu0 %v450, 4
        %v460 = vpop.permute.xlu0 %459
        %vm462 = vcmask 31744
        %v463 = vsel %vm462, %v456, %v460
        %v464 = vmul.f32 %v450, %v451
        %v465 = vmul.f32 %v463, %v452
        %v466 = vadd.f32 %v464, %v465
        %v467 = vpack.c.bf16 %v466, %v466
        %v468 = vsub.f32 0.0, %v445
        %470 = vrot.lane.b32.xlu0 %v468, 92
        %v471 = vpop.permute.xlu0 %470
        %474 = vrot.lane.b32.xlu0 %v445, 100
        %v475 = vpop.permute.xlu0 %474
        %v477 = vsel %vm462, %v471, %v475
        %479 = vrot.lane.b32.xlu0 %v451, 32
        %v480 = vpop.permute.xlu0 %479
        %v482 = vmul.f32 %v445, %v480
        %v483 = vmul.f32 %v477, %v452
        %485 = vrot.lane.b32.xlu0 %v483, 32
        %v486 = vpop.permute.xlu0 %485
        %v488 = vadd.f32 %v482, %v486
        %v489 = vpack.c.bf16 %v488, %v488
        %v490 = vpack.c.bf16 %v445, %v445
        %492 = vrot.lane.b32.xlu0 %v489, 96
        %v493 = vpop.permute.xlu0 %492
        %vm494 = vcmask 64512
        %v496 = vsel %vm494, %v467, 0
        %v499 = vsel %vm494, %v493, 0
        %501 = vmatprep.subr.bf16.mxu0 0
        %502 = vmatpush1.bf16.xpose.msra.mxu0 0
        %503 = vmatprep.subr.bf16.mxu0 0
        %504 = vmatpush1.bf16.xpose.msra.mxu0 0
        %505 = vmatprep.subr.bf16.mxu0 0
        %506 = vmatpush1.bf16.xpose.msra.mxu0 0
        %507 = vmatprep.subr.bf16.mxu0 0
        %508 = vmatpush1.bf16.xpose.msra.mxu0 0
        %509 = vmatprep.subr.bf16.mxu0 0
        %510 = vmatpush1.bf16.xpose.msra.mxu0 0
        %511 = vmatprep.subr.bf16.mxu0 0
        %512 = vmatpush1.bf16.xpose.msra.mxu0 0
        %513 = vmatprep.subr.bf16.mxu0 0
        %514 = vmatpush1.bf16.xpose.msra.mxu0 0
        %515 = vmatprep.subr.bf16.mxu0 0
        %516 = vmatpush1.bf16.xpose.msra.mxu0 %v499
        %517 = vmatprep.subr.bf16.mxu0 0
        %518 = vmatpush2.bf16.xpose.msra.mxu0 0
        %519 = vmatprep.subr.bf16.mxu0 0
        %520 = vmatpush2.bf16.xpose.msra.mxu0 0
        %521 = vmatprep.subr.bf16.mxu0 0
        %522 = vmatpush2.bf16.xpose.msra.mxu0 0
        %523 = vmatprep.subr.bf16.mxu0 0
        %524 = vmatpush2.bf16.xpose.msra.mxu0 0
        %525 = vmatprep.subr.bf16.mxu0 0
        %526 = vmatpush2.bf16.xpose.msra.mxu0 0
        %527 = vmatprep.subr.bf16.mxu0 0
        %528 = vmatpush2.bf16.xpose.msra.mxu0 0
        %529 = vmatprep.subr.bf16.mxu0 0
        %530 = vmatpush2.bf16.xpose.msra.mxu0 0
        %531 = vmatprep.subr.bf16.mxu0 0
        %532 = vmatpush2.bf16.xpose.msra.mxu0 0
        %533 = vmatprep.mubr.bf16.mxu0 0
        %534 = vmatmul.mubr.bf16.gmra.mxu0 %v496
        %v535 = vpop.f32.mrf.mxu0
        %v536 = vadd.f32 0.0, %v535
        %v537 = vpop.f32.mrf.mxu0
        %v538 = vpop.f32.mrf.mxu0
        %v539 = vpop.f32.mrf.mxu0
        %540 = vdwg.mxu0
        %v541 = vsel %vm494, %v536, -inf
        %542 = vmax.xlane.f32.xlu0 %v541
        %v543 = vpop.xlane.xlu0 %542
        %v544 = vsub.f32 %v536, %v543
        %v545 = vmul.f32 %v544, 1.442695
        %v546 = vpow.pop %v545
        %v547 = vsel %vm494, %v546, 0.0
        %548 = vadd.xlane.f32.xlu0 %v547
        %v549 = vpop.xlane.xlu0 %548
        %v550 = vrcp.pop %v549
        %v551 = vmul.f32 %v546, %v550
        %v552 = vpack.c.bf16 %v551, %v551
        %554 = vrot.lane.b32.xlu0 %v490, 64
        %v555 = vpop.permute.xlu0 %554
        %v557 = vsel %vm494, %v552, 0
        %vm559 = vcmask 1043456
        %v561 = vsel %vm559, %v555, 0
        %563 = vmatprep.subr.bf16.mxu0 0
        %564 = vmatpush1.bf16.msra.mxu0 0
        %565 = vmatprep.subr.bf16.mxu0 0
        %566 = vmatpush1.bf16.msra.mxu0 0
        %567 = vmatprep.subr.bf16.mxu0 0
        %568 = vmatpush1.bf16.msra.mxu0 0
        %569 = vmatprep.subr.bf16.mxu0 0
        %570 = vmatpush1.bf16.msra.mxu0 0
        %571 = vmatprep.subr.bf16.mxu0 0
        %572 = vmatpush1.bf16.msra.mxu0 0
        %573 = vmatprep.subr.bf16.mxu0 0
        %574 = vmatpush1.bf16.msra.mxu0 0
        %575 = vmatprep.subr.bf16.mxu0 0
        %576 = vmatpush1.bf16.msra.mxu0 0
        %577 = vmatprep.subr.bf16.mxu0 0
        %578 = vmatpush1.bf16.msra.mxu0 %v561
        %579 = vmatprep.subr.bf16.mxu0 0
        %580 = vmatpush2.bf16.msra.mxu0 0
        %581 = vmatprep.subr.bf16.mxu0 0
        %582 = vmatpush2.bf16.msra.mxu0 0
        %583 = vmatprep.subr.bf16.mxu0 0
        %584 = vmatpush2.bf16.msra.mxu0 0
        %585 = vmatprep.subr.bf16.mxu0 0
        %586 = vmatpush2.bf16.msra.mxu0 0
        %587 = vmatprep.subr.bf16.mxu0 0
        %588 = vmatpush2.bf16.msra.mxu0 0
        %589 = vmatprep.subr.bf16.mxu0 0
        %590 = vmatpush2.bf16.msra.mxu0 0
        %591 = vmatprep.subr.bf16.mxu0 0
        %592 = vmatpush2.bf16.msra.mxu0 0
        %593 = vmatprep.subr.bf16.mxu0 0
        %594 = vmatpush2.bf16.msra.mxu0 0
        %595 = vmatprep.mubr.bf16.mxu0 0
        %596 = vmatmul.mubr.bf16.gmra.mxu0 %v557
        %v597 = vpop.f32.mrf.mxu0
        %v598 = vadd.f32 0.0, %v597
        %v599 = vpop.f32.mrf.mxu0
        %v600 = vpop.f32.mrf.mxu0
        %v601 = vpop.f32.mrf.mxu0
        %602 = vdwg.mxu0
        %603 = vrot.lane.b32.xlu0 %v453, 116
        %v604 = vpop.permute.xlu0 %603
        %606 = vrot.lane.b32.xlu0 %v450, 124
        %v607 = vpop.permute.xlu0 %606
        %v609 = vsel %vm462, %v604, %v607
        %610 = vrot.lane.b32.xlu0 %v451, 8
        %v611 = vpop.permute.xlu0 %610
        %v613 = vmul.f32 %v450, %v611
        %v614 = vmul.f32 %v609, %v452
        %616 = vrot.lane.b32.xlu0 %v614, 8
        %v617 = vpop.permute.xlu0 %616
        %v619 = vadd.f32 %v613, %v617
        %v620 = vpack.c.bf16 %v619, %v619
        %621 = vrot.lane.b32.xlu0 %v468, 84
        %v622 = vpop.permute.xlu0 %621
        %624 = vrot.lane.b32.xlu0 %v445, 92
        %v625 = vpop.permute.xlu0 %624
        %v627 = vsel %vm462, %v622, %v625
        %628 = vrot.lane.b32.xlu0 %v451, 40
        %v629 = vpop.permute.xlu0 %628
        %v631 = vmul.f32 %v445, %v629
        %v632 = vmul.f32 %v627, %v452
        %634 = vrot.lane.b32.xlu0 %v632, 40
        %v635 = vpop.permute.xlu0 %634
        %v637 = vadd.f32 %v631, %v635
        %v638 = vpack.c.bf16 %v637, %v637
        %640 = vrot.lane.b32.xlu0 %v620, 120
        %v641 = vpop.permute.xlu0 %640
        %643 = vrot.lane.b32.xlu0 %v638, 88
        %v644 = vpop.permute.xlu0 %643
        %v646 = vsel %vm494, %v641, 0
        %v649 = vsel %vm494, %v644, 0
        %651 = vmatprep.subr.bf16.mxu0 0
        %652 = vmatpush1.bf16.xpose.msra.mxu0 0
        %653 = vmatprep.subr.bf16.mxu0 0
        %654 = vmatpush1.bf16.xpose.msra.mxu0 0
        %655 = vmatprep.subr.bf16.mxu0 0
        %656 = vmatpush1.bf16.xpose.msra.mxu0 0
        %657 = vmatprep.subr.bf16.mxu0 0
        %658 = vmatpush1.bf16.xpose.msra.mxu0 0
        %659 = vmatprep.subr.bf16.mxu0 0
        %660 = vmatpush1.bf16.xpose.msra.mxu0 0
        %661 = vmatprep.subr.bf16.mxu0 0
        %662 = vmatpush1.bf16.xpose.msra.mxu0 0
        %663 = vmatprep.subr.bf16.mxu0 0
        %664 = vmatpush1.bf16.xpose.msra.mxu0 0
        %665 = vmatprep.subr.bf16.mxu0 0
        %666 = vmatpush1.bf16.xpose.msra.mxu0 %v649
        %667 = vmatprep.subr.bf16.mxu0 0
        %668 = vmatpush2.bf16.xpose.msra.mxu0 0
        %669 = vmatprep.subr.bf16.mxu0 0
        %670 = vmatpush2.bf16.xpose.msra.mxu0 0
        %671 = vmatprep.subr.bf16.mxu0 0
        %672 = vmatpush2.bf16.xpose.msra.mxu0 0
        %673 = vmatprep.subr.bf16.mxu0 0
        %674 = vmatpush2.bf16.xpose.msra.mxu0 0
        %675 = vmatprep.subr.bf16.mxu0 0
        %676 = vmatpush2.bf16.xpose.msra.mxu0 0
        %677 = vmatprep.subr.bf16.mxu0 0
        %678 = vmatpush2.bf16.xpose.msra.mxu0 0
        %679 = vmatprep.subr.bf16.mxu0 0
        %680 = vmatpush2.bf16.xpose.msra.mxu0 0
        %681 = vmatprep.subr.bf16.mxu0 0
        %682 = vmatpush2.bf16.xpose.msra.mxu0 0
        %683 = vmatprep.mubr.bf16.mxu0 0
        %684 = vmatmul.mubr.bf16.gmra.mxu0 %v646
        %v685 = vpop.f32.mrf.mxu0
        %v686 = vadd.f32 0.0, %v685
        %v687 = vpop.f32.mrf.mxu0
        %v688 = vpop.f32.mrf.mxu0
        %v689 = vpop.f32.mrf.mxu0
        %690 = vdwg.mxu0
        %v691 = vsel %vm494, %v686, -inf
        %692 = vmax.xlane.f32.xlu0 %v691
        %v693 = vpop.xlane.xlu0 %692
        %v694 = vsub.f32 %v686, %v693
        %v695 = vmul.f32 %v694, 1.442695
        %v696 = vpow.pop %v695
        %v697 = vsel %vm494, %v696, 0.0
        %698 = vadd.xlane.f32.xlu0 %v697
        %v699 = vpop.xlane.xlu0 %698
        %v700 = vrcp.pop %v699
        %v701 = vmul.f32 %v696, %v700
        %v702 = vpack.c.bf16 %v701, %v701
        %703 = vrot.lane.b32.xlu0 %v490, 56
        %v704 = vpop.permute.xlu0 %703
        %v706 = vsel %vm494, %v702, 0
        %v709 = vsel %vm559, %v704, 0
        %711 = vmatprep.subr.bf16.mxu0 0
        %712 = vmatpush1.bf16.msra.mxu0 0
        %713 = vmatprep.subr.bf16.mxu0 0
        %714 = vmatpush1.bf16.msra.mxu0 0
        %715 = vmatprep.subr.bf16.mxu0 0
        %716 = vmatpush1.bf16.msra.mxu0 0
        %717 = vmatprep.subr.bf16.mxu0 0
        %718 = vmatpush1.bf16.msra.mxu0 0
        %719 = vmatprep.subr.bf16.mxu0 0
        %720 = vmatpush1.bf16.msra.mxu0 0
        %721 = vmatprep.subr.bf16.mxu0 0
        %722 = vmatpush1.bf16.msra.mxu0 0
        %723 = vmatprep.subr.bf16.mxu0 0
        %724 = vmatpush1.bf16.msra.mxu0 0
        %725 = vmatprep.subr.bf16.mxu0 0
        %726 = vmatpush1.bf16.msra.mxu0 %v709
        %727 = vmatprep.subr.bf16.mxu0 0
        %728 = vmatpush2.bf16.msra.mxu0 0
        %729 = vmatprep.subr.bf16.mxu0 0
        %730 = vmatpush2.bf16.msra.mxu0 0
        %731 = vmatprep.subr.bf16.mxu0 0
        %732 = vmatpush2.bf16.msra.mxu0 0
        %733 = vmatprep.subr.bf16.mxu0 0
        %734 = vmatpush2.bf16.msra.mxu0 0
        %735 = vmatprep.subr.bf16.mxu0 0
        %736 = vmatpush2.bf16.msra.mxu0 0
        %737 = vmatprep.subr.bf16.mxu0 0
        %738 = vmatpush2.bf16.msra.mxu0 0
        %739 = vmatprep.subr.bf16.mxu0 0
        %740 = vmatpush2.bf16.msra.mxu0 0
        %741 = vmatprep.subr.bf16.mxu0 0
        %742 = vmatpush2.bf16.msra.mxu0 0
        %743 = vmatprep.mubr.bf16.mxu0 0
        %744 = vmatmul.mubr.bf16.gmra.mxu0 %v706
        %v745 = vpop.f32.mrf.mxu0
        %v746 = vadd.f32 0.0, %v745
        %v747 = vpop.f32.mrf.mxu0
        %v748 = vpop.f32.mrf.mxu0
        %v749 = vpop.f32.mrf.mxu0
        %750 = vdwg.mxu0
        %751 = vrot.lane.b32.xlu0 %v453, 108
        %v752 = vpop.permute.xlu0 %751
        %754 = vrot.lane.b32.xlu0 %v450, 116
        %v755 = vpop.permute.xlu0 %754
        %v757 = vsel %vm462, %v752, %v755
        %758 = vrot.lane.b32.xlu0 %v451, 16
        %v759 = vpop.permute.xlu0 %758
        %v761 = vmul.f32 %v450, %v759
        %v762 = vmul.f32 %v757, %v452
        %764 = vrot.lane.b32.xlu0 %v762, 16
        %v765 = vpop.permute.xlu0 %764
        %v767 = vadd.f32 %v761, %v765
        %v768 = vpack.c.bf16 %v767, %v767
        %769 = vrot.lane.b32.xlu0 %v468, 76
        %v770 = vpop.permute.xlu0 %769
        %772 = vrot.lane.b32.xlu0 %v445, 84
        %v773 = vpop.permute.xlu0 %772
        %v775 = vsel %vm462, %v770, %v773
        %776 = vrot.lane.b32.xlu0 %v451, 48
        %v777 = vpop.permute.xlu0 %776
        %v779 = vmul.f32 %v445, %v777
        %v780 = vmul.f32 %v775, %v452
        %782 = vrot.lane.b32.xlu0 %v780, 48
        %v783 = vpop.permute.xlu0 %782
        %v785 = vadd.f32 %v779, %v783
        %v786 = vpack.c.bf16 %v785, %v785
        %788 = vrot.lane.b32.xlu0 %v768, 112
        %v789 = vpop.permute.xlu0 %788
        %791 = vrot.lane.b32.xlu0 %v786, 80
        %v792 = vpop.permute.xlu0 %791
        %v794 = vsel %vm494, %v789, 0
        %v797 = vsel %vm494, %v792, 0
        %799 = vmatprep.subr.bf16.mxu0 0
        %800 = vmatpush1.bf16.xpose.msra.mxu0 0
        %801 = vmatprep.subr.bf16.mxu0 0
        %802 = vmatpush1.bf16.xpose.msra.mxu0 0
        %803 = vmatprep.subr.bf16.mxu0 0
        %804 = vmatpush1.bf16.xpose.msra.mxu0 0
        %805 = vmatprep.subr.bf16.mxu0 0
        %806 = vmatpush1.bf16.xpose.msra.mxu0 0
        %807 = vmatprep.subr.bf16.mxu0 0
        %808 = vmatpush1.bf16.xpose.msra.mxu0 0
        %809 = vmatprep.subr.bf16.mxu0 0
        %810 = vmatpush1.bf16.xpose.msra.mxu0 0
        %811 = vmatprep.subr.bf16.mxu0 0
        %812 = vmatpush1.bf16.xpose.msra.mxu0 0
        %813 = vmatprep.subr.bf16.mxu0 0
        %814 = vmatpush1.bf16.xpose.msra.mxu0 %v797
        %815 = vmatprep.subr.bf16.mxu0 0
        %816 = vmatpush2.bf16.xpose.msra.mxu0 0
        %817 = vmatprep.subr.bf16.mxu0 0
        %818 = vmatpush2.bf16.xpose.msra.mxu0 0
        %819 = vmatprep.subr.bf16.mxu0 0
        %820 = vmatpush2.bf16.xpose.msra.mxu0 0
        %821 = vmatprep.subr.bf16.mxu0 0
        %822 = vmatpush2.bf16.xpose.msra.mxu0 0
        %823 = vmatprep.subr.bf16.mxu0 0
        %824 = vmatpush2.bf16.xpose.msra.mxu0 0
        %825 = vmatprep.subr.bf16.mxu0 0
        %826 = vmatpush2.bf16.xpose.msra.mxu0 0
        %827 = vmatprep.subr.bf16.mxu0 0
        %828 = vmatpush2.bf16.xpose.msra.mxu0 0
        %829 = vmatprep.subr.bf16.mxu0 0
        %830 = vmatpush2.bf16.xpose.msra.mxu0 0
        %831 = vmatprep.mubr.bf16.mxu0 0
        %832 = vmatmul.mubr.bf16.gmra.mxu0 %v794
        %v833 = vpop.f32.mrf.mxu0
        %v834 = vadd.f32 0.0, %v833
        %v835 = vpop.f32.mrf.mxu0
        %v836 = vpop.f32.mrf.mxu0
        %v837 = vpop.f32.mrf.mxu0
        %838 = vdwg.mxu0
        %v839 = vsel %vm494, %v834, -inf
        %840 = vmax.xlane.f32.xlu0 %v839
        %v841 = vpop.xlane.xlu0 %840
        %v842 = vsub.f32 %v834, %v841
        %v843 = vmul.f32 %v842, 1.442695
        %v844 = vpow.pop %v843
        %v845 = vsel %vm494, %v844, 0.0
        %846 = vadd.xlane.f32.xlu0 %v845
        %v847 = vpop.xlane.xlu0 %846
        %v848 = vrcp.pop %v847
        %v849 = vmul.f32 %v844, %v848
        %v850 = vpack.c.bf16 %v849, %v849
        %851 = vrot.lane.b32.xlu0 %v490, 48
        %v852 = vpop.permute.xlu0 %851
        %v854 = vsel %vm494, %v850, 0
        %v857 = vsel %vm559, %v852, 0
        %859 = vmatprep.subr.bf16.mxu0 0
        %860 = vmatpush1.bf16.msra.mxu0 0
        %861 = vmatprep.subr.bf16.mxu0 0
        %862 = vmatpush1.bf16.msra.mxu0 0
        %863 = vmatprep.subr.bf16.mxu0 0
        %864 = vmatpush1.bf16.msra.mxu0 0
        %865 = vmatprep.subr.bf16.mxu0 0
        %866 = vmatpush1.bf16.msra.mxu0 0
        %867 = vmatprep.subr.bf16.mxu0 0
        %868 = vmatpush1.bf16.msra.mxu0 0
        %869 = vmatprep.subr.bf16.mxu0 0
        %870 = vmatpush1.bf16.msra.mxu0 0
        %871 = vmatprep.subr.bf16.mxu0 0
        %872 = vmatpush1.bf16.msra.mxu0 0
        %873 = vmatprep.subr.bf16.mxu0 0
        %874 = vmatpush1.bf16.msra.mxu0 %v857
        %875 = vmatprep.subr.bf16.mxu0 0
        %876 = vmatpush2.bf16.msra.mxu0 0
        %877 = vmatprep.subr.bf16.mxu0 0
        %878 = vmatpush2.bf16.msra.mxu0 0
        %879 = vmatprep.subr.bf16.mxu0 0
        %880 = vmatpush2.bf16.msra.mxu0 0
        %881 = vmatprep.subr.bf16.mxu0 0
        %882 = vmatpush2.bf16.msra.mxu0 0
        %883 = vmatprep.subr.bf16.mxu0 0
        %884 = vmatpush2.bf16.msra.mxu0 0
        %885 = vmatprep.subr.bf16.mxu0 0
        %886 = vmatpush2.bf16.msra.mxu0 0
        %887 = vmatprep.subr.bf16.mxu0 0
        %888 = vmatpush2.bf16.msra.mxu0 0
        %889 = vmatprep.subr.bf16.mxu0 0
        %890 = vmatpush2.bf16.msra.mxu0 0
        %891 = vmatprep.mubr.bf16.mxu0 0
        %892 = vmatmul.mubr.bf16.gmra.mxu0 %v854
        %v893 = vpop.f32.mrf.mxu0
        %v894 = vadd.f32 0.0, %v893
        %v895 = vpop.f32.mrf.mxu0
        %v896 = vpop.f32.mrf.mxu0
        %v897 = vpop.f32.mrf.mxu0
        %898 = vdwg.mxu0
        %899 = vrot.lane.b32.xlu0 %v453, 100
        %v900 = vpop.permute.xlu0 %899
        %902 = vrot.lane.b32.xlu0 %v450, 108
        %v903 = vpop.permute.xlu0 %902
        %v905 = vsel %vm462, %v900, %v903
        %906 = vrot.lane.b32.xlu0 %v451, 24
        %v907 = vpop.permute.xlu0 %906
        %v909 = vmul.f32 %v450, %v907
        %v910 = vmul.f32 %v905, %v452
        %912 = vrot.lane.b32.xlu0 %v910, 24
        %v913 = vpop.permute.xlu0 %912
        %v915 = vadd.f32 %v909, %v913
        %v916 = vpack.c.bf16 %v915, %v915
        %917 = vrot.lane.b32.xlu0 %v468, 68
        %v918 = vpop.permute.xlu0 %917
        %920 = vrot.lane.b32.xlu0 %v445, 76
        %v921 = vpop.permute.xlu0 %920
        %v923 = vsel %vm462, %v918, %v921
        %924 = vrot.lane.b32.xlu0 %v451, 56
        %v925 = vpop.permute.xlu0 %924
        %v927 = vmul.f32 %v445, %v925
        %v928 = vmul.f32 %v923, %v452
        %930 = vrot.lane.b32.xlu0 %v928, 56
        %v931 = vpop.permute.xlu0 %930
        %v933 = vadd.f32 %v927, %v931
        %v934 = vpack.c.bf16 %v933, %v933
        %936 = vrot.lane.b32.xlu0 %v916, 104
        %v937 = vpop.permute.xlu0 %936
        %939 = vrot.lane.b32.xlu0 %v934, 72
        %v940 = vpop.permute.xlu0 %939
        %v942 = vsel %vm494, %v937, 0
        %v945 = vsel %vm494, %v940, 0
        %947 = vmatprep.subr.bf16.mxu0 0
        %948 = vmatpush1.bf16.xpose.msra.mxu0 0
        %949 = vmatprep.subr.bf16.mxu0 0
        %950 = vmatpush1.bf16.xpose.msra.mxu0 0
        %951 = vmatprep.subr.bf16.mxu0 0
        %952 = vmatpush1.bf16.xpose.msra.mxu0 0
        %953 = vmatprep.subr.bf16.mxu0 0
        %954 = vmatpush1.bf16.xpose.msra.mxu0 0
        %955 = vmatprep.subr.bf16.mxu0 0
        %956 = vmatpush1.bf16.xpose.msra.mxu0 0
        %957 = vmatprep.subr.bf16.mxu0 0
        %958 = vmatpush1.bf16.xpose.msra.mxu0 0
        %959 = vmatprep.subr.bf16.mxu0 0
        %960 = vmatpush1.bf16.xpose.msra.mxu0 0
        %961 = vmatprep.subr.bf16.mxu0 0
        %962 = vmatpush1.bf16.xpose.msra.mxu0 %v945
        %963 = vmatprep.subr.bf16.mxu0 0
        %964 = vmatpush2.bf16.xpose.msra.mxu0 0
        %965 = vmatprep.subr.bf16.mxu0 0
        %966 = vmatpush2.bf16.xpose.msra.mxu0 0
        %967 = vmatprep.subr.bf16.mxu0 0
        %968 = vmatpush2.bf16.xpose.msra.mxu0 0
        %969 = vmatprep.subr.bf16.mxu0 0
        %970 = vmatpush2.bf16.xpose.msra.mxu0 0
        %971 = vmatprep.subr.bf16.mxu0 0
        %972 = vmatpush2.bf16.xpose.msra.mxu0 0
        %973 = vmatprep.subr.bf16.mxu0 0
        %974 = vmatpush2.bf16.xpose.msra.mxu0 0
        %975 = vmatprep.subr.bf16.mxu0 0
        %976 = vmatpush2.bf16.xpose.msra.mxu0 0
        %977 = vmatprep.subr.bf16.mxu0 0
        %978 = vmatpush2.bf16.xpose.msra.mxu0 0
        %979 = vmatprep.mubr.bf16.mxu0 0
        %980 = vmatmul.mubr.bf16.gmra.mxu0 %v942
        %v981 = vpop.f32.mrf.mxu0
        %v982 = vadd.f32 0.0, %v981
        %v983 = vpop.f32.mrf.mxu0
        %v984 = vpop.f32.mrf.mxu0
        %v985 = vpop.f32.mrf.mxu0
        %986 = vdwg.mxu0
        %v987 = vsel %vm494, %v982, -inf
        %988 = vmax.xlane.f32.xlu0 %v987
        %v989 = vpop.xlane.xlu0 %988
        %v990 = vsub.f32 %v982, %v989
        %v991 = vmul.f32 %v990, 1.442695
        %v992 = vpow.pop %v991
        %v993 = vsel %vm494, %v992, 0.0
        %994 = vadd.xlane.f32.xlu0 %v993
        %v995 = vpop.xlane.xlu0 %994
        %v996 = vrcp.pop %v995
        %v997 = vmul.f32 %v992, %v996
        %v998 = vpack.c.bf16 %v997, %v997
        %999 = vrot.lane.b32.xlu0 %v490, 40
        %v1000 = vpop.permute.xlu0 %999
        %v1002 = vsel %vm494, %v998, 0
        %v1005 = vsel %vm559, %v1000, 0
        %1007 = vmatprep.subr.bf16.mxu0 0
        %1008 = vmatpush1.bf16.msra.mxu0 0
        %1009 = vmatprep.subr.bf16.mxu0 0
        %1010 = vmatpush1.bf16.msra.mxu0 0
        %1011 = vmatprep.subr.bf16.mxu0 0
        %1012 = vmatpush1.bf16.msra.mxu0 0
        %1013 = vmatprep.subr.bf16.mxu0 0
        %1014 = vmatpush1.bf16.msra.mxu0 0
        %1015 = vmatprep.subr.bf16.mxu0 0
        %1016 = vmatpush1.bf16.msra.mxu0 0
        %1017 = vmatprep.subr.bf16.mxu0 0
        %1018 = vmatpush1.bf16.msra.mxu0 0
        %1019 = vmatprep.subr.bf16.mxu0 0
        %1020 = vmatpush1.bf16.msra.mxu0 0
        %1021 = vmatprep.subr.bf16.mxu0 0
        %1022 = vmatpush1.bf16.msra.mxu0 %v1005
        %1023 = vmatprep.subr.bf16.mxu0 0
        %1024 = vmatpush2.bf16.msra.mxu0 0
        %1025 = vmatprep.subr.bf16.mxu0 0
        %1026 = vmatpush2.bf16.msra.mxu0 0
        %1027 = vmatprep.subr.bf16.mxu0 0
        %1028 = vmatpush2.bf16.msra.mxu0 0
        %1029 = vmatprep.subr.bf16.mxu0 0
        %1030 = vmatpush2.bf16.msra.mxu0 0
        %1031 = vmatprep.subr.bf16.mxu0 0
        %1032 = vmatpush2.bf16.msra.mxu0 0
        %1033 = vmatprep.subr.bf16.mxu0 0
        %1034 = vmatpush2.bf16.msra.mxu0 0
        %1035 = vmatprep.subr.bf16.mxu0 0
        %1036 = vmatpush2.bf16.msra.mxu0 0
        %1037 = vmatprep.subr.bf16.mxu0 0
        %1038 = vmatpush2.bf16.msra.mxu0 0
        %1039 = vmatprep.mubr.bf16.mxu0 0
        %1040 = vmatmul.mubr.bf16.gmra.mxu0 %v1002
        %v1041 = vpop.f32.mrf.mxu0
        %v1042 = vadd.f32 0.0, %v1041
        %v1043 = vpop.f32.mrf.mxu0
        %v1044 = vpop.f32.mrf.mxu0
        %v1045 = vpop.f32.mrf.mxu0
        %1046 = vdwg.mxu0
        %1048 = vrot.lane.b32.xlu0 %v746, 8
        %v1049 = vpop.permute.xlu0 %1048
        %1052 = vrot.lane.b32.xlu0 %v894, 16
        %v1053 = vpop.permute.xlu0 %1052
        %1056 = vrot.lane.b32.xlu0 %v1042, 24
        %v1057 = vpop.permute.xlu0 %1056
        %v1059 = vsel %vm494, %v598, %v1049
        %vm1060 = vcmask 130048
        %v1061 = vsel %vm1060, %v1059, %v1053
        %vm1062 = vcmask 195584
        %v1063 = vsel %vm1062, %v1061, %v1057
        %v1064 = vpack.c.bf16 %v1063, %v1063
        %v1065 = vld [vmem:[#allocation5] sm:$0xf]
        %v1066 = vld [vmem:[#allocation5 + $0x4] sm:$0xf]
        %v1067 = vld [vmem:[#allocation5 + $0x8] sm:$0xf]
        %v1068 = vld [vmem:[#allocation5 + $0xc] sm:$0xf]
        %v1073 = vunpack.c.l.b16 %v1065
        %v1074 = vunpack.c.l.b16 %v1066
        %v1075 = vunpack.c.l.b16 %v1067
        %v1076 = vunpack.c.l.b16 %v1068
        %v1077 = vpack.c.b16 %v1074, %v1073
        %v1078 = vpack.c.b16 %v1076, %v1075
        %v1082 = vsel %vm373, %v1064, 0
        %1084 = vmatprep.subr.bf16.mxu0 0
        %1085 = vmatpush1.bf16.msra.mxu0 0
        %1086 = vmatprep.subr.bf16.mxu0 0
        %1087 = vmatpush1.bf16.msra.mxu0 0
        %1088 = vmatprep.subr.bf16.mxu0 0
        %1089 = vmatpush1.bf16.msra.mxu0 0
        %1090 = vmatprep.subr.bf16.mxu0 0
        %1091 = vmatpush1.bf16.msra.mxu0 0
        %1092 = vmatprep.subr.bf16.mxu0 0
        %1093 = vmatpush1.bf16.msra.mxu0 0
        %1094 = vmatprep.subr.bf16.mxu0 0
        %1095 = vmatpush1.bf16.msra.mxu0 0
        %1096 = vmatprep.subr.bf16.mxu0 0
        %1097 = vmatpush1.bf16.msra.mxu0 %v1078
        %1098 = vmatprep.subr.bf16.mxu0 0
        %1099 = vmatpush1.bf16.msra.mxu0 %v1077
        %1100 = vmatprep.subr.bf16.mxu0 0
        %1101 = vmatpush2.bf16.msra.mxu0 0
        %1102 = vmatprep.subr.bf16.mxu0 0
        %1103 = vmatpush2.bf16.msra.mxu0 0
        %1104 = vmatprep.subr.bf16.mxu0 0
        %1105 = vmatpush2.bf16.msra.mxu0 0
        %1106 = vmatprep.subr.bf16.mxu0 0
        %1107 = vmatpush2.bf16.msra.mxu0 0
        %1108 = vmatprep.subr.bf16.mxu0 0
        %1109 = vmatpush2.bf16.msra.mxu0 0
        %1110 = vmatprep.subr.bf16.mxu0 0
        %1111 = vmatpush2.bf16.msra.mxu0 0
        %1112 = vmatprep.subr.bf16.mxu0 0
        %1113 = vmatpush2.bf16.msra.mxu0 0
        %1114 = vmatprep.subr.bf16.mxu0 0
        %1115 = vmatpush2.bf16.msra.mxu0 0
        %1116 = vmatprep.mubr.bf16.mxu0 0
        %1117 = vmatmul.mubr.bf16.gmra.mxu0 %v1082
        %v1118 = vpop.f32.mrf.mxu0
        %v1119 = vadd.f32 0.0, %v1118
        %v1120 = vpop.f32.mrf.mxu0
        %v1121 = vpop.f32.mrf.mxu0
        %v1122 = vpop.f32.mrf.mxu0
        %1123 = vdwg.mxu0
        %v1124 = vadd.f32 %v371, %v1119
        %v1125 = vmul.f32 %v1124, %v1124
        %v1126 = vsel %vm373, %v1125, 0.0
        %1127 = vadd.xlane.f32.xlu0 %v1126
        %v1128 = vpop.xlane.xlu0 %1127
        %v1129 = vmul.f32 %v1128, %v377
        %v1130 = vadd.f32 %v1129, 1e-06
        %v1131 = vrsqrt.pop %v1130
        %v1132 = vmul.f32 %v1124, %v1131
        %v1133 = vld [vmem:[%s6] sm:$0x1]
        %v1135 = vlaneseq
        %v1136 = vshrl.u32 %v1135, 7
        %v1137 = vsub.s32 0, %v1136
        %v1138 = vrot.slane %v1133, %v1137
        %v1140 = vmul.f32 %v1132, %v1138
        %v1141 = vpack.c.bf16 %v1140, %v1140
        %v1142 = vld [vmem:[%s3] sm:$0xf]
        %v1143 = vld [vmem:[%s3 + $0x4] sm:$0xf]
        %v1144 = vld [vmem:[%s3 + $0x8] sm:$0xf]
        %v1145 = vld [vmem:[%s3 + $0xc] sm:$0xf]
        %v1150 = vunpack.c.l.b16 %v1142
        %v1151 = vunpack.c.l.b16 %v1143
        %v1152 = vunpack.c.l.b16 %v1144
        %v1153 = vunpack.c.l.b16 %v1145
        %v1154 = vpack.c.b16 %v1151, %v1150
        %v1155 = vpack.c.b16 %v1153, %v1152
        %v1159 = vsel %vm373, %v1141, 0
        %1161 = vmatprep.subr.bf16.mxu0 0
        %1162 = vmatpush1.bf16.msra.mxu0 0
        %1163 = vmatprep.subr.bf16.mxu0 0
        %1164 = vmatpush1.bf16.msra.mxu0 0
        %1165 = vmatprep.subr.bf16.mxu0 0
        %1166 = vmatpush1.bf16.msra.mxu0 0
        %1167 = vmatprep.subr.bf16.mxu0 0
        %1168 = vmatpush1.bf16.msra.mxu0 0
        %1169 = vmatprep.subr.bf16.mxu0 0
        %1170 = vmatpush1.bf16.msra.mxu0 0
        %1171 = vmatprep.subr.bf16.mxu0 0
        %1172 = vmatpush1.bf16.msra.mxu0 0
        %1173 = vmatprep.subr.bf16.mxu0 0
        %1174 = vmatpush1.bf16.msra.mxu0 %v1155
        %1175 = vmatprep.subr.bf16.mxu0 0
        %1176 = vmatpush1.bf16.msra.mxu0 %v1154
        %1177 = vmatprep.subr.bf16.mxu0 0
        %1178 = vmatpush2.bf16.msra.mxu0 0
        %1179 = vmatprep.subr.bf16.mxu0 0
        %1180 = vmatpush2.bf16.msra.mxu0 0
        %1181 = vmatprep.subr.bf16.mxu0 0
        %1182 = vmatpush2.bf16.msra.mxu0 0
        %1183 = vmatprep.subr.bf16.mxu0 0
        %1184 = vmatpush2.bf16.msra.mxu0 0
        %1185 = vmatprep.subr.bf16.mxu0 0
        %1186 = vmatpush2.bf16.msra.mxu0 0
        %1187 = vmatprep.subr.bf16.mxu0 0
        %1188 = vmatpush2.bf16.msra.mxu0 0
        %1189 = vmatprep.subr.bf16.mxu0 0
        %1190 = vmatpush2.bf16.msra.mxu0 0
        %1191 = vmatprep.subr.bf16.mxu0 0
        %1192 = vmatpush2.bf16.msra.mxu0 0
        %1193 = vmatprep.mubr.bf16.mxu0 0
        %1194 = vmatmul.mubr.bf16.gmra.mxu0 %v1159
        %v1195 = vpop.f32.mrf.mxu0
        %v1196 = vadd.f32 0.0, %v1195
        %v1197 = vpop.f32.mrf.mxu0
        %v1198 = vpop.f32.mrf.mxu0
        %v1199 = vpop.f32.mrf.mxu0
        %1200 = vdwg.mxu0
        %s1201 = scalar_lea.vmem %s3, 16
        %v1202 = vld [vmem:[%s1201] sm:$0xf]
        %v1203 = vld [vmem:[%s1201 + $0x4] sm:$0xf]
        %v1204 = vld [vmem:[%s1201 + $0x8] sm:$0xf]
        %v1205 = vld [vmem:[%s1201 + $0xc] sm:$0xf]
        %v1210 = vunpack.c.l.b16 %v1202
        %v1211 = vunpack.c.l.b16 %v1203
        %v1212 = vunpack.c.l.b16 %v1204
        %v1213 = vunpack.c.l.b16 %v1205
        %v1214 = vpack.c.b16 %v1211, %v1210
        %v1215 = vpack.c.b16 %v1213, %v1212
        %1218 = vmatprep.subr.bf16.mxu0 0
        %1219 = vmatpush1.bf16.msra.mxu0 0
        %1220 = vmatprep.subr.bf16.mxu0 0
        %1221 = vmatpush1.bf16.msra.mxu0 0
        %1222 = vmatprep.subr.bf16.mxu0 0
        %1223 = vmatpush1.bf16.msra.mxu0 0
        %1224 = vmatprep.subr.bf16.mxu0 0
        %1225 = vmatpush1.bf16.msra.mxu0 0
        %1226 = vmatprep.subr.bf16.mxu0 0
        %1227 = vmatpush1.bf16.msra.mxu0 0
        %1228 = vmatprep.subr.bf16.mxu0 0
        %1229 = vmatpush1.bf16.msra.mxu0 0
        %1230 = vmatprep.subr.bf16.mxu0 0
        %1231 = vmatpush1.bf16.msra.mxu0 %v1215
        %1232 = vmatprep.subr.bf16.mxu0 0
        %1233 = vmatpush1.bf16.msra.mxu0 %v1214
        %1234 = vmatprep.subr.bf16.mxu0 0
        %1235 = vmatpush2.bf16.msra.mxu0 0
        %1236 = vmatprep.subr.bf16.mxu0 0
        %1237 = vmatpush2.bf16.msra.mxu0 0
        %1238 = vmatprep.subr.bf16.mxu0 0
        %1239 = vmatpush2.bf16.msra.mxu0 0
        %1240 = vmatprep.subr.bf16.mxu0 0
        %1241 = vmatpush2.bf16.msra.mxu0 0
        %1242 = vmatprep.subr.bf16.mxu0 0
        %1243 = vmatpush2.bf16.msra.mxu0 0
        %1244 = vmatprep.subr.bf16.mxu0 0
        %1245 = vmatpush2.bf16.msra.mxu0 0
        %1246 = vmatprep.subr.bf16.mxu0 0
        %1247 = vmatpush2.bf16.msra.mxu0 0
        %1248 = vmatprep.subr.bf16.mxu0 0
        %1249 = vmatpush2.bf16.msra.mxu0 0
        %1250 = vmatprep.mubr.bf16.mxu0 0
        %1251 = vmatmul.mubr.bf16.gmra.mxu0 %v1159
        %v1252 = vpop.f32.mrf.mxu0
        %v1253 = vadd.f32 0.0, %v1252
        %v1254 = vpop.f32.mrf.mxu0
        %v1255 = vpop.f32.mrf.mxu0
        %v1256 = vpop.f32.mrf.mxu0
        %1257 = vdwg.mxu0
        %v1258 = vxor.u32 %v1196, 2147483648
        %v1259 = vmul.f32 %v1258, 1.442695
        %v1260 = vpow.pop %v1259
        %v1261 = vadd.f32 %v1260, 1.0
        %v1262 = vrcp.pop %v1261
        %v1263 = vmul.f32 1.0, %v1262
        %v1264 = vmul.f32 %v1196, %v1263
        %v1265 = vmul.f32 %v1264, %v1253
        %v1266 = vpack.c.bf16 %v1265, %v1265
        %v1267 = vld [vmem:[%s4] sm:$0xf]
        %v1268 = vld [vmem:[%s4 + $0x4] sm:$0xf]
        %v1269 = vld [vmem:[%s4 + $0x8] sm:$0xf]
        %v1270 = vld [vmem:[%s4 + $0xc] sm:$0xf]
        %v1271 = vld [vmem:[%s4 + $0x10] sm:$0xf]
        %v1272 = vld [vmem:[%s4 + $0x14] sm:$0xf]
        %v1273 = vld [vmem:[%s4 + $0x18] sm:$0xf]
        %v1274 = vld [vmem:[%s4 + $0x1c] sm:$0xf]
        %v1283 = vunpack.c.l.b16 %v1267
        %v1284 = vunpack.c.l.b16 %v1268
        %v1285 = vunpack.c.l.b16 %v1269
        %v1286 = vunpack.c.l.b16 %v1270
        %v1287 = vunpack.c.l.b16 %v1271
        %v1288 = vunpack.c.l.b16 %v1272
        %v1289 = vunpack.c.l.b16 %v1273
        %v1290 = vunpack.c.l.b16 %v1274
        %v1291 = vpack.c.b16 %v1284, %v1283
        %v1292 = vpack.c.b16 %v1286, %v1285
        %v1293 = vpack.c.b16 %v1288, %v1287
        %v1294 = vpack.c.b16 %v1290, %v1289
        %vm1299 = vcmask 523264
        %v1301 = vsel %vm1299, %v1266, 0
        %1303 = vmatprep.subr.bf16.mxu0 0
        %1304 = vmatpush1.bf16.msra.mxu0 0
        %1305 = vmatprep.subr.bf16.mxu0 0
        %1306 = vmatpush1.bf16.msra.mxu0 0
        %1307 = vmatprep.subr.bf16.mxu0 0
        %1308 = vmatpush1.bf16.msra.mxu0 0
        %1309 = vmatprep.subr.bf16.mxu0 0
        %1310 = vmatpush1.bf16.msra.mxu0 0
        %1311 = vmatprep.subr.bf16.mxu0 0
        %1312 = vmatpush1.bf16.msra.mxu0 %v1294
        %1313 = vmatprep.subr.bf16.mxu0 0
        %1314 = vmatpush1.bf16.msra.mxu0 %v1293
        %1315 = vmatprep.subr.bf16.mxu0 0
        %1316 = vmatpush1.bf16.msra.mxu0 %v1292
        %1317 = vmatprep.subr.bf16.mxu0 0
        %1318 = vmatpush1.bf16.msra.mxu0 %v1291
        %1319 = vmatprep.subr.bf16.mxu0 0
        %1320 = vmatpush2.bf16.msra.mxu0 0
        %1321 = vmatprep.subr.bf16.mxu0 0
        %1322 = vmatpush2.bf16.msra.mxu0 0
        %1323 = vmatprep.subr.bf16.mxu0 0
        %1324 = vmatpush2.bf16.msra.mxu0 0
        %1325 = vmatprep.subr.bf16.mxu0 0
        %1326 = vmatpush2.bf16.msra.mxu0 0
        %1327 = vmatprep.subr.bf16.mxu0 0
        %1328 = vmatpush2.bf16.msra.mxu0 0
        %1329 = vmatprep.subr.bf16.mxu0 0
        %1330 = vmatpush2.bf16.msra.mxu0 0
        %1331 = vmatprep.subr.bf16.mxu0 0
        %1332 = vmatpush2.bf16.msra.mxu0 0
        %1333 = vmatprep.subr.bf16.mxu0 0
        %1334 = vmatpush2.bf16.msra.mxu0 0
        %1335 = vmatprep.mubr.bf16.mxu0 0
        %1336 = vmatmul.mubr.bf16.gmra.mxu0 %v1301
        %v1337 = vpop.f32.mrf.mxu0
        %v1338 = vadd.f32 0.0, %v1337
        %v1339 = vpop.f32.mrf.mxu0
        %v1340 = vpop.f32.mrf.mxu0
        %v1341 = vpop.f32.mrf.mxu0
        %1342 = vdwg.mxu0
        %v1343 = vadd.f32 %v1124, %v1338
        %1344 = vst.msk [vmem:[%s365] sm:$0xff] %vm373, %v1343
        %s1345 = sand.u32 %s227, 1
        %s1346 = scalar_lea.sflag [#allocation4], %s1345
        %s1347 = sand.u32 %s227, 1
        %s1348 = smul.addr %s1347, 8
        %s1349 = scalar_lea.vmem [#allocation8], %s1348
        // Predicated region
        $region69: #{tpu_custom_call.1} parent=55 // pred_check
          %p1350 = pneg %p237
        $region70: #{tpu_custom_call.1} parent=55 // pred_check_branch
          %1352 = sbr.rel (%p1350) target = $region72
        $region71: #{tpu_custom_call.1} parent=55 // pred_region
          %s1354 = ssub.s32 128, 128
          %1355 = vsyncadd %s1346, %s1354
          %s1356 = smul.addr %s25, 128
          %s1357 = scalar_lea.hbm %s9, %s1356
          %s1359 = sshll.u32 %s1349, 4
          %s1360 = int_to_ptr.vmem [resolvable:$true] %s1359
          %1362 = dma.vmem_to_hbm [thread:$0]  %s1360, 128, %s1357, %s1346
        $region72: #{tpu_custom_call.1} parent=55 // pred_fallthru
          _
      $region56: #{tpu_custom_call.1} parent=5 // pred_fallthru
        _
      %p1363 = scmp.le.s32.totalorder 2, %s20
      // Predicated region
      $region73: #{tpu_custom_call.1} parent=5 // pred_check
        %p1364 = pneg %p1363
      $region74: #{tpu_custom_call.1} parent=5 // pred_check_branch
        %1366 = sbr.rel (%p1364) target = $region76
      $region75: #{tpu_custom_call.1} parent=5 // pred_region
        %s1367 = ssub.s32 %s20, 2
        // Predicated region
        $region77: #{tpu_custom_call.1} parent=75 // pred_check
          %p1368 = pneg %p243
        $region78: #{tpu_custom_call.1} parent=75 // pred_check_branch
          %1370 = sbr.rel (%p1368) target = $region80
        $region79: #{tpu_custom_call.1} parent=75 // pred_region
          %s1371 = sand.u32 %s228, 1
          %s1372 = scalar_lea.sflag [#allocation4], %s1371
          %s1373 = sand.u32 %s228, 1
          %s1374 = smul.addr %s1373, 8
          %s1375 = scalar_lea.vmem [#allocation8], %s1374
          %1376 = dma.done %s1372, 128
        $region80: #{tpu_custom_call.1} parent=75 // pred_fallthru
          _
      $region76: #{tpu_custom_call.1} parent=5 // pred_fallthru
        _
    $region6: #{tpu_custom_call.1} parent=1 // loop_footer
      %s24 = sadd.s32 1, %s20
    $region7: #{tpu_custom_call.1} parent=1 // loop_footer_branch
      %19 = sbr.rel target = $region3
    $region8: #{tpu_custom_call.1} parent=1 // loop_exit
      _
    %1377 = vsyncpa [#allocation3], 1
    %s1378 = scalar_lea.sflag [#allocation3], 1
    %1379 = vsyncpa %s1378, 1
    %1380 = vsyncpa [#allocation6], 1
    %1381 = vsyncpa [#allocation4], 1
    %s1382 = scalar_lea.sflag [#allocation4], 1
    %1383 = vsyncpa %s1382, 1

</llo_original>
